<compile_context>
chip_gen: v7x
topology: tpu7x:2x2x1
jax: 0.10.0
libtpu: 0.0.40
codegen_flags: <defaults>
</compile_context>

<pallas_src>
import functools

import jax
import jax.numpy as jnp
from jax.experimental import pallas as pl
from jax.experimental.pallas import tpu as pltpu

K_SIZE = 4
BN_EPS = 1e-5


def _round_up(x, m):
    return ((x + m - 1) // m) * m


# ----------------------------- Pallas kernel ------------------------------ #

def _gemm_bias_act_kernel(x_ref, w_ref, bias_ref, o_ref, *, act):
    """o = act(x @ w + bias).  Full-K single block; direct store, no scratch."""
    z = jnp.dot(x_ref[...], w_ref[...], preferred_element_type=jnp.float32)
    z = z + bias_ref[...]
    if act == "relu":
        z = jnp.maximum(z, 0.0)
    else:  # "tanh"
        z = jnp.tanh(z)
    o_ref[...] = z.astype(o_ref.dtype)


@functools.lru_cache(maxsize=None)
def _vmem_limits():
    """Generation-aware VMEM budgeting (v5e/v6e 128 MiB, v7x 64 MiB per TC)."""
    try:
        cap = int(pltpu.get_tpu_info().vmem_capacity_bytes)
    except Exception:
        cap = 64 << 20                       # conservative (v7x per-TC VMEM)
    limit = max(8 << 20, min(cap // 2, 32 << 20))   # explicit scoped limit
    budget = (limit * 3) // 4                        # tile budget w/ headroom
    return budget, limit


def _pick_tm(M, K, Np, budget_bytes):
    """Largest row tile that (a) fits VMEM, (b) divides M, (c) leaves >=2
    grid steps for larger layers so both v7x TensorCores get work."""
    def tile_bytes(t):
        # double-buffered bf16 x tile + f32-worst-case out tile,
        # plus the (grid-invariant but double-buffered) weight & bias blocks.
        return 2 * (t * K * 2 + t * Np * 4) + 2 * (K * Np * 2 + Np * 4)

    max_tm = 512
    if M >= 128:                    # enough rows to split across 2 cores
        max_tm = min(max_tm, M // 2)
    max_tm = max(8, (min(max_tm, M) // 8) * 8)
    while max_tm > 8 and tile_bytes(max_tm) > budget_bytes:
        max_tm = max(8, (max_tm // 2 // 8) * 8)

    t = max_tm
    while t >= 8:                   # prefer a divisor of M (no M padding)
        if M % t == 0:
            return t
        t -= 8
    return max_tm                   # fall back: pad M (not hit for this model)


def gemm_bias_act(x2d, w_p, bias_p, *, act, out_dtype):
    """x2d: (M, K).  w_p: (K, Np) bf16, BN scale folded.  bias_p: (1, Np) f32."""
    M, K = x2d.shape
    Kw, Np = w_p.shape
    assert Kw == K

    budget, vmem_limit = _vmem_limits()
    tm = _pick_tm(M, K, Np, budget)
    Mp = _round_up(M, tm)

    x2d = x2d.astype(jnp.bfloat16)
    if Mp != M:                     # only when no divisor tile exists
        x2d = jnp.zeros((Mp, K), jnp.bfloat16).at[:M, :].set(x2d)

    out = pl.pallas_call(
        functools.partial(_gemm_bias_act_kernel, act=act),
        out_shape=jax.ShapeDtypeStruct((Mp, Np), out_dtype),
        grid_spec=pltpu.PrefetchScalarGridSpec(
            num_scalar_prefetch=0,
            grid=(Mp // tm,),
            in_specs=[
                pl.BlockSpec((tm, K), lambda m: (m, 0)),   # activation rows
                pl.BlockSpec((K, Np), lambda m: (0, 0)),   # full (scaled) weights
                pl.BlockSpec((1, Np), lambda m: (0, 0)),   # folded-BN bias
            ],
            out_specs=pl.BlockSpec((tm, Np), lambda m: (m, 0)),
        ),
        compiler_params=pltpu.CompilerParams(
            dimension_semantics=("parallel",),
            vmem_limit_bytes=vmem_limit),
    )(x2d, w_p, bias_p)

    if Mp != M:
        out = out[:M]
    return out


# --------------------- ConvTranspose2d -> GEMM plumbing -------------------- #

def _convtranspose_im2col_nhwc(h, stride, pad):
    """im2col of the zero-dilated & padded NHWC input for the equivalent conv."""
    B, Hin, Win, Cin = h.shape
    k = K_SIZE
    Hout = (Hin - 1) * stride - 2 * pad + k
    Wout = (Win - 1) * stride - 2 * pad + k
    q = k - 1 - pad
    Hd = (Hin - 1) * stride + 1
    Wd = (Win - 1) * stride + 1
    xd = jnp.zeros((B, Hd, Wd, Cin), h.dtype).at[:, ::stride, ::stride, :].set(h)
    xq = jnp.pad(xd, ((0, 0), (q, q), (q, q), (0, 0)))
    cols = [xq[:, i:i + Hout, j:j + Wout, :] for i in range(k) for j in range(k)]
    patches = jnp.stack(cols, axis=-1)            # (B, Hout, Wout, Cin, k*k)
    return patches.reshape(B * Hout * Wout, Cin * k * k), Hout, Wout


def _convtranspose_weight_to_matrix(wt):
    """PyTorch ConvTranspose2d weight (Cin, Cout, k, k) -> (Cin*k*k, Cout)."""
    Cin, Cout, k, _ = wt.shape
    wf = wt[:, :, ::-1, ::-1]                     # spatial flip
    return jnp.transpose(wf, (0, 2, 3, 1)).reshape(Cin * k * k, Cout)


# --------------------------- Module-level glue ----------------------------- #

def _decoder_layer_defs(ngf, nc):
    return [
        dict(cin=1,       cout=ngf * 8, stride=1, pad=0, bn=True,  act="relu"),
        dict(cin=ngf * 8, cout=ngf * 4, stride=2, pad=1, bn=True,  act="relu"),
        dict(cin=ngf * 4, cout=ngf * 2, stride=2, pad=1, bn=True,  act="relu"),
        dict(cin=ngf * 2, cout=ngf,     stride=2, pad=1, bn=True,  act="relu"),
        dict(cin=ngf,     cout=nc,      stride=2, pad=1, bn=False, act="tanh"),
    ]


def init_decoder_params(key, ngf, nc):
    """PyTorch _initialize_weights: ConvT weights ~ N(0, 0.02); BN gamma=1, beta=0."""
    defs = _decoder_layer_defs(ngf, nc)
    keys = jax.random.split(key, len(defs))
    params = []
    for k_i, d in zip(keys, defs):
        layer = dict(d)
        layer["w"] = 0.02 * jax.random.normal(
            k_i, (d["cin"], d["cout"], K_SIZE, K_SIZE), jnp.float32)
        if d["bn"]:
            layer["gamma"] = jnp.ones((d["cout"],), jnp.float32)
            layer["beta"] = jnp.zeros((d["cout"],), jnp.float32)
            layer["mean"] = jnp.zeros((d["cout"],), jnp.float32)   # running_mean
            layer["var"] = jnp.ones((d["cout"],), jnp.float32)     # running_var
        params.append(layer)
    return params


def prepare_decoder_params(params):
    """One-time: fold BN scale into bf16 GEMM weights, pad N to 128 lanes."""
    cfgs, weights = [], []
    n_layers = len(params)
    for idx, layer in enumerate(params):
        cout = layer["cout"]
        wm = _convtranspose_weight_to_matrix(layer["w"])            # (Cin*16, Cout)
        if layer["bn"]:
            scale = layer["gamma"] / jnp.sqrt(layer["var"] + BN_EPS)
            bias = layer["beta"] - layer["mean"] * scale
        else:
            scale = jnp.ones((cout,), jnp.float32)
            bias = jnp.zeros((cout,), jnp.float32)
        wm = wm * scale[None, :]                                    # fold BN scale
        K, N = wm.shape
        Np = _round_up(N, 128)                                      # lane-dense out
        w_p = jnp.zeros((K, Np), jnp.bfloat16).at[:, :N].set(wm.astype(jnp.bfloat16))
        bias_p = jnp.zeros((1, Np), jnp.float32).at[0, :N].set(bias)
        cfgs.append(dict(stride=layer["stride"], pad=layer["pad"],
                         act=layer["act"], cout=cout, last=(idx == n_layers - 1)))
        weights.append((w_p, bias_p))
    return tuple(cfgs), weights


def make_decoder_forward(cfgs):
    """Build a jitted forward: x (B,1,H,W) NCHW f32 -> (B,nc,Hout,Wout) NCHW f32."""
    def forward(weights, x):
        h = jnp.transpose(x, (0, 2, 3, 1))          # NCHW -> NHWC once
        for cfg, (w_p, bias_p) in zip(cfgs, weights):
            B = h.shape[0]
            patches, Hout, Wout = _convtranspose_im2col_nhwc(
                h, cfg["stride"], cfg["pad"])
            out_dtype = jnp.float32 if cfg["last"] else jnp.bfloat16
            y = gemm_bias_act(patches, w_p, bias_p,
                              act=cfg["act"], out_dtype=out_dtype)
            h = y[:, :cfg["cout"]].reshape(B, Hout, Wout, cfg["cout"])
        return jnp.transpose(h, (0, 3, 1, 2))       # NHWC -> NCHW at the end
    return jax.jit(forward)


def decoder_reference(params, x):
    """Pure-JAX f32 reference (lax conv with lhs_dilation == ConvTranspose2d)."""
    h = x
    for layer in params:
        w = layer["w"]                                              # (Cin, Cout, k, k)
        rhs = jnp.transpose(w[:, :, ::-1, ::-1], (1, 0, 2, 3))      # (Cout, Cin, k, k)
        q = K_SIZE - 1 - layer["pad"]
        h = jax.lax.conv_general_dilated(
            h, rhs, window_strides=(1, 1),
            padding=[(q, q), (q, q)],
            lhs_dilation=(layer["stride"], layer["stride"]),
            dimension_numbers=("NCHW", "OIHW", "NCHW"))
        if layer["bn"]:
            inv = layer["gamma"] / jnp.sqrt(layer["var"] + BN_EPS)
            h = (h - layer["mean"][None, :, None, None]) * inv[None, :, None, None] \
                + layer["beta"][None, :, None, None]
        if layer["act"] == "relu":
            h = jnp.maximum(h, 0.0)
        else:
            h = jnp.tanh(h)
    return h


# --------------------------------- Main ------------------------------------ #

if __name__ == "__main__":
    key = jax.random.PRNGKey(0)
    k_params, k_x = jax.random.split(key)

    batch = 2
    ngf = 8      # opt.end_num_decoder_filt
    nc = 3       # opt.use_bw_mask is False

    params = init_decoder_params(k_params, ngf, nc)
    cfgs, weights = prepare_decoder_params(params)
    forward = make_decoder_forward(cfgs)

    # DCGAN-style latent: first layer is ConvTranspose2d(1, ngf*8, 4, 1, 0).
    x = jax.random.normal(k_x, (batch, 1, 1, 1), jnp.float32)

    out = jax.block_until_ready(forward(weights, x))

    ref = decoder_reference(params, x)
    assert out.shape == (batch, nc, 64, 64), out.shape
    max_err = float(jnp.max(jnp.abs(out - ref)))
    assert jnp.allclose(out, ref, atol=2e-3, rtol=2e-3), (
        f"mismatch vs reference: max abs err {max_err}"
    )

    print("KERNEL_OK")
</pallas_src>

<mosaic_0001>
module attributes {stable_mosaic.version = 11 : i64} {
  func.func @_gemm_bias_act_kernel(%arg0: i32, %arg1: memref<32x16xbf16, #tpu.memory_space<vmem>>, %arg2: memref<16x128xbf16, #tpu.memory_space<vmem>>, %arg3: memref<1x128xf32, #tpu.memory_space<vmem>>, %arg4: memref<32x128xbf16, #tpu.memory_space<vmem>>) attributes {dimension_semantics = [#tpu.dimension_semantics<parallel>], iteration_bounds = array<i64: 1>, scalar_prefetch = 0 : i64, scratch_operands = 0 : i64, tpu.core_type = #tpu.core_type<tc>, window_params = [{transform_indices = @transform_0, window_bounds = array<i64: 32, 16>}, {pipeline_mode = #tpu.pipeline_mode<synchronous>, transform_indices = @transform_1, window_bounds = array<i64: 16, 128>}, {pipeline_mode = #tpu.pipeline_mode<synchronous>, transform_indices = @transform_2, window_bounds = array<i64: 1, 128>}, {transform_indices = @transform_3, window_bounds = array<i64: 32, 128>}]} {
    %c0 = arith.constant 0 : index
    %c0_0 = arith.constant 0 : index
    %0 = vector.load %arg1[%c0, %c0_0] : memref<32x16xbf16, #tpu.memory_space<vmem>>, vector<32x16xbf16>
    %c0_1 = arith.constant 0 : index
    %c0_2 = arith.constant 0 : index
    %1 = vector.load %arg2[%c0_1, %c0_2] : memref<16x128xbf16, #tpu.memory_space<vmem>>, vector<16x128xbf16>
    %cst = arith.constant dense<0.000000e+00> : vector<32x128xf32>
    %2 = tpu.matmul %0, %1, %cst {dimension_numbers = #tpu.dot_dimension_numbers<[1], [0], [0], [1], [0, 0, 1, 1], [], []>} : vector<32x16xbf16>, vector<16x128xbf16>, vector<32x128xf32> -> vector<32x128xf32>
    %c0_3 = arith.constant 0 : index
    %c0_4 = arith.constant 0 : index
    %3 = vector.load %arg3[%c0_3, %c0_4] : memref<1x128xf32, #tpu.memory_space<vmem>>, vector<1x128xf32>
    %4 = vector.broadcast %3 : vector<1x128xf32> to vector<32x128xf32>
    %5 = arith.addf %2, %4 : vector<32x128xf32>
    %cst_5 = arith.constant 0.000000e+00 : f32
    %6 = vector.broadcast %cst_5 : f32 to vector<32x128xf32>
    %7 = arith.maximumf %5, %6 : vector<32x128xf32>
    %8 = arith.truncf %7 : vector<32x128xf32> to vector<32x128xbf16>
    %c0_6 = arith.constant 0 : index
    %c0_7 = arith.constant 0 : index
    %9 = vector.load %arg4[%c0_6, %c0_7] : memref<32x128xbf16, #tpu.memory_space<vmem>>, vector<32x128xbf16>
    tpu.vector_store %arg4[%c0_6, %c0_7], %8 {strides = array<i32>} : memref<32x128xbf16, #tpu.memory_space<vmem>>, vector<32x128xbf16>,
    return
  }
  func.func @transform_0(%arg0: i32) -> (i32, i32) {
    %c0_i32 = arith.constant 0 : i32
    %c0_i32_0 = arith.constant 0 : i32
    return %arg0, %c0_i32 : i32, i32
  }
  func.func @transform_1(%arg0: i32) -> (i32, i32) {
    %c0_i32 = arith.constant 0 : i32
    %c0_i32_0 = arith.constant 0 : i32
    %c0_i32_1 = arith.constant 0 : i32
    return %c0_i32, %c0_i32_0 : i32, i32
  }
  func.func @transform_2(%arg0: i32) -> (i32, i32) {
    %c0_i32 = arith.constant 0 : i32
    %c0_i32_0 = arith.constant 0 : i32
    %c0_i32_1 = arith.constant 0 : i32
    return %c0_i32, %c0_i32_0 : i32, i32
  }
  func.func @transform_3(%arg0: i32) -> (i32, i32) {
    %c0_i32 = arith.constant 0 : i32
    %c0_i32_0 = arith.constant 0 : i32
    return %arg0, %c0_i32 : i32, i32
  }
}

module attributes {stable_mosaic.version = 11 : i64} {
  func.func @_gemm_bias_act_kernel(%arg0: i32, %arg1: memref<64x1024xbf16, #tpu.memory_space<vmem>>, %arg2: memref<1024x128xbf16, #tpu.memory_space<vmem>>, %arg3: memref<1x128xf32, #tpu.memory_space<vmem>>, %arg4: memref<64x128xbf16, #tpu.memory_space<vmem>>) attributes {dimension_semantics = [#tpu.dimension_semantics<parallel>], iteration_bounds = array<i64: 2>, scalar_prefetch = 0 : i64, scratch_operands = 0 : i64, tpu.core_type = #tpu.core_type<tc>, window_params = [{transform_indices = @transform_0, window_bounds = array<i64: 64, 1024>}, {pipeline_mode = #tpu.pipeline_mode<synchronous>, transform_indices = @transform_1, window_bounds = array<i64: 1024, 128>}, {pipeline_mode = #tpu.pipeline_mode<synchronous>, transform_indices = @transform_2, window_bounds = array<i64: 1, 128>}, {transform_indices = @transform_3, window_bounds = array<i64: 64, 128>}]} {
    %c0 = arith.constant 0 : index
    %c0_0 = arith.constant 0 : index
    %0 = vector.load %arg1[%c0, %c0_0] : memref<64x1024xbf16, #tpu.memory_space<vmem>>, vector<64x1024xbf16>
    %c0_1 = arith.constant 0 : index
    %c0_2 = arith.constant 0 : index
    %1 = vector.load %arg2[%c0_1, %c0_2] : memref<1024x128xbf16, #tpu.memory_space<vmem>>, vector<1024x128xbf16>
    %cst = arith.constant dense<0.000000e+00> : vector<64x128xf32>
    %2 = tpu.matmul %0, %1, %cst {dimension_numbers = #tpu.dot_dimension_numbers<[1], [0], [0], [1], [0, 0, 1, 1], [], []>} : vector<64x1024xbf16>, vector<1024x128xbf16>, vector<64x128xf32> -> vector<64x128xf32>
    %c0_3 = arith.constant 0 : index
    %c0_4 = arith.constant 0 : index
    %3 = vector.load %arg3[%c0_3, %c0_4] : memref<1x128xf32, #tpu.memory_space<vmem>>, vector<1x128xf32>
    %4 = vector.broadcast %3 : vector<1x128xf32> to vector<64x128xf32>
    %5 = arith.addf %2, %4 : vector<64x128xf32>
    %cst_5 = arith.constant 0.000000e+00 : f32
    %6 = vector.broadcast %cst_5 : f32 to vector<64x128xf32>
    %7 = arith.maximumf %5, %6 : vector<64x128xf32>
    %8 = arith.truncf %7 : vector<64x128xf32> to vector<64x128xbf16>
    %c0_6 = arith.constant 0 : index
    %c0_7 = arith.constant 0 : index
    %9 = vector.load %arg4[%c0_6, %c0_7] : memref<64x128xbf16, #tpu.memory_space<vmem>>, vector<64x128xbf16>
    tpu.vector_store %arg4[%c0_6, %c0_7], %8 {strides = array<i32>} : memref<64x128xbf16, #tpu.memory_space<vmem>>, vector<64x128xbf16>,
    return
  }
  func.func @transform_0(%arg0: i32) -> (i32, i32) {
    %c0_i32 = arith.constant 0 : i32
    %c0_i32_0 = arith.constant 0 : i32
    return %arg0, %c0_i32 : i32, i32
  }
  func.func @transform_1(%arg0: i32) -> (i32, i32) {
    %c0_i32 = arith.constant 0 : i32
    %c0_i32_0 = arith.constant 0 : i32
    %c0_i32_1 = arith.constant 0 : i32
    return %c0_i32, %c0_i32_0 : i32, i32
  }
  func.func @transform_2(%arg0: i32) -> (i32, i32) {
    %c0_i32 = arith.constant 0 : i32
    %c0_i32_0 = arith.constant 0 : i32
    %c0_i32_1 = arith.constant 0 : i32
    return %c0_i32, %c0_i32_0 : i32, i32
  }
  func.func @transform_3(%arg0: i32) -> (i32, i32) {
    %c0_i32 = arith.constant 0 : i32
    %c0_i32_0 = arith.constant 0 : i32
    return %arg0, %c0_i32 : i32, i32
  }
}

module attributes {stable_mosaic.version = 11 : i64} {
  func.func @_gemm_bias_act_kernel(%arg0: i32, %arg1: memref<256x512xbf16, #tpu.memory_space<vmem>>, %arg2: memref<512x128xbf16, #tpu.memory_space<vmem>>, %arg3: memref<1x128xf32, #tpu.memory_space<vmem>>, %arg4: memref<256x128xbf16, #tpu.memory_space<vmem>>) attributes {dimension_semantics = [#tpu.dimension_semantics<parallel>], iteration_bounds = array<i64: 2>, scalar_prefetch = 0 : i64, scratch_operands = 0 : i64, tpu.core_type = #tpu.core_type<tc>, window_params = [{transform_indices = @transform_0, window_bounds = array<i64: 256, 512>}, {pipeline_mode = #tpu.pipeline_mode<synchronous>, transform_indices = @transform_1, window_bounds = array<i64: 512, 128>}, {pipeline_mode = #tpu.pipeline_mode<synchronous>, transform_indices = @transform_2, window_bounds = array<i64: 1, 128>}, {transform_indices = @transform_3, window_bounds = array<i64: 256, 128>}]} {
    %c0 = arith.constant 0 : index
    %c0_0 = arith.constant 0 : index
    %0 = vector.load %arg1[%c0, %c0_0] : memref<256x512xbf16, #tpu.memory_space<vmem>>, vector<256x512xbf16>
    %c0_1 = arith.constant 0 : index
    %c0_2 = arith.constant 0 : index
    %1 = vector.load %arg2[%c0_1, %c0_2] : memref<512x128xbf16, #tpu.memory_space<vmem>>, vector<512x128xbf16>
    %cst = arith.constant dense<0.000000e+00> : vector<256x128xf32>
    %2 = tpu.matmul %0, %1, %cst {dimension_numbers = #tpu.dot_dimension_numbers<[1], [0], [0], [1], [0, 0, 1, 1], [], []>} : vector<256x512xbf16>, vector<512x128xbf16>, vector<256x128xf32> -> vector<256x128xf32>
    %c0_3 = arith.constant 0 : index
    %c0_4 = arith.constant 0 : index
    %3 = vector.load %arg3[%c0_3, %c0_4] : memref<1x128xf32, #tpu.memory_space<vmem>>, vector<1x128xf32>
    %4 = vector.broadcast %3 : vector<1x128xf32> to vector<256x128xf32>
    %5 = arith.addf %2, %4 : vector<256x128xf32>
    %cst_5 = arith.constant 0.000000e+00 : f32
    %6 = vector.broadcast %cst_5 : f32 to vector<256x128xf32>
    %7 = arith.maximumf %5, %6 : vector<256x128xf32>
    %8 = arith.truncf %7 : vector<256x128xf32> to vector<256x128xbf16>
    %c0_6 = arith.constant 0 : index
    %c0_7 = arith.constant 0 : index
    %9 = vector.load %arg4[%c0_6, %c0_7] : memref<256x128xbf16, #tpu.memory_space<vmem>>, vector<256x128xbf16>
    tpu.vector_store %arg4[%c0_6, %c0_7], %8 {strides = array<i32>} : memref<256x128xbf16, #tpu.memory_space<vmem>>, vector<256x128xbf16>,
    return
  }
  func.func @transform_0(%arg0: i32) -> (i32, i32) {
    %c0_i32 = arith.constant 0 : i32
    %c0_i32_0 = arith.constant 0 : i32
    return %arg0, %c0_i32 : i32, i32
  }
  func.func @transform_1(%arg0: i32) -> (i32, i32) {
    %c0_i32 = arith.constant 0 : i32
    %c0_i32_0 = arith.constant 0 : i32
    %c0_i32_1 = arith.constant 0 : i32
    return %c0_i32, %c0_i32_0 : i32, i32
  }
  func.func @transform_2(%arg0: i32) -> (i32, i32) {
    %c0_i32 = arith.constant 0 : i32
    %c0_i32_0 = arith.constant 0 : i32
    %c0_i32_1 = arith.constant 0 : i32
    return %c0_i32, %c0_i32_0 : i32, i32
  }
  func.func @transform_3(%arg0: i32) -> (i32, i32) {
    %c0_i32 = arith.constant 0 : i32
    %c0_i32_0 = arith.constant 0 : i32
    return %arg0, %c0_i32 : i32, i32
  }
}

module attributes {stable_mosaic.version = 11 : i64} {
  func.func @_gemm_bias_act_kernel(%arg0: i32, %arg1: memref<512x256xbf16, #tpu.memory_space<vmem>>, %arg2: memref<256x128xbf16, #tpu.memory_space<vmem>>, %arg3: memref<1x128xf32, #tpu.memory_space<vmem>>, %arg4: memref<512x128xbf16, #tpu.memory_space<vmem>>) attributes {dimension_semantics = [#tpu.dimension_semantics<parallel>], iteration_bounds = array<i64: 4>, scalar_prefetch = 0 : i64, scratch_operands = 0 : i64, tpu.core_type = #tpu.core_type<tc>, window_params = [{transform_indices = @transform_0, window_bounds = array<i64: 512, 256>}, {pipeline_mode = #tpu.pipeline_mode<synchronous>, transform_indices = @transform_1, window_bounds = array<i64: 256, 128>}, {pipeline_mode = #tpu.pipeline_mode<synchronous>, transform_indices = @transform_2, window_bounds = array<i64: 1, 128>}, {transform_indices = @transform_3, window_bounds = array<i64: 512, 128>}]} {
    %c0 = arith.constant 0 : index
    %c0_0 = arith.constant 0 : index
    %0 = vector.load %arg1[%c0, %c0_0] : memref<512x256xbf16, #tpu.memory_space<vmem>>, vector<512x256xbf16>
    %c0_1 = arith.constant 0 : index
    %c0_2 = arith.constant 0 : index
    %1 = vector.load %arg2[%c0_1, %c0_2] : memref<256x128xbf16, #tpu.memory_space<vmem>>, vector<256x128xbf16>
    %cst = arith.constant dense<0.000000e+00> : vector<512x128xf32>
    %2 = tpu.matmul %0, %1, %cst {dimension_numbers = #tpu.dot_dimension_numbers<[1], [0], [0], [1], [0, 0, 1, 1], [], []>} : vector<512x256xbf16>, vector<256x128xbf16>, vector<512x128xf32> -> vector<512x128xf32>
    %c0_3 = arith.constant 0 : index
    %c0_4 = arith.constant 0 : index
    %3 = vector.load %arg3[%c0_3, %c0_4] : memref<1x128xf32, #tpu.memory_space<vmem>>, vector<1x128xf32>
    %4 = vector.broadcast %3 : vector<1x128xf32> to vector<512x128xf32>
    %5 = arith.addf %2, %4 : vector<512x128xf32>
    %cst_5 = arith.constant 0.000000e+00 : f32
    %6 = vector.broadcast %cst_5 : f32 to vector<512x128xf32>
    %7 = arith.maximumf %5, %6 : vector<512x128xf32>
    %8 = arith.truncf %7 : vector<512x128xf32> to vector<512x128xbf16>
    %c0_6 = arith.constant 0 : index
    %c0_7 = arith.constant 0 : index
    %9 = vector.load %arg4[%c0_6, %c0_7] : memref<512x128xbf16, #tpu.memory_space<vmem>>, vector<512x128xbf16>
    tpu.vector_store %arg4[%c0_6, %c0_7], %8 {strides = array<i32>} : memref<512x128xbf16, #tpu.memory_space<vmem>>, vector<512x128xbf16>,
    return
  }
  func.func @transform_0(%arg0: i32) -> (i32, i32) {
    %c0_i32 = arith.constant 0 : i32
    %c0_i32_0 = arith.constant 0 : i32
    return %arg0, %c0_i32 : i32, i32
  }
  func.func @transform_1(%arg0: i32) -> (i32, i32) {
    %c0_i32 = arith.constant 0 : i32
    %c0_i32_0 = arith.constant 0 : i32
    %c0_i32_1 = arith.constant 0 : i32
    return %c0_i32, %c0_i32_0 : i32, i32
  }
  func.func @transform_2(%arg0: i32) -> (i32, i32) {
    %c0_i32 = arith.constant 0 : i32
    %c0_i32_0 = arith.constant 0 : i32
    %c0_i32_1 = arith.constant 0 : i32
    return %c0_i32, %c0_i32_0 : i32, i32
  }
  func.func @transform_3(%arg0: i32) -> (i32, i32) {
    %c0_i32 = arith.constant 0 : i32
    %c0_i32_0 = arith.constant 0 : i32
    return %arg0, %c0_i32 : i32, i32
  }
}

module attributes {stable_mosaic.version = 11 : i64} {
  func.func @_gemm_bias_act_kernel(%arg0: i32, %arg1: memref<512x128xbf16, #tpu.memory_space<vmem>>, %arg2: memref<128x128xbf16, #tpu.memory_space<vmem>>, %arg3: memref<1x128xf32, #tpu.memory_space<vmem>>, %arg4: memref<512x128xf32, #tpu.memory_space<vmem>>) attributes {dimension_semantics = [#tpu.dimension_semantics<parallel>], iteration_bounds = array<i64: 16>, scalar_prefetch = 0 : i64, scratch_operands = 0 : i64, tpu.core_type = #tpu.core_type<tc>, window_params = [{transform_indices = @transform_0, window_bounds = array<i64: 512, 128>}, {pipeline_mode = #tpu.pipeline_mode<synchronous>, transform_indices = @transform_1, window_bounds = array<i64: 128, 128>}, {pipeline_mode = #tpu.pipeline_mode<synchronous>, transform_indices = @transform_2, window_bounds = array<i64: 1, 128>}, {transform_indices = @transform_3, window_bounds = array<i64: 512, 128>}]} {
    %c0 = arith.constant 0 : index
    %c0_0 = arith.constant 0 : index
    %0 = vector.load %arg1[%c0, %c0_0] : memref<512x128xbf16, #tpu.memory_space<vmem>>, vector<512x128xbf16>
    %c0_1 = arith.constant 0 : index
    %c0_2 = arith.constant 0 : index
    %1 = vector.load %arg2[%c0_1, %c0_2] : memref<128x128xbf16, #tpu.memory_space<vmem>>, vector<128x128xbf16>
    %cst = arith.constant dense<0.000000e+00> : vector<512x128xf32>
    %2 = tpu.matmul %0, %1, %cst {dimension_numbers = #tpu.dot_dimension_numbers<[1], [0], [0], [1], [0, 0, 1, 1], [], []>} : vector<512x128xbf16>, vector<128x128xbf16>, vector<512x128xf32> -> vector<512x128xf32>
    %c0_3 = arith.constant 0 : index
    %c0_4 = arith.constant 0 : index
    %3 = vector.load %arg3[%c0_3, %c0_4] : memref<1x128xf32, #tpu.memory_space<vmem>>, vector<1x128xf32>
    %4 = vector.broadcast %3 : vector<1x128xf32> to vector<512x128xf32>
    %5 = arith.addf %2, %4 : vector<512x128xf32>
    %6 = math.tanh %5 : vector<512x128xf32>
    %c0_5 = arith.constant 0 : index
    %c0_6 = arith.constant 0 : index
    %7 = vector.load %arg4[%c0_5, %c0_6] : memref<512x128xf32, #tpu.memory_space<vmem>>, vector<512x128xf32>
    tpu.vector_store %arg4[%c0_5, %c0_6], %6 {strides = array<i32>} : memref<512x128xf32, #tpu.memory_space<vmem>>, vector<512x128xf32>,
    return
  }
  func.func @transform_0(%arg0: i32) -> (i32, i32) {
    %c0_i32 = arith.constant 0 : i32
    %c0_i32_0 = arith.constant 0 : i32
    return %arg0, %c0_i32 : i32, i32
  }
  func.func @transform_1(%arg0: i32) -> (i32, i32) {
    %c0_i32 = arith.constant 0 : i32
    %c0_i32_0 = arith.constant 0 : i32
    %c0_i32_1 = arith.constant 0 : i32
    return %c0_i32, %c0_i32_0 : i32, i32
  }
  func.func @transform_2(%arg0: i32) -> (i32, i32) {
    %c0_i32 = arith.constant 0 : i32
    %c0_i32_0 = arith.constant 0 : i32
    %c0_i32_1 = arith.constant 0 : i32
    return %c0_i32, %c0_i32_0 : i32, i32
  }
  func.func @transform_3(%arg0: i32) -> (i32, i32) {
    %c0_i32 = arith.constant 0 : i32
    %c0_i32_0 = arith.constant 0 : i32
    return %arg0, %c0_i32 : i32, i32
  }
}

</mosaic_0001>

<llo_original>
// kernel: forward.5
$region0: #{forward.5}
  #allocation0 [shape = 'u32[]', space=smem, size = 0x4, offset = 0x4, fixed_abs, tag = 'smem constant byte address 0x4 - core index']
  #allocation1 [shape = 'u32[144,128]{1,0:T(1,128)}', space=vmem, size = 0x12000, scoped, tag = 'internal scratch']
  %s0 = inlined_call_operand.vmem [shape: bf16[32,16], index: 0, kind: input, shape index: {}]
  %s1 = inlined_call_operand.hbm [shape: bf16[16,128], index: 1, kind: input, shape index: {}]
  %s2 = inlined_call_operand.hbm [shape: f32[1,128], index: 2, kind: input, shape index: {}]
  %s3 = inlined_call_operand.vmem [shape: bf16[32,128], index: 3, kind: output, shape index: {}]
  %s4 = sld [smem:[#allocation0]]
  $region30: #{forward.5} parent=0
    _
  %s6 = ssub.s32 1, %s4
  %s7 = scalar_select 0, %s6, %s4
  $region1: #{forward.5} parent=0
    #allocation2 [shape = 'u8[4096]{0}', space=vmem, size = 0x1000, scoped, tag = 'input window, operand 1, single buffered']
    #allocation3 [shape = 's32[1]{0}', space=sflag, size = 0x4, scoped, tag = 'scoped memory for forward.5']
    #allocation4 [shape = 'u8[512]{0}', space=vmem, size = 0x400, scoped, tag = 'input window, operand 2, single buffered']
    #allocation5 [shape = 's32[1]{0}', space=sflag, size = 0x4, scoped, tag = 'scoped memory for forward.5']
    %8 = vsyncpa [#allocation3], 0
    %9 = vsyncpa [#allocation5], 0
    // Predicated region
    $region2: #{forward.5} parent=1 // pred_check
      _
    $region3: #{forward.5} parent=1 // pred_check_branch
      %11 = sbr.rel (0) target = $region5
    $region4: #{forward.5} parent=1 // pred_region
      _
    $region5: #{forward.5} parent=1 // pred_fallthru
      _
    // Predicated region
    $region6: #{forward.5} parent=1 // pred_check
      _
    $region7: #{forward.5} parent=1 // pred_check_branch
      %13 = sbr.rel (0) target = $region9
    $region8: #{forward.5} parent=1 // pred_region
      %s15 = ssub.s32 128, 128
      %16 = vsyncadd [#allocation3], %s15
      %s17 = sshll.u32 [#allocation2], 4
      %s18 = int_to_ptr.vmem [resolvable:$true] %s17
      %23 = dma.hbm_to_vmem [thread:$0]  %s1, 128, %s18, [#allocation3], 64, 64, 4
    $region9: #{forward.5} parent=1 // pred_fallthru
      _
    // Predicated region
    $region10: #{forward.5} parent=1 // pred_check
      _
    $region11: #{forward.5} parent=1 // pred_check_branch
      %25 = sbr.rel (0) target = $region13
    $region12: #{forward.5} parent=1 // pred_region
      %s27 = ssub.s32 16, 16
      %28 = vsyncadd [#allocation5], %s27
      %s30 = sshll.u32 [#allocation4], 4
      %s31 = int_to_ptr.vmem [resolvable:$true] %s30
      %33 = dma.hbm_to_vmem [thread:$0]  %s2, 16, %s31, [#allocation5]
    $region13: #{forward.5} parent=1 // pred_fallthru
      _
    // Predicated region
    $region14: #{forward.5} parent=1 // pred_check
      _
    $region15: #{forward.5} parent=1 // pred_check_branch
      %35 = sbr.rel (0) target = $region17
    $region16: #{forward.5} parent=1 // pred_region
      %36 = dma.done [#allocation3], 128
    $region17: #{forward.5} parent=1 // pred_fallthru
      _
    // Predicated region
    $region18: #{forward.5} parent=1 // pred_check
      _
    $region19: #{forward.5} parent=1 // pred_check_branch
      %38 = sbr.rel (0) target = $region21
    $region20: #{forward.5} parent=1 // pred_region
      %39 = dma.done [#allocation5], 16
    $region21: #{forward.5} parent=1 // pred_fallthru
      _
    %v41 = vld [vmem:[%s0] sm:$0xf]
    %v42 = vld [vmem:[%s0 + $0x4] sm:$0xf]
    %v43 = vld [vmem:[%s0 + $0x8] sm:$0xf]
    %v44 = vld [vmem:[%s0 + $0xc] sm:$0xf]
    %v45 = vld [vmem:[#allocation2] sm:$0xf]
    %v46 = vld [vmem:[#allocation2 + $0x4] sm:$0xf]
    %v47 = vld [vmem:[#allocation4] sm:$0x1]
    %v49 = vlaneseq
    %v50 = vshrl.u32 %v49, 7
    %v51 = vsub.s32 0, %v50
    %v52 = vrot.slane %v47, %v51
    %v58 = vunpack.c.l.b16 %v41
    %v59 = vunpack.c.l.b16 %v42
    %v60 = vunpack.c.l.b16 %v43
    %v61 = vunpack.c.l.b16 %v44
    %v62 = vpack.c.b16 %v59, %v58
    %v63 = vpack.c.b16 %v61, %v60
    %v66 = vunpack.c.l.b16 %v45
    %v67 = vunpack.c.l.b16 %v46
    %v68 = vpack.c.b16 %v67, %v66
    %vm70 = vcmask 130048
    %v72 = vsel %vm70, %v62, 0
    %v75 = vsel %vm70, %v63, 0
    %77 = vmatprep.subr.bf16.mxu0 0
    %78 = vmatpush1.bf16.msra.mxu0 %v68
    %79 = vmatprep.subr.bf16.mxu0 0
    %80 = vmatpush1.bf16.msra.mxu0 0
    %81 = vmatprep.subr.bf16.mxu0 0
    %82 = vmatpush1.bf16.msra.mxu0 0
    %83 = vmatprep.subr.bf16.mxu0 0
    %84 = vmatpush1.bf16.msra.mxu0 0
    %85 = vmatprep.subr.bf16.mxu0 0
    %86 = vmatpush1.bf16.msra.mxu0 0
    %87 = vmatprep.subr.bf16.mxu0 0
    %88 = vmatpush1.bf16.msra.mxu0 0
    %89 = vmatprep.subr.bf16.mxu0 0
    %90 = vmatpush1.bf16.msra.mxu0 0
    %91 = vmatprep.subr.bf16.mxu0 0
    %92 = vmatpush1.bf16.msra.mxu0 0
    %93 = vmatprep.subr.bf16.mxu0 0
    %94 = vmatpush1.bf16.msra.mxu0 0
    %95 = vmatprep.subr.bf16.mxu0 0
    %96 = vmatpush1.bf16.msra.mxu0 0
    %97 = vmatprep.subr.bf16.mxu0 0
    %98 = vmatpush1.bf16.msra.mxu0 0
    %99 = vmatprep.subr.bf16.mxu0 0
    %100 = vmatpush1.bf16.msra.mxu0 0
    %101 = vmatprep.subr.bf16.mxu0 0
    %102 = vmatpush1.bf16.msra.mxu0 0
    %103 = vmatprep.subr.bf16.mxu0 0
    %104 = vmatpush1.bf16.msra.mxu0 0
    %105 = vmatprep.subr.bf16.mxu0 0
    %106 = vmatpush1.bf16.msra.mxu0 0
    %107 = vmatprep.subr.bf16.mxu0 0
    %108 = vmatpush1.bf16.msra.mxu0 0
    %109 = vmatprep.mubr.bf16.mxu0 0
    %110 = vmatmul.mubr.bf16.gmra.mrb[0].mxu0 %v72
    %v111 = vpop.f32.mrb[0].mxu0
    %v112 = vadd.f32 %v52, %v111
    %v113 = vpop.f32.mrb[0].mxu0
    %v114 = vpop.f32.mrb[0].mxu0
    %v115 = vadd.f32 %v52, %v114
    %v116 = vpop.f32.mrb[0].mxu0
    %117 = vmatprep.mubr.bf16.mxu0 0
    %118 = vmatmul.mubr.bf16.gmra.mrb[0].mxu0 %v75
    %v119 = vpop.f32.mrb[0].mxu0
    %v120 = vadd.f32 %v52, %v119
    %v121 = vpop.f32.mrb[0].mxu0
    %v122 = vpop.f32.mrb[0].mxu0
    %v123 = vadd.f32 %v52, %v122
    %v124 = vpop.f32.mrb[0].mxu0
    %125 = vdwg.mxu0
    %v126 = vmax.f32 %v112, 0.0
    %v127 = vmax.f32 %v115, 0.0
    %v128 = vmax.f32 %v120, 0.0
    %v129 = vmax.f32 %v123, 0.0
    %v130 = vpack.c.bf16 %v127, %v126
    %v131 = vpack.c.bf16 %v129, %v128
    %v134 = vunpack.c.l.b16 %v130
    %v135 = vunpack.c.h.b16 %v130
    %v136 = vunpack.c.l.b16 %v131
    %v137 = vunpack.c.h.b16 %v131
    %v138 = vpack.c.b16 %v134, %v134
    %v139 = vpack.c.b16 %v135, %v135
    %v140 = vpack.c.b16 %v136, %v136
    %v141 = vpack.c.b16 %v137, %v137
    %146 = vst [vmem:[%s3] sm:$0xf] %v138
    %147 = vst [vmem:[%s3 + $0x4] sm:$0xf] %v139
    %148 = vst [vmem:[%s3 + $0x8] sm:$0xf] %v140
    %149 = vst [vmem:[%s3 + $0xc] sm:$0xf] %v141
    // Predicated region
    $region22: #{forward.5} parent=1 // pred_check
      _
    $region23: #{forward.5} parent=1 // pred_check_branch
      %151 = sbr.rel (0) target = $region25
    $region24: #{forward.5} parent=1 // pred_region
      _
    $region25: #{forward.5} parent=1 // pred_fallthru
      _
    // Predicated region
    $region26: #{forward.5} parent=1 // pred_check
      _
    $region27: #{forward.5} parent=1 // pred_check_branch
      %153 = sbr.rel (0) target = $region29
    $region28: #{forward.5} parent=1 // pred_region
      _
    $region29: #{forward.5} parent=1 // pred_fallthru
      _
    %154 = vsyncpa [#allocation3], 1
    %155 = vsyncpa [#allocation5], 1

// kernel: forward.6
$region0: #{forward.6}
  #allocation0 [shape = 'u32[]', space=smem, size = 0x4, offset = 0x4, fixed_abs, tag = 'smem constant byte address 0x4 - core index']
  #allocation1 [shape = 'u32[144,128]{1,0:T(1,128)}', space=vmem, size = 0x12000, scoped, tag = 'internal scratch']
  %s0 = inlined_call_operand.vmem [shape: bf16[128,1024], index: 0, kind: input, shape index: {}]
  %s1 = inlined_call_operand.vmem [shape: bf16[1024,128], index: 1, kind: input, shape index: {}]
  %s2 = inlined_call_operand.vmem [shape: f32[1,128], index: 2, kind: input, shape index: {}]
  %s3 = inlined_call_operand.vmem [shape: bf16[128,128], index: 3, kind: output, shape index: {}]
  %s4 = sld [smem:[#allocation0]]
  $region45: #{forward.6} parent=0
    _
  %s6 = ssub.s32 1, %s4
  %s7 = scalar_select 0, %s6, %s4
  loop: start=0, step=1, limit=4
  $region2: #{forward.6} parent=0 // loop_pre_header
    _
  $region3: #{forward.6} parent=0 // loop_header
    %s9 = sphi 0, %s13
    %p10 = scmp.ge.s32.totalorder %s9, 4
    %s19 = sphi 0, %s21
    %s22 = sphi 0, %s19
    %s23 = sphi 0, %s22
    %s39 = sphi 0, %s23
    %s43 = sphi 0, %s43
    %s45 = sphi 0, %s43
    %s46 = sphi 0, %s45
    %s60 = sphi 0, %s46
    %s64 = sphi 0, %s64
    %s66 = sphi 0, %s64
    %s67 = sphi 0, %s66
    %s81 = sphi 0, %s67
    %s87 = sphi 0, %s89
    %s90 = sphi 0, %s87
    %s91 = sphi 0, %s90
    %s107 = sphi 0, %s91
  $region4: #{forward.6} parent=0 // loop_header_branch
    %12 = sbr.rel (%p10) target = $region8
  $region5: #{forward.6} parent=0 // loop_body
    %s14 = ssub.s32 %s9, 1
    %s15 = ssub.s32 %s9, 2
    %s16 = sadd.s32 %s9, 1
    %s17 = ssub.s32 %s9, %s16
    %p18 = scmp.eq.s32.totalorder %s17, 0
    %s20 = sadd.s32 %s19, 1
    %s21 = scalar_select %p18, %s19, %s20
    %p24 = pneg %p18
    %p25 = scmp.eq.s32.totalorder %s9, 1
    %p26 = por %p24, %p25
    %p27 = scmp.ne.s32.totalorder %s19, %s22
    %p28 = scmp.eq.s32.totalorder %s9, 0
    %p29 = por %p27, %p28
    %p30 = scmp.ne.s32.totalorder %s19, %s22
    %p31 = scmp.eq.s32.totalorder %s14, 1
    %p32 = por %p30, %p31
    %p33 = scmp.ne.s32.totalorder %s22, %s23
    %p34 = scmp.eq.s32.totalorder %s14, 0
    %p35 = por %p33, %p34
    %p36 = scmp.ne.s32.totalorder %s22, %s23
    %p37 = scmp.eq.s32.totalorder %s15, 1
    %p38 = por %p36, %p37
    %p40 = scmp.ne.s32.totalorder %s23, %s39
    %p41 = scmp.eq.s32.totalorder %s15, 0
    %p42 = por %p40, %p41
    %s44 = sadd.s32 %s43, 1
    %p47 = scmp.eq.s32.totalorder %s9, 1
    %p48 = scmp.ne.s32.totalorder %s43, %s45
    %p49 = scmp.eq.s32.totalorder %s9, 0
    %p50 = por %p48, %p49
    %p51 = scmp.ne.s32.totalorder %s43, %s45
    %p52 = scmp.eq.s32.totalorder %s14, 1
    %p53 = por %p51, %p52
    %p54 = scmp.ne.s32.totalorder %s45, %s46
    %p55 = scmp.eq.s32.totalorder %s14, 0
    %p56 = por %p54, %p55
    %p57 = scmp.ne.s32.totalorder %s45, %s46
    %p58 = scmp.eq.s32.totalorder %s15, 1
    %p59 = por %p57, %p58
    %p61 = scmp.ne.s32.totalorder %s46, %s60
    %p62 = scmp.eq.s32.totalorder %s15, 0
    %p63 = por %p61, %p62
    %s65 = sadd.s32 %s64, 1
    %p68 = scmp.eq.s32.totalorder %s9, 1
    %p69 = scmp.ne.s32.totalorder %s64, %s66
    %p70 = scmp.eq.s32.totalorder %s9, 0
    %p71 = por %p69, %p70
    %p72 = scmp.ne.s32.totalorder %s64, %s66
    %p73 = scmp.eq.s32.totalorder %s14, 1
    %p74 = por %p72, %p73
    %p75 = scmp.ne.s32.totalorder %s66, %s67
    %p76 = scmp.eq.s32.totalorder %s14, 0
    %p77 = por %p75, %p76
    %p78 = scmp.ne.s32.totalorder %s66, %s67
    %p79 = scmp.eq.s32.totalorder %s15, 1
    %p80 = por %p78, %p79
    %p82 = scmp.ne.s32.totalorder %s67, %s81
    %p83 = scmp.eq.s32.totalorder %s15, 0
    %p84 = por %p82, %p83
    %s85 = ssub.s32 %s9, %s16
    %p86 = scmp.eq.s32.totalorder %s85, 0
    %s88 = sadd.s32 %s87, 1
    %s89 = scalar_select %p86, %s87, %s88
    %p92 = pneg %p86
    %p93 = scmp.eq.s32.totalorder %s9, 1
    %p94 = por %p92, %p93
    %p95 = scmp.ne.s32.totalorder %s87, %s90
    %p96 = scmp.eq.s32.totalorder %s9, 0
    %p97 = por %p95, %p96
    %p98 = scmp.ne.s32.totalorder %s87, %s90
    %p99 = scmp.eq.s32.totalorder %s14, 1
    %p100 = por %p98, %p99
    %p101 = scmp.ne.s32.totalorder %s90, %s91
    %p102 = scmp.eq.s32.totalorder %s14, 0
    %p103 = por %p101, %p102
    %p104 = scmp.ne.s32.totalorder %s90, %s91
    %p105 = scmp.eq.s32.totalorder %s15, 1
    %p106 = por %p104, %p105
    %p108 = scmp.ne.s32.totalorder %s91, %s107
    %p109 = scmp.eq.s32.totalorder %s15, 0
    %p110 = por %p108, %p109
    %p111 = scmp.le.s32.totalorder 1, %s9
    %p112 = scmp.lt.s32.totalorder %s9, 3
    %p113 = pnand %p111, %p112
    %p114 = pneg %p113
    // Predicated region
    $region9: #{forward.6} parent=5 // pred_check
      _
    $region10: #{forward.6} parent=5 // pred_check_branch
      %116 = sbr.rel (%p113) target = $region12
    $region11: #{forward.6} parent=5 // pred_region
      %s117 = ssub.s32 %s9, 1
      // Predicated region
      $region13: #{forward.6} parent=11 // pred_check
        %p118 = pneg %p56
      $region14: #{forward.6} parent=11 // pred_check_branch
        %120 = sbr.rel (%p118) target = $region16
      $region15: #{forward.6} parent=11 // pred_region
        _
      $region16: #{forward.6} parent=11 // pred_fallthru
        _
      // Predicated region
      $region17: #{forward.6} parent=11 // pred_check
        %p121 = pneg %p77
      $region18: #{forward.6} parent=11 // pred_check_branch
        %123 = sbr.rel (%p121) target = $region20
      $region19: #{forward.6} parent=11 // pred_region
        _
      $region20: #{forward.6} parent=11 // pred_fallthru
        _
    $region12: #{forward.6} parent=5 // pred_fallthru
      _
    %p124 = scmp.lt.s32.totalorder %s9, 2
    // Predicated region
    $region21: #{forward.6} parent=5 // pred_check
      %p125 = pneg %p124
    $region22: #{forward.6} parent=5 // pred_check_branch
      %127 = sbr.rel (%p125) target = $region24
    $region23: #{forward.6} parent=5 // pred_region
      // Predicated region
      $region25: #{forward.6} parent=23 // pred_check
        %p128 = pneg %p29
      $region26: #{forward.6} parent=23 // pred_check_branch
        %130 = sbr.rel (%p128) target = $region28
      $region27: #{forward.6} parent=23 // pred_region
        %s131 = smul.u32 8, %s9
        %p132 = scmp.lt.s32.totalorder %s131, 15
        %s133 = scalar_select %p132, %s131, 15
        %s134 = smul.addr %s133, 8
        %s135 = smul.addr %s134, 4
        %s136 = scalar_lea.vmem %s0, %s135
        %s137 = smul.u32 8, %s9
      $region28: #{forward.6} parent=23 // pred_fallthru
        _
    $region24: #{forward.6} parent=5 // pred_fallthru
      _
    %p138 = scmp.le.s32.totalorder 1, %s9
    %p139 = scmp.lt.s32.totalorder %s9, 3
    %p140 = pnand %p138, %p139
    %p141 = pneg %p140
    // Predicated region
    $region29: #{forward.6} parent=5 // pred_check
      _
    $region30: #{forward.6} parent=5 // pred_check_branch
      %143 = sbr.rel (%p140) target = $region32
    $region31: #{forward.6} parent=5 // pred_region
      %s144 = ssub.s32 %s9, 1
      %s145 = smul.u32 8, %s14
      %p146 = scmp.lt.s32.totalorder %s145, 15
      %s147 = scalar_select %p146, %s145, 15
      %s148 = smul.addr %s147, 8
      %s149 = smul.addr %s148, 4
      %s150 = scalar_lea.vmem %s0, %s149
      %p151 = pneg %p35
      %p152 = pneg %p32
      %p153 = pneg %p56
      %p154 = pneg %p53
      %p155 = pneg %p77
      %p156 = pneg %p74
      %p157 = pneg %p103
      %p158 = pneg %p100
      %s159 = smul.u32 8, %s14
      %p160 = scmp.lt.s32.totalorder %s159, 15
      %s161 = scalar_select %p160, %s159, 15
      %s162 = smul.addr %s161, 4
      %s163 = scalar_lea.vmem %s3, %s162
      %s164 = smul.u32 8, %s14
      %p165 = scmp.lt.s32.totalorder %s164, 15
      %s166 = scalar_select %p165, %s164, 15
      %s167 = smul.addr %s166, 8
      %s168 = smul.addr %s167, 4
      %s169 = scalar_lea.vmem %s0, %s168
      %s170 = smul.u32 8, %s14
      %s171 = smul.u32 8, %s14
      %p172 = scmp.lt.s32.totalorder %s171, 15
      %s173 = scalar_select %p172, %s171, 15
      %s174 = smul.addr %s173, 4
      %s175 = scalar_lea.vmem %s3, %s174
      %s176 = smul.u32 8, %s14
      %v178 = vld [vmem:[%s169] sm:$0xff]
      %v179 = vld [vmem:[%s169 + $0x8] sm:$0xff]
      %v180 = vld [vmem:[%s169 + $0x10] sm:$0xff]
      %v181 = vld [vmem:[%s169 + $0x18] sm:$0xff]
      %v182 = vld [vmem:[%s169 + $0x20] sm:$0xff]
      %v183 = vld [vmem:[%s169 + $0x28] sm:$0xff]
      %v184 = vld [vmem:[%s169 + $0x30] sm:$0xff]
      %v185 = vld [vmem:[%s169 + $0x38] sm:$0xff]
      %v186 = vld [vmem:[%s169 + $0x40] sm:$0xff]
      %v187 = vld [vmem:[%s169 + $0x48] sm:$0xff]
      %v188 = vld [vmem:[%s169 + $0x50] sm:$0xff]
      %v189 = vld [vmem:[%s169 + $0x58] sm:$0xff]
      %v190 = vld [vmem:[%s169 + $0x60] sm:$0xff]
      %v191 = vld [vmem:[%s169 + $0x68] sm:$0xff]
      %v192 = vld [vmem:[%s169 + $0x70] sm:$0xff]
      %v193 = vld [vmem:[%s169 + $0x78] sm:$0xff]
      %v194 = vld [vmem:[%s169 + $0x80] sm:$0xff]
      %v195 = vld [vmem:[%s169 + $0x88] sm:$0xff]
      %v196 = vld [vmem:[%s169 + $0x90] sm:$0xff]
      %v197 = vld [vmem:[%s169 + $0x98] sm:$0xff]
      %v198 = vld [vmem:[%s169 + $0xa0] sm:$0xff]
      %v199 = vld [vmem:[%s169 + $0xa8] sm:$0xff]
      %v200 = vld [vmem:[%s169 + $0xb0] sm:$0xff]
      %v201 = vld [vmem:[%s169 + $0xb8] sm:$0xff]
      %v202 = vld [vmem:[%s169 + $0xc0] sm:$0xff]
      %v203 = vld [vmem:[%s169 + $0xc8] sm:$0xff]
      %v204 = vld [vmem:[%s169 + $0xd0] sm:$0xff]
      %v205 = vld [vmem:[%s169 + $0xd8] sm:$0xff]
      %v206 = vld [vmem:[%s169 + $0xe0] sm:$0xff]
      %v207 = vld [vmem:[%s169 + $0xe8] sm:$0xff]
      %v208 = vld [vmem:[%s169 + $0xf0] sm:$0xff]
      %v209 = vld [vmem:[%s169 + $0xf8] sm:$0xff]
      %v210 = vld [vmem:[%s1] sm:$0xf]
      %v211 = vld [vmem:[%s1 + $0x4] sm:$0xf]
      %v212 = vld [vmem:[%s1 + $0x8] sm:$0xf]
      %v213 = vld [vmem:[%s1 + $0xc] sm:$0xf]
      %v214 = vld [vmem:[%s1 + $0x10] sm:$0xf]
      %v215 = vld [vmem:[%s1 + $0x14] sm:$0xf]
      %v216 = vld [vmem:[%s1 + $0x18] sm:$0xf]
      %v217 = vld [vmem:[%s1 + $0x1c] sm:$0xf]
      %v218 = vld [vmem:[%s1 + $0x20] sm:$0xf]
      %v219 = vld [vmem:[%s1 + $0x24] sm:$0xf]
      %v220 = vld [vmem:[%s1 + $0x28] sm:$0xf]
      %v221 = vld [vmem:[%s1 + $0x2c] sm:$0xf]
      %v222 = vld [vmem:[%s1 + $0x30] sm:$0xf]
      %v223 = vld [vmem:[%s1 + $0x34] sm:$0xf]
      %v224 = vld [vmem:[%s1 + $0x38] sm:$0xf]
      %v225 = vld [vmem:[%s1 + $0x3c] sm:$0xf]
      %v226 = vld [vmem:[%s1 + $0x40] sm:$0xf]
      %v227 = vld [vmem:[%s1 + $0x44] sm:$0xf]
      %v228 = vld [vmem:[%s1 + $0x48] sm:$0xf]
      %v229 = vld [vmem:[%s1 + $0x4c] sm:$0xf]
      %v230 = vld [vmem:[%s1 + $0x50] sm:$0xf]
      %v231 = vld [vmem:[%s1 + $0x54] sm:$0xf]
      %v232 = vld [vmem:[%s1 + $0x58] sm:$0xf]
      %v233 = vld [vmem:[%s1 + $0x5c] sm:$0xf]
      %v234 = vld [vmem:[%s1 + $0x60] sm:$0xf]
      %v235 = vld [vmem:[%s1 + $0x64] sm:$0xf]
      %v236 = vld [vmem:[%s1 + $0x68] sm:$0xf]
      %v237 = vld [vmem:[%s1 + $0x6c] sm:$0xf]
      %v238 = vld [vmem:[%s1 + $0x70] sm:$0xf]
      %v239 = vld [vmem:[%s1 + $0x74] sm:$0xf]
      %v240 = vld [vmem:[%s1 + $0x78] sm:$0xf]
      %v241 = vld [vmem:[%s1 + $0x7c] sm:$0xf]
      %v242 = vld [vmem:[%s1 + $0x80] sm:$0xf]
      %v243 = vld [vmem:[%s1 + $0x84] sm:$0xf]
      %v244 = vld [vmem:[%s1 + $0x88] sm:$0xf]
      %v245 = vld [vmem:[%s1 + $0x8c] sm:$0xf]
      %v246 = vld [vmem:[%s1 + $0x90] sm:$0xf]
      %v247 = vld [vmem:[%s1 + $0x94] sm:$0xf]
      %v248 = vld [vmem:[%s1 + $0x98] sm:$0xf]
      %v249 = vld [vmem:[%s1 + $0x9c] sm:$0xf]
      %v250 = vld [vmem:[%s1 + $0xa0] sm:$0xf]
      %v251 = vld [vmem:[%s1 + $0xa4] sm:$0xf]
      %v252 = vld [vmem:[%s1 + $0xa8] sm:$0xf]
      %v253 = vld [vmem:[%s1 + $0xac] sm:$0xf]
      %v254 = vld [vmem:[%s1 + $0xb0] sm:$0xf]
      %v255 = vld [vmem:[%s1 + $0xb4] sm:$0xf]
      %v256 = vld [vmem:[%s1 + $0xb8] sm:$0xf]
      %v257 = vld [vmem:[%s1 + $0xbc] sm:$0xf]
      %v258 = vld [vmem:[%s1 + $0xc0] sm:$0xf]
      %v259 = vld [vmem:[%s1 + $0xc4] sm:$0xf]
      %v260 = vld [vmem:[%s1 + $0xc8] sm:$0xf]
      %v261 = vld [vmem:[%s1 + $0xcc] sm:$0xf]
      %v262 = vld [vmem:[%s1 + $0xd0] sm:$0xf]
      %v263 = vld [vmem:[%s1 + $0xd4] sm:$0xf]
      %v264 = vld [vmem:[%s1 + $0xd8] sm:$0xf]
      %v265 = vld [vmem:[%s1 + $0xdc] sm:$0xf]
      %v266 = vld [vmem:[%s1 + $0xe0] sm:$0xf]
      %v267 = vld [vmem:[%s1 + $0xe4] sm:$0xf]
      %v268 = vld [vmem:[%s1 + $0xe8] sm:$0xf]
      %v269 = vld [vmem:[%s1 + $0xec] sm:$0xf]
      %v270 = vld [vmem:[%s1 + $0xf0] sm:$0xf]
      %v271 = vld [vmem:[%s1 + $0xf4] sm:$0xf]
      %v272 = vld [vmem:[%s1 + $0xf8] sm:$0xf]
      %v273 = vld [vmem:[%s1 + $0xfc] sm:$0xf]
      %v274 = vld [vmem:[%s1 + $0x100] sm:$0xf]
      %v275 = vld [vmem:[%s1 + $0x104] sm:$0xf]
      %v276 = vld [vmem:[%s1 + $0x108] sm:$0xf]
      %v277 = vld [vmem:[%s1 + $0x10c] sm:$0xf]
      %v278 = vld [vmem:[%s1 + $0x110] sm:$0xf]
      %v279 = vld [vmem:[%s1 + $0x114] sm:$0xf]
      %v280 = vld [vmem:[%s1 + $0x118] sm:$0xf]
      %v281 = vld [vmem:[%s1 + $0x11c] sm:$0xf]
      %v282 = vld [vmem:[%s1 + $0x120] sm:$0xf]
      %v283 = vld [vmem:[%s1 + $0x124] sm:$0xf]
      %v284 = vld [vmem:[%s1 + $0x128] sm:$0xf]
      %v285 = vld [vmem:[%s1 + $0x12c] sm:$0xf]
      %v286 = vld [vmem:[%s1 + $0x130] sm:$0xf]
      %v287 = vld [vmem:[%s1 + $0x134] sm:$0xf]
      %v288 = vld [vmem:[%s1 + $0x138] sm:$0xf]
      %v289 = vld [vmem:[%s1 + $0x13c] sm:$0xf]
      %v290 = vld [vmem:[%s1 + $0x140] sm:$0xf]
      %v291 = vld [vmem:[%s1 + $0x144] sm:$0xf]
      %v292 = vld [vmem:[%s1 + $0x148] sm:$0xf]
      %v293 = vld [vmem:[%s1 + $0x14c] sm:$0xf]
      %v294 = vld [vmem:[%s1 + $0x150] sm:$0xf]
      %v295 = vld [vmem:[%s1 + $0x154] sm:$0xf]
      %v296 = vld [vmem:[%s1 + $0x158] sm:$0xf]
      %v297 = vld [vmem:[%s1 + $0x15c] sm:$0xf]
      %v298 = vld [vmem:[%s1 + $0x160] sm:$0xf]
      %v299 = vld [vmem:[%s1 + $0x164] sm:$0xf]
      %v300 = vld [vmem:[%s1 + $0x168] sm:$0xf]
      %v301 = vld [vmem:[%s1 + $0x16c] sm:$0xf]
      %v302 = vld [vmem:[%s1 + $0x170] sm:$0xf]
      %v303 = vld [vmem:[%s1 + $0x174] sm:$0xf]
      %v304 = vld [vmem:[%s1 + $0x178] sm:$0xf]
      %v305 = vld [vmem:[%s1 + $0x17c] sm:$0xf]
      %v306 = vld [vmem:[%s1 + $0x180] sm:$0xf]
      %v307 = vld [vmem:[%s1 + $0x184] sm:$0xf]
      %v308 = vld [vmem:[%s1 + $0x188] sm:$0xf]
      %v309 = vld [vmem:[%s1 + $0x18c] sm:$0xf]
      %v310 = vld [vmem:[%s1 + $0x190] sm:$0xf]
      %v311 = vld [vmem:[%s1 + $0x194] sm:$0xf]
      %v312 = vld [vmem:[%s1 + $0x198] sm:$0xf]
      %v313 = vld [vmem:[%s1 + $0x19c] sm:$0xf]
      %v314 = vld [vmem:[%s1 + $0x1a0] sm:$0xf]
      %v315 = vld [vmem:[%s1 + $0x1a4] sm:$0xf]
      %v316 = vld [vmem:[%s1 + $0x1a8] sm:$0xf]
      %v317 = vld [vmem:[%s1 + $0x1ac] sm:$0xf]
      %v318 = vld [vmem:[%s1 + $0x1b0] sm:$0xf]
      %v319 = vld [vmem:[%s1 + $0x1b4] sm:$0xf]
      %v320 = vld [vmem:[%s1 + $0x1b8] sm:$0xf]
      %v321 = vld [vmem:[%s1 + $0x1bc] sm:$0xf]
      %v322 = vld [vmem:[%s1 + $0x1c0] sm:$0xf]
      %v323 = vld [vmem:[%s1 + $0x1c4] sm:$0xf]
      %v324 = vld [vmem:[%s1 + $0x1c8] sm:$0xf]
      %v325 = vld [vmem:[%s1 + $0x1cc] sm:$0xf]
      %v326 = vld [vmem:[%s1 + $0x1d0] sm:$0xf]
      %v327 = vld [vmem:[%s1 + $0x1d4] sm:$0xf]
      %v328 = vld [vmem:[%s1 + $0x1d8] sm:$0xf]
      %v329 = vld [vmem:[%s1 + $0x1dc] sm:$0xf]
      %v330 = vld [vmem:[%s1 + $0x1e0] sm:$0xf]
      %v331 = vld [vmem:[%s1 + $0x1e4] sm:$0xf]
      %v332 = vld [vmem:[%s1 + $0x1e8] sm:$0xf]
      %v333 = vld [vmem:[%s1 + $0x1ec] sm:$0xf]
      %v334 = vld [vmem:[%s1 + $0x1f0] sm:$0xf]
      %v335 = vld [vmem:[%s1 + $0x1f4] sm:$0xf]
      %v336 = vld [vmem:[%s1 + $0x1f8] sm:$0xf]
      %v337 = vld [vmem:[%s1 + $0x1fc] sm:$0xf]
      %v338 = vld [vmem:[%s2] sm:$0x1]
      %v340 = vlaneseq
      %v341 = vshrl.u32 %v340, 7
      %v342 = vsub.s32 0, %v341
      %v343 = vrot.slane %v338, %v342
      %v377 = vunpack.c.l.b16 %v178
      %v378 = vunpack.c.h.b16 %v178
      %v379 = vunpack.c.l.b16 %v179
      %v380 = vunpack.c.h.b16 %v179
      %v381 = vunpack.c.l.b16 %v180
      %v382 = vunpack.c.h.b16 %v180
      %v383 = vunpack.c.l.b16 %v181
      %v384 = vunpack.c.h.b16 %v181
      %v385 = vunpack.c.l.b16 %v182
      %v386 = vunpack.c.h.b16 %v182
      %v387 = vunpack.c.l.b16 %v183
      %v388 = vunpack.c.h.b16 %v183
      %v389 = vunpack.c.l.b16 %v184
      %v390 = vunpack.c.h.b16 %v184
      %v391 = vunpack.c.l.b16 %v185
      %v392 = vunpack.c.h.b16 %v185
      %v393 = vunpack.c.l.b16 %v186
      %v394 = vunpack.c.h.b16 %v186
      %v395 = vunpack.c.l.b16 %v187
      %v396 = vunpack.c.h.b16 %v187
      %v397 = vunpack.c.l.b16 %v188
      %v398 = vunpack.c.h.b16 %v188
      %v399 = vunpack.c.l.b16 %v189
      %v400 = vunpack.c.h.b16 %v189
      %v401 = vunpack.c.l.b16 %v190
      %v402 = vunpack.c.h.b16 %v190
      %v403 = vunpack.c.l.b16 %v191
      %v404 = vunpack.c.h.b16 %v191
      %v405 = vunpack.c.l.b16 %v192
      %v406 = vunpack.c.h.b16 %v192
      %v407 = vunpack.c.l.b16 %v193
      %v408 = vunpack.c.h.b16 %v193
      %v409 = vunpack.c.l.b16 %v194
      %v410 = vunpack.c.h.b16 %v194
      %v411 = vunpack.c.l.b16 %v195
      %v412 = vunpack.c.h.b16 %v195
      %v413 = vunpack.c.l.b16 %v196
      %v414 = vunpack.c.h.b16 %v196
      %v415 = vunpack.c.l.b16 %v197
      %v416 = vunpack.c.h.b16 %v197
      %v417 = vunpack.c.l.b16 %v198
      %v418 = vunpack.c.h.b16 %v198
      %v419 = vunpack.c.l.b16 %v199
      %v420 = vunpack.c.h.b16 %v199
      %v421 = vunpack.c.l.b16 %v200
      %v422 = vunpack.c.h.b16 %v200
      %v423 = vunpack.c.l.b16 %v201
      %v424 = vunpack.c.h.b16 %v201
      %v425 = vunpack.c.l.b16 %v202
      %v426 = vunpack.c.h.b16 %v202
      %v427 = vunpack.c.l.b16 %v203
      %v428 = vunpack.c.h.b16 %v203
      %v429 = vunpack.c.l.b16 %v204
      %v430 = vunpack.c.h.b16 %v204
      %v431 = vunpack.c.l.b16 %v205
      %v432 = vunpack.c.h.b16 %v205
      %v433 = vunpack.c.l.b16 %v206
      %v434 = vunpack.c.h.b16 %v206
      %v435 = vunpack.c.l.b16 %v207
      %v436 = vunpack.c.h.b16 %v207
      %v437 = vunpack.c.l.b16 %v208
      %v438 = vunpack.c.h.b16 %v208
      %v439 = vunpack.c.l.b16 %v209
      %v440 = vunpack.c.h.b16 %v209
      %v441 = vpack.c.b16 %v385, %v377
      %v442 = vpack.c.b16 %v386, %v378
      %v443 = vpack.c.b16 %v387, %v379
      %v444 = vpack.c.b16 %v388, %v380
      %v445 = vpack.c.b16 %v389, %v381
      %v446 = vpack.c.b16 %v390, %v382
      %v447 = vpack.c.b16 %v391, %v383
      %v448 = vpack.c.b16 %v392, %v384
      %v449 = vpack.c.b16 %v401, %v393
      %v450 = vpack.c.b16 %v402, %v394
      %v451 = vpack.c.b16 %v403, %v395
      %v452 = vpack.c.b16 %v404, %v396
      %v453 = vpack.c.b16 %v405, %v397
      %v454 = vpack.c.b16 %v406, %v398
      %v455 = vpack.c.b16 %v407, %v399
      %v456 = vpack.c.b16 %v408, %v400
      %v457 = vpack.c.b16 %v417, %v409
      %v458 = vpack.c.b16 %v418, %v410
      %v459 = vpack.c.b16 %v419, %v411
      %v460 = vpack.c.b16 %v420, %v412
      %v461 = vpack.c.b16 %v421, %v413
      %v462 = vpack.c.b16 %v422, %v414
      %v463 = vpack.c.b16 %v423, %v415
      %v464 = vpack.c.b16 %v424, %v416
      %v465 = vpack.c.b16 %v433, %v425
      %v466 = vpack.c.b16 %v434, %v426
      %v467 = vpack.c.b16 %v435, %v427
      %v468 = vpack.c.b16 %v436, %v428
      %v469 = vpack.c.b16 %v437, %v429
      %v470 = vpack.c.b16 %v438, %v430
      %v471 = vpack.c.b16 %v439, %v431
      %v472 = vpack.c.b16 %v440, %v432
      %v633 = vunpack.c.l.b16 %v210
      %v634 = vunpack.c.l.b16 %v211
      %v635 = vunpack.c.l.b16 %v212
      %v636 = vunpack.c.l.b16 %v213
      %v637 = vunpack.c.l.b16 %v214
      %v638 = vunpack.c.l.b16 %v215
      %v639 = vunpack.c.l.b16 %v216
      %v640 = vunpack.c.l.b16 %v217
      %v641 = vunpack.c.l.b16 %v218
      %v642 = vunpack.c.l.b16 %v219
      %v643 = vunpack.c.l.b16 %v220
      %v644 = vunpack.c.l.b16 %v221
      %v645 = vunpack.c.l.b16 %v222
      %v646 = vunpack.c.l.b16 %v223
      %v647 = vunpack.c.l.b16 %v224
      %v648 = vunpack.c.l.b16 %v225
      %v649 = vunpack.c.l.b16 %v226
      %v650 = vunpack.c.l.b16 %v227
      %v651 = vunpack.c.l.b16 %v228
      %v652 = vunpack.c.l.b16 %v229
      %v653 = vunpack.c.l.b16 %v230
      %v654 = vunpack.c.l.b16 %v231
      %v655 = vunpack.c.l.b16 %v232
      %v656 = vunpack.c.l.b16 %v233
      %v657 = vunpack.c.l.b16 %v234
      %v658 = vunpack.c.l.b16 %v235
      %v659 = vunpack.c.l.b16 %v236
      %v660 = vunpack.c.l.b16 %v237
      %v661 = vunpack.c.l.b16 %v238
      %v662 = vunpack.c.l.b16 %v239
      %v663 = vunpack.c.l.b16 %v240
      %v664 = vunpack.c.l.b16 %v241
      %v665 = vunpack.c.l.b16 %v242
      %v666 = vunpack.c.l.b16 %v243
      %v667 = vunpack.c.l.b16 %v244
      %v668 = vunpack.c.l.b16 %v245
      %v669 = vunpack.c.l.b16 %v246
      %v670 = vunpack.c.l.b16 %v247
      %v671 = vunpack.c.l.b16 %v248
      %v672 = vunpack.c.l.b16 %v249
      %v673 = vunpack.c.l.b16 %v250
      %v674 = vunpack.c.l.b16 %v251
      %v675 = vunpack.c.l.b16 %v252
      %v676 = vunpack.c.l.b16 %v253
      %v677 = vunpack.c.l.b16 %v254
      %v678 = vunpack.c.l.b16 %v255
      %v679 = vunpack.c.l.b16 %v256
      %v680 = vunpack.c.l.b16 %v257
      %v681 = vunpack.c.l.b16 %v258
      %v682 = vunpack.c.l.b16 %v259
      %v683 = vunpack.c.l.b16 %v260
      %v684 = vunpack.c.l.b16 %v261
      %v685 = vunpack.c.l.b16 %v262
      %v686 = vunpack.c.l.b16 %v263
      %v687 = vunpack.c.l.b16 %v264
      %v688 = vunpack.c.l.b16 %v265
      %v689 = vunpack.c.l.b16 %v266
      %v690 = vunpack.c.l.b16 %v267
      %v691 = vunpack.c.l.b16 %v268
      %v692 = vunpack.c.l.b16 %v269
      %v693 = vunpack.c.l.b16 %v270
      %v694 = vunpack.c.l.b16 %v271
      %v695 = vunpack.c.l.b16 %v272
      %v696 = vunpack.c.l.b16 %v273
      %v697 = vunpack.c.l.b16 %v274
      %v698 = vunpack.c.l.b16 %v275
      %v699 = vunpack.c.l.b16 %v276
      %v700 = vunpack.c.l.b16 %v277
      %v701 = vunpack.c.l.b16 %v278
      %v702 = vunpack.c.l.b16 %v279
      %v703 = vunpack.c.l.b16 %v280
      %v704 = vunpack.c.l.b16 %v281
      %v705 = vunpack.c.l.b16 %v282
      %v706 = vunpack.c.l.b16 %v283
      %v707 = vunpack.c.l.b16 %v284
      %v708 = vunpack.c.l.b16 %v285
      %v709 = vunpack.c.l.b16 %v286
      %v710 = vunpack.c.l.b16 %v287
      %v711 = vunpack.c.l.b16 %v288
      %v712 = vunpack.c.l.b16 %v289
      %v713 = vunpack.c.l.b16 %v290
      %v714 = vunpack.c.l.b16 %v291
      %v715 = vunpack.c.l.b16 %v292
      %v716 = vunpack.c.l.b16 %v293
      %v717 = vunpack.c.l.b16 %v294
      %v718 = vunpack.c.l.b16 %v295
      %v719 = vunpack.c.l.b16 %v296
      %v720 = vunpack.c.l.b16 %v297
      %v721 = vunpack.c.l.b16 %v298
      %v722 = vunpack.c.l.b16 %v299
      %v723 = vunpack.c.l.b16 %v300
      %v724 = vunpack.c.l.b16 %v301
      %v725 = vunpack.c.l.b16 %v302
      %v726 = vunpack.c.l.b16 %v303
      %v727 = vunpack.c.l.b16 %v304
      %v728 = vunpack.c.l.b16 %v305
      %v729 = vunpack.c.l.b16 %v306
      %v730 = vunpack.c.l.b16 %v307
      %v731 = vunpack.c.l.b16 %v308
      %v732 = vunpack.c.l.b16 %v309
      %v733 = vunpack.c.l.b16 %v310
      %v734 = vunpack.c.l.b16 %v311
      %v735 = vunpack.c.l.b16 %v312
      %v736 = vunpack.c.l.b16 %v313
      %v737 = vunpack.c.l.b16 %v314
      %v738 = vunpack.c.l.b16 %v315
      %v739 = vunpack.c.l.b16 %v316
      %v740 = vunpack.c.l.b16 %v317
      %v741 = vunpack.c.l.b16 %v318
      %v742 = vunpack.c.l.b16 %v319
      %v743 = vunpack.c.l.b16 %v320
      %v744 = vunpack.c.l.b16 %v321
      %v745 = vunpack.c.l.b16 %v322
      %v746 = vunpack.c.l.b16 %v323
      %v747 = vunpack.c.l.b16 %v324
      %v748 = vunpack.c.l.b16 %v325
      %v749 = vunpack.c.l.b16 %v326
      %v750 = vunpack.c.l.b16 %v327
      %v751 = vunpack.c.l.b16 %v328
      %v752 = vunpack.c.l.b16 %v329
      %v753 = vunpack.c.l.b16 %v330
      %v754 = vunpack.c.l.b16 %v331
      %v755 = vunpack.c.l.b16 %v332
      %v756 = vunpack.c.l.b16 %v333
      %v757 = vunpack.c.l.b16 %v334
      %v758 = vunpack.c.l.b16 %v335
      %v759 = vunpack.c.l.b16 %v336
      %v760 = vunpack.c.l.b16 %v337
      %v761 = vpack.c.b16 %v634, %v633
      %v762 = vpack.c.b16 %v636, %v635
      %v763 = vpack.c.b16 %v638, %v637
      %v764 = vpack.c.b16 %v640, %v639
      %v765 = vpack.c.b16 %v642, %v641
      %v766 = vpack.c.b16 %v644, %v643
      %v767 = vpack.c.b16 %v646, %v645
      %v768 = vpack.c.b16 %v648, %v647
      %v769 = vpack.c.b16 %v650, %v649
      %v770 = vpack.c.b16 %v652, %v651
      %v771 = vpack.c.b16 %v654, %v653
      %v772 = vpack.c.b16 %v656, %v655
      %v773 = vpack.c.b16 %v658, %v657
      %v774 = vpack.c.b16 %v660, %v659
      %v775 = vpack.c.b16 %v662, %v661
      %v776 = vpack.c.b16 %v664, %v663
      %v777 = vpack.c.b16 %v666, %v665
      %v778 = vpack.c.b16 %v668, %v667
      %v779 = vpack.c.b16 %v670, %v669
      %v780 = vpack.c.b16 %v672, %v671
      %v781 = vpack.c.b16 %v674, %v673
      %v782 = vpack.c.b16 %v676, %v675
      %v783 = vpack.c.b16 %v678, %v677
      %v784 = vpack.c.b16 %v680, %v679
      %v785 = vpack.c.b16 %v682, %v681
      %v786 = vpack.c.b16 %v684, %v683
      %v787 = vpack.c.b16 %v686, %v685
      %v788 = vpack.c.b16 %v688, %v687
      %v789 = vpack.c.b16 %v690, %v689
      %v790 = vpack.c.b16 %v692, %v691
      %v791 = vpack.c.b16 %v694, %v693
      %v792 = vpack.c.b16 %v696, %v695
      %v793 = vpack.c.b16 %v698, %v697
      %v794 = vpack.c.b16 %v700, %v699
      %v795 = vpack.c.b16 %v702, %v701
      %v796 = vpack.c.b16 %v704, %v703
      %v797 = vpack.c.b16 %v706, %v705
      %v798 = vpack.c.b16 %v708, %v707
      %v799 = vpack.c.b16 %v710, %v709
      %v800 = vpack.c.b16 %v712, %v711
      %v801 = vpack.c.b16 %v714, %v713
      %v802 = vpack.c.b16 %v716, %v715
      %v803 = vpack.c.b16 %v718, %v717
      %v804 = vpack.c.b16 %v720, %v719
      %v805 = vpack.c.b16 %v722, %v721
      %v806 = vpack.c.b16 %v724, %v723
      %v807 = vpack.c.b16 %v726, %v725
      %v808 = vpack.c.b16 %v728, %v727
      %v809 = vpack.c.b16 %v730, %v729
      %v810 = vpack.c.b16 %v732, %v731
      %v811 = vpack.c.b16 %v734, %v733
      %v812 = vpack.c.b16 %v736, %v735
      %v813 = vpack.c.b16 %v738, %v737
      %v814 = vpack.c.b16 %v740, %v739
      %v815 = vpack.c.b16 %v742, %v741
      %v816 = vpack.c.b16 %v744, %v743
      %v817 = vpack.c.b16 %v746, %v745
      %v818 = vpack.c.b16 %v748, %v747
      %v819 = vpack.c.b16 %v750, %v749
      %v820 = vpack.c.b16 %v752, %v751
      %v821 = vpack.c.b16 %v754, %v753
      %v822 = vpack.c.b16 %v756, %v755
      %v823 = vpack.c.b16 %v758, %v757
      %v824 = vpack.c.b16 %v760, %v759
      %889 = vmatprep.subr.bf16.mxu0 0
      %890 = vmatpush1.bf16.msra.mxu0 %v761
      %891 = vmatprep.subr.bf16.mxu0 0
      %892 = vmatpush1.bf16.msra.mxu0 %v762
      %893 = vmatprep.subr.bf16.mxu0 0
      %894 = vmatpush1.bf16.msra.mxu0 %v763
      %895 = vmatprep.subr.bf16.mxu0 0
      %896 = vmatpush1.bf16.msra.mxu0 %v764
      %897 = vmatprep.subr.bf16.mxu0 0
      %898 = vmatpush1.bf16.msra.mxu0 %v765
      %899 = vmatprep.subr.bf16.mxu0 0
      %900 = vmatpush1.bf16.msra.mxu0 %v766
      %901 = vmatprep.subr.bf16.mxu0 0
      %902 = vmatpush1.bf16.msra.mxu0 %v767
      %903 = vmatprep.subr.bf16.mxu0 0
      %904 = vmatpush1.bf16.msra.mxu0 %v768
      %905 = vmatprep.subr.bf16.mxu0 0
      %906 = vmatpush1.bf16.msra.mxu0 %v769
      %907 = vmatprep.subr.bf16.mxu0 0
      %908 = vmatpush1.bf16.msra.mxu0 %v770
      %909 = vmatprep.subr.bf16.mxu0 0
      %910 = vmatpush1.bf16.msra.mxu0 %v771
      %911 = vmatprep.subr.bf16.mxu0 0
      %912 = vmatpush1.bf16.msra.mxu0 %v772
      %913 = vmatprep.subr.bf16.mxu0 0
      %914 = vmatpush1.bf16.msra.mxu0 %v773
      %915 = vmatprep.subr.bf16.mxu0 0
      %916 = vmatpush1.bf16.msra.mxu0 %v774
      %917 = vmatprep.subr.bf16.mxu0 0
      %918 = vmatpush1.bf16.msra.mxu0 %v775
      %919 = vmatprep.subr.bf16.mxu0 0
      %920 = vmatpush1.bf16.msra.mxu0 %v776
      %921 = vmatprep.mubr.bf16.mxu0 %v442
      %922 = vmatmul.mubr.bf16.gmra.mrb[0].mxu0 %v441
      %v923 = vpop.f32.mrb[0].mxu0
      %v924 = vadd.f32 %v343, %v923
      %v925 = vpop.f32.mrb[0].mxu0
      %v926 = vpop.f32.mrb[0].mxu0
      %v927 = vadd.f32 %v343, %v926
      %v928 = vpop.f32.mrb[0].mxu0
      %929 = vmatprep.mubr.bf16.mxu0 %v450
      %930 = vmatmul.mubr.bf16.gmra.mrb[0].mxu0 %v449
      %v931 = vpop.f32.mrb[0].mxu0
      %v932 = vadd.f32 %v343, %v931
      %v933 = vpop.f32.mrb[0].mxu0
      %v934 = vpop.f32.mrb[0].mxu0
      %v935 = vadd.f32 %v343, %v934
      %v936 = vpop.f32.mrb[0].mxu0
      %937 = vmatprep.mubr.bf16.mxu0 %v458
      %938 = vmatmul.mubr.bf16.gmra.mrb[0].mxu0 %v457
      %v939 = vpop.f32.mrb[0].mxu0
      %v940 = vadd.f32 %v343, %v939
      %v941 = vpop.f32.mrb[0].mxu0
      %v942 = vpop.f32.mrb[0].mxu0
      %v943 = vadd.f32 %v343, %v942
      %v944 = vpop.f32.mrb[0].mxu0
      %945 = vmatprep.mubr.bf16.mxu0 %v466
      %946 = vmatmul.mubr.bf16.gmra.mrb[0].mxu0 %v465
      %v947 = vpop.f32.mrb[0].mxu0
      %v948 = vadd.f32 %v343, %v947
      %v949 = vpop.f32.mrb[0].mxu0
      %v950 = vpop.f32.mrb[0].mxu0
      %v951 = vadd.f32 %v343, %v950
      %v952 = vpop.f32.mrb[0].mxu0
      %953 = vdwg.mxu0
      %954 = vmatprep.subr.bf16.mxu0 0
      %955 = vmatpush1.bf16.msra.mxu0 %v777
      %956 = vmatprep.subr.bf16.mxu0 0
      %957 = vmatpush1.bf16.msra.mxu0 %v778
      %958 = vmatprep.subr.bf16.mxu0 0
      %959 = vmatpush1.bf16.msra.mxu0 %v779
      %960 = vmatprep.subr.bf16.mxu0 0
      %961 = vmatpush1.bf16.msra.mxu0 %v780
      %962 = vmatprep.subr.bf16.mxu0 0
      %963 = vmatpush1.bf16.msra.mxu0 %v781
      %964 = vmatprep.subr.bf16.mxu0 0
      %965 = vmatpush1.bf16.msra.mxu0 %v782
      %966 = vmatprep.subr.bf16.mxu0 0
      %967 = vmatpush1.bf16.msra.mxu0 %v783
      %968 = vmatprep.subr.bf16.mxu0 0
      %969 = vmatpush1.bf16.msra.mxu0 %v784
      %970 = vmatprep.subr.bf16.mxu0 0
      %971 = vmatpush1.bf16.msra.mxu0 %v785
      %972 = vmatprep.subr.bf16.mxu0 0
      %973 = vmatpush1.bf16.msra.mxu0 %v786
      %974 = vmatprep.subr.bf16.mxu0 0
      %975 = vmatpush1.bf16.msra.mxu0 %v787
      %976 = vmatprep.subr.bf16.mxu0 0
      %977 = vmatpush1.bf16.msra.mxu0 %v788
      %978 = vmatprep.subr.bf16.mxu0 0
      %979 = vmatpush1.bf16.msra.mxu0 %v789
      %980 = vmatprep.subr.bf16.mxu0 0
      %981 = vmatpush1.bf16.msra.mxu0 %v790
      %982 = vmatprep.subr.bf16.mxu0 0
      %983 = vmatpush1.bf16.msra.mxu0 %v791
      %984 = vmatprep.subr.bf16.mxu0 0
      %985 = vmatpush1.bf16.msra.mxu0 %v792
      %986 = vmatprep.mubr.bf16.mxu0 %v444
      %987 = vmatmul.mubr.bf16.gmra.mrb[0].mxu0 %v443
      %v988 = vpop.f32.mrb[0].mxu0
      %v989 = vadd.f32 %v924, %v988
      %v990 = vpop.f32.mrb[0].mxu0
      %v991 = vpop.f32.mrb[0].mxu0
      %v992 = vadd.f32 %v927, %v991
      %v993 = vpop.f32.mrb[0].mxu0
      %994 = vmatprep.mubr.bf16.mxu0 %v452
      %995 = vmatmul.mubr.bf16.gmra.mrb[0].mxu0 %v451
      %v996 = vpop.f32.mrb[0].mxu0
      %v997 = vadd.f32 %v932, %v996
      %v998 = vpop.f32.mrb[0].mxu0
      %v999 = vpop.f32.mrb[0].mxu0
      %v1000 = vadd.f32 %v935, %v999
      %v1001 = vpop.f32.mrb[0].mxu0
      %1002 = vmatprep.mubr.bf16.mxu0 %v460
      %1003 = vmatmul.mubr.bf16.gmra.mrb[0].mxu0 %v459
      %v1004 = vpop.f32.mrb[0].mxu0
      %v1005 = vadd.f32 %v940, %v1004
      %v1006 = vpop.f32.mrb[0].mxu0
      %v1007 = vpop.f32.mrb[0].mxu0
      %v1008 = vadd.f32 %v943, %v1007
      %v1009 = vpop.f32.mrb[0].mxu0
      %1010 = vmatprep.mubr.bf16.mxu0 %v468
      %1011 = vmatmul.mubr.bf16.gmra.mrb[0].mxu0 %v467
      %v1012 = vpop.f32.mrb[0].mxu0
      %v1013 = vadd.f32 %v948, %v1012
      %v1014 = vpop.f32.mrb[0].mxu0
      %v1015 = vpop.f32.mrb[0].mxu0
      %v1016 = vadd.f32 %v951, %v1015
      %v1017 = vpop.f32.mrb[0].mxu0
      %1018 = vdwg.mxu0
      %1019 = vmatprep.subr.bf16.mxu0 0
      %1020 = vmatpush1.bf16.msra.mxu0 %v793
      %1021 = vmatprep.subr.bf16.mxu0 0
      %1022 = vmatpush1.bf16.msra.mxu0 %v794
      %1023 = vmatprep.subr.bf16.mxu0 0
      %1024 = vmatpush1.bf16.msra.mxu0 %v795
      %1025 = vmatprep.subr.bf16.mxu0 0
      %1026 = vmatpush1.bf16.msra.mxu0 %v796
      %1027 = vmatprep.subr.bf16.mxu0 0
      %1028 = vmatpush1.bf16.msra.mxu0 %v797
      %1029 = vmatprep.subr.bf16.mxu0 0
      %1030 = vmatpush1.bf16.msra.mxu0 %v798
      %1031 = vmatprep.subr.bf16.mxu0 0
      %1032 = vmatpush1.bf16.msra.mxu0 %v799
      %1033 = vmatprep.subr.bf16.mxu0 0
      %1034 = vmatpush1.bf16.msra.mxu0 %v800
      %1035 = vmatprep.subr.bf16.mxu0 0
      %1036 = vmatpush1.bf16.msra.mxu0 %v801
      %1037 = vmatprep.subr.bf16.mxu0 0
      %1038 = vmatpush1.bf16.msra.mxu0 %v802
      %1039 = vmatprep.subr.bf16.mxu0 0
      %1040 = vmatpush1.bf16.msra.mxu0 %v803
      %1041 = vmatprep.subr.bf16.mxu0 0
      %1042 = vmatpush1.bf16.msra.mxu0 %v804
      %1043 = vmatprep.subr.bf16.mxu0 0
      %1044 = vmatpush1.bf16.msra.mxu0 %v805
      %1045 = vmatprep.subr.bf16.mxu0 0
      %1046 = vmatpush1.bf16.msra.mxu0 %v806
      %1047 = vmatprep.subr.bf16.mxu0 0
      %1048 = vmatpush1.bf16.msra.mxu0 %v807
      %1049 = vmatprep.subr.bf16.mxu0 0
      %1050 = vmatpush1.bf16.msra.mxu0 %v808
      %1051 = vmatprep.mubr.bf16.mxu0 %v446
      %1052 = vmatmul.mubr.bf16.gmra.mrb[0].mxu0 %v445
      %v1053 = vpop.f32.mrb[0].mxu0
      %v1054 = vadd.f32 %v989, %v1053
      %v1055 = vpop.f32.mrb[0].mxu0
      %v1056 = vpop.f32.mrb[0].mxu0
      %v1057 = vadd.f32 %v992, %v1056
      %v1058 = vpop.f32.mrb[0].mxu0
      %1059 = vmatprep.mubr.bf16.mxu0 %v454
      %1060 = vmatmul.mubr.bf16.gmra.mrb[0].mxu0 %v453
      %v1061 = vpop.f32.mrb[0].mxu0
      %v1062 = vadd.f32 %v997, %v1061
      %v1063 = vpop.f32.mrb[0].mxu0
      %v1064 = vpop.f32.mrb[0].mxu0
      %v1065 = vadd.f32 %v1000, %v1064
      %v1066 = vpop.f32.mrb[0].mxu0
      %1067 = vmatprep.mubr.bf16.mxu0 %v462
      %1068 = vmatmul.mubr.bf16.gmra.mrb[0].mxu0 %v461
      %v1069 = vpop.f32.mrb[0].mxu0
      %v1070 = vadd.f32 %v1005, %v1069
      %v1071 = vpop.f32.mrb[0].mxu0
      %v1072 = vpop.f32.mrb[0].mxu0
      %v1073 = vadd.f32 %v1008, %v1072
      %v1074 = vpop.f32.mrb[0].mxu0
      %1075 = vmatprep.mubr.bf16.mxu0 %v470
      %1076 = vmatmul.mubr.bf16.gmra.mrb[0].mxu0 %v469
      %v1077 = vpop.f32.mrb[0].mxu0
      %v1078 = vadd.f32 %v1013, %v1077
      %v1079 = vpop.f32.mrb[0].mxu0
      %v1080 = vpop.f32.mrb[0].mxu0
      %v1081 = vadd.f32 %v1016, %v1080
      %v1082 = vpop.f32.mrb[0].mxu0
      %1083 = vdwg.mxu0
      %1084 = vmatprep.subr.bf16.mxu0 0
      %1085 = vmatpush1.bf16.msra.mxu0 %v809
      %1086 = vmatprep.subr.bf16.mxu0 0
      %1087 = vmatpush1.bf16.msra.mxu0 %v810
      %1088 = vmatprep.subr.bf16.mxu0 0
      %1089 = vmatpush1.bf16.msra.mxu0 %v811
      %1090 = vmatprep.subr.bf16.mxu0 0
      %1091 = vmatpush1.bf16.msra.mxu0 %v812
      %1092 = vmatprep.subr.bf16.mxu0 0
      %1093 = vmatpush1.bf16.msra.mxu0 %v813
      %1094 = vmatprep.subr.bf16.mxu0 0
      %1095 = vmatpush1.bf16.msra.mxu0 %v814
      %1096 = vmatprep.subr.bf16.mxu0 0
      %1097 = vmatpush1.bf16.msra.mxu0 %v815
      %1098 = vmatprep.subr.bf16.mxu0 0
      %1099 = vmatpush1.bf16.msra.mxu0 %v816
      %1100 = vmatprep.subr.bf16.mxu0 0
      %1101 = vmatpush1.bf16.msra.mxu0 %v817
      %1102 = vmatprep.subr.bf16.mxu0 0
      %1103 = vmatpush1.bf16.msra.mxu0 %v818
      %1104 = vmatprep.subr.bf16.mxu0 0
      %1105 = vmatpush1.bf16.msra.mxu0 %v819
      %1106 = vmatprep.subr.bf16.mxu0 0
      %1107 = vmatpush1.bf16.msra.mxu0 %v820
      %1108 = vmatprep.subr.bf16.mxu0 0
      %1109 = vmatpush1.bf16.msra.mxu0 %v821
      %1110 = vmatprep.subr.bf16.mxu0 0
      %1111 = vmatpush1.bf16.msra.mxu0 %v822
      %1112 = vmatprep.subr.bf16.mxu0 0
      %1113 = vmatpush1.bf16.msra.mxu0 %v823
      %1114 = vmatprep.subr.bf16.mxu0 0
      %1115 = vmatpush1.bf16.msra.mxu0 %v824
      %1116 = vmatprep.mubr.bf16.mxu0 %v448
      %1117 = vmatmul.mubr.bf16.gmra.mrb[0].mxu0 %v447
      %v1118 = vpop.f32.mrb[0].mxu0
      %v1119 = vadd.f32 %v1054, %v1118
      %v1120 = vpop.f32.mrb[0].mxu0
      %v1121 = vpop.f32.mrb[0].mxu0
      %v1122 = vadd.f32 %v1057, %v1121
      %v1123 = vpop.f32.mrb[0].mxu0
      %1124 = vmatprep.mubr.bf16.mxu0 %v456
      %1125 = vmatmul.mubr.bf16.gmra.mrb[0].mxu0 %v455
      %v1126 = vpop.f32.mrb[0].mxu0
      %v1127 = vadd.f32 %v1062, %v1126
      %v1128 = vpop.f32.mrb[0].mxu0
      %v1129 = vpop.f32.mrb[0].mxu0
      %v1130 = vadd.f32 %v1065, %v1129
      %v1131 = vpop.f32.mrb[0].mxu0
      %1132 = vmatprep.mubr.bf16.mxu0 %v464
      %1133 = vmatmul.mubr.bf16.gmra.mrb[0].mxu0 %v463
      %v1134 = vpop.f32.mrb[0].mxu0
      %v1135 = vadd.f32 %v1070, %v1134
      %v1136 = vpop.f32.mrb[0].mxu0
      %v1137 = vpop.f32.mrb[0].mxu0
      %v1138 = vadd.f32 %v1073, %v1137
      %v1139 = vpop.f32.mrb[0].mxu0
      %1140 = vmatprep.mubr.bf16.mxu0 %v472
      %1141 = vmatmul.mubr.bf16.gmra.mrb[0].mxu0 %v471
      %v1142 = vpop.f32.mrb[0].mxu0
      %v1143 = vadd.f32 %v1078, %v1142
      %v1144 = vpop.f32.mrb[0].mxu0
      %v1145 = vpop.f32.mrb[0].mxu0
      %v1146 = vadd.f32 %v1081, %v1145
      %v1147 = vpop.f32.mrb[0].mxu0
      %1148 = vdwg.mxu0
      %v1149 = vmax.f32 %v1119, 0.0
      %v1150 = vmax.f32 %v1122, 0.0
      %v1151 = vmax.f32 %v1127, 0.0
      %v1152 = vmax.f32 %v1130, 0.0
      %v1153 = vmax.f32 %v1135, 0.0
      %v1154 = vmax.f32 %v1138, 0.0
      %v1155 = vmax.f32 %v1143, 0.0
      %v1156 = vmax.f32 %v1146, 0.0
      %v1157 = vpack.c.bf16 %v1150, %v1149
      %v1158 = vpack.c.bf16 %v1152, %v1151
      %v1159 = vpack.c.bf16 %v1154, %v1153
      %v1160 = vpack.c.bf16 %v1156, %v1155
      %v1165 = vunpack.c.l.b16 %v1157
      %v1166 = vunpack.c.h.b16 %v1157
      %v1167 = vunpack.c.l.b16 %v1158
      %v1168 = vunpack.c.h.b16 %v1158
      %v1169 = vunpack.c.l.b16 %v1159
      %v1170 = vunpack.c.h.b16 %v1159
      %v1171 = vunpack.c.l.b16 %v1160
      %v1172 = vunpack.c.h.b16 %v1160
      %v1173 = vpack.c.b16 %v1165, %v1165
      %v1174 = vpack.c.b16 %v1166, %v1166
      %v1175 = vpack.c.b16 %v1167, %v1167
      %v1176 = vpack.c.b16 %v1168, %v1168
      %v1177 = vpack.c.b16 %v1169, %v1169
      %v1178 = vpack.c.b16 %v1170, %v1170
      %v1179 = vpack.c.b16 %v1171, %v1171
      %v1180 = vpack.c.b16 %v1172, %v1172
      %1189 = vst [vmem:[%s175] sm:$0xf] %v1173
      %1190 = vst [vmem:[%s175 + $0x4] sm:$0xf] %v1174
      %1191 = vst [vmem:[%s175 + $0x8] sm:$0xf] %v1175
      %1192 = vst [vmem:[%s175 + $0xc] sm:$0xf] %v1176
      %1193 = vst [vmem:[%s175 + $0x10] sm:$0xf] %v1177
      %1194 = vst [vmem:[%s175 + $0x14] sm:$0xf] %v1178
      %1195 = vst [vmem:[%s175 + $0x18] sm:$0xf] %v1179
      %1196 = vst [vmem:[%s175 + $0x1c] sm:$0xf] %v1180
      %s1197 = smul.u32 8, %s14
      %p1198 = scmp.lt.s32.totalorder %s1197, 15
      %s1199 = scalar_select %p1198, %s1197, 15
      %s1200 = smul.addr %s1199, 4
      %s1201 = scalar_lea.vmem %s3, %s1200
      // Predicated region
      $region33: #{forward.6} parent=31 // pred_check
        %p1202 = pneg %p100
      $region34: #{forward.6} parent=31 // pred_check_branch
        %1204 = sbr.rel (%p1202) target = $region36
      $region35: #{forward.6} parent=31 // pred_region
        %s1205 = smul.u32 8, %s14
      $region36: #{forward.6} parent=31 // pred_fallthru
        _
    $region32: #{forward.6} parent=5 // pred_fallthru
      _
    %p1206 = scmp.le.s32.totalorder 2, %s9
    // Predicated region
    $region37: #{forward.6} parent=5 // pred_check
      %p1207 = pneg %p1206
    $region38: #{forward.6} parent=5 // pred_check_branch
      %1209 = sbr.rel (%p1207) target = $region40
    $region39: #{forward.6} parent=5 // pred_region
      %s1210 = ssub.s32 %s9, 2
      // Predicated region
      $region41: #{forward.6} parent=39 // pred_check
        %p1211 = pneg %p106
      $region42: #{forward.6} parent=39 // pred_check_branch
        %1213 = sbr.rel (%p1211) target = $region44
      $region43: #{forward.6} parent=39 // pred_region
        %s1214 = smul.u32 8, %s15
        %p1215 = scmp.lt.s32.totalorder %s1214, 15
        %s1216 = scalar_select %p1215, %s1214, 15
        %s1217 = smul.addr %s1216, 4
        %s1218 = scalar_lea.vmem %s3, %s1217
      $region44: #{forward.6} parent=39 // pred_fallthru
        _
    $region40: #{forward.6} parent=5 // pred_fallthru
      _
  $region6: #{forward.6} parent=0 // loop_footer
    %s13 = sadd.s32 1, %s9
  $region7: #{forward.6} parent=0 // loop_footer_branch
    %8 = sbr.rel target = $region3
  $region8: #{forward.6} parent=0 // loop_exit
    _

// kernel: forward.7
$region0: #{forward.7}
  #allocation0 [shape = 'u32[]', space=smem, size = 0x4, offset = 0x4, fixed_abs, tag = 'smem constant byte address 0x4 - core index']
  #allocation1 [shape = 'u32[144,128]{1,0:T(1,128)}', space=vmem, size = 0x12000, scoped, tag = 'internal scratch']
  %s0 = inlined_call_operand.vmem [shape: bf16[512,512], index: 0, kind: input, shape index: {}]
  %s1 = inlined_call_operand.vmem [shape: bf16[512,128], index: 1, kind: input, shape index: {}]
  %s2 = inlined_call_operand.vmem [shape: f32[1,128], index: 2, kind: input, shape index: {}]
  %s3 = inlined_call_operand.vmem [shape: bf16[512,128], index: 3, kind: output, shape index: {}]
  %s4 = sld [smem:[#allocation0]]
  $region45: #{forward.7} parent=0
    _
  %s6 = ssub.s32 1, %s4
  %s7 = scalar_select 0, %s6, %s4
  loop: start=0, step=1, limit=4
  $region2: #{forward.7} parent=0 // loop_pre_header
    _
  $region3: #{forward.7} parent=0 // loop_header
    %s9 = sphi 0, %s13
    %p10 = scmp.ge.s32.totalorder %s9, 4
    %s19 = sphi 0, %s21
    %s22 = sphi 0, %s19
    %s23 = sphi 0, %s22
    %s39 = sphi 0, %s23
    %s43 = sphi 0, %s43
    %s45 = sphi 0, %s43
    %s46 = sphi 0, %s45
    %s60 = sphi 0, %s46
    %s64 = sphi 0, %s64
    %s66 = sphi 0, %s64
    %s67 = sphi 0, %s66
    %s81 = sphi 0, %s67
    %s87 = sphi 0, %s89
    %s90 = sphi 0, %s87
    %s91 = sphi 0, %s90
    %s107 = sphi 0, %s91
  $region4: #{forward.7} parent=0 // loop_header_branch
    %12 = sbr.rel (%p10) target = $region8
  $region5: #{forward.7} parent=0 // loop_body
    %s14 = ssub.s32 %s9, 1
    %s15 = ssub.s32 %s9, 2
    %s16 = sadd.s32 %s9, 1
    %s17 = ssub.s32 %s9, %s16
    %p18 = scmp.eq.s32.totalorder %s17, 0
    %s20 = sadd.s32 %s19, 1
    %s21 = scalar_select %p18, %s19, %s20
    %p24 = pneg %p18
    %p25 = scmp.eq.s32.totalorder %s9, 1
    %p26 = por %p24, %p25
    %p27 = scmp.ne.s32.totalorder %s19, %s22
    %p28 = scmp.eq.s32.totalorder %s9, 0
    %p29 = por %p27, %p28
    %p30 = scmp.ne.s32.totalorder %s19, %s22
    %p31 = scmp.eq.s32.totalorder %s14, 1
    %p32 = por %p30, %p31
    %p33 = scmp.ne.s32.totalorder %s22, %s23
    %p34 = scmp.eq.s32.totalorder %s14, 0
    %p35 = por %p33, %p34
    %p36 = scmp.ne.s32.totalorder %s22, %s23
    %p37 = scmp.eq.s32.totalorder %s15, 1
    %p38 = por %p36, %p37
    %p40 = scmp.ne.s32.totalorder %s23, %s39
    %p41 = scmp.eq.s32.totalorder %s15, 0
    %p42 = por %p40, %p41
    %s44 = sadd.s32 %s43, 1
    %p47 = scmp.eq.s32.totalorder %s9, 1
    %p48 = scmp.ne.s32.totalorder %s43, %s45
    %p49 = scmp.eq.s32.totalorder %s9, 0
    %p50 = por %p48, %p49
    %p51 = scmp.ne.s32.totalorder %s43, %s45
    %p52 = scmp.eq.s32.totalorder %s14, 1
    %p53 = por %p51, %p52
    %p54 = scmp.ne.s32.totalorder %s45, %s46
    %p55 = scmp.eq.s32.totalorder %s14, 0
    %p56 = por %p54, %p55
    %p57 = scmp.ne.s32.totalorder %s45, %s46
    %p58 = scmp.eq.s32.totalorder %s15, 1
    %p59 = por %p57, %p58
    %p61 = scmp.ne.s32.totalorder %s46, %s60
    %p62 = scmp.eq.s32.totalorder %s15, 0
    %p63 = por %p61, %p62
    %s65 = sadd.s32 %s64, 1
    %p68 = scmp.eq.s32.totalorder %s9, 1
    %p69 = scmp.ne.s32.totalorder %s64, %s66
    %p70 = scmp.eq.s32.totalorder %s9, 0
    %p71 = por %p69, %p70
    %p72 = scmp.ne.s32.totalorder %s64, %s66
    %p73 = scmp.eq.s32.totalorder %s14, 1
    %p74 = por %p72, %p73
    %p75 = scmp.ne.s32.totalorder %s66, %s67
    %p76 = scmp.eq.s32.totalorder %s14, 0
    %p77 = por %p75, %p76
    %p78 = scmp.ne.s32.totalorder %s66, %s67
    %p79 = scmp.eq.s32.totalorder %s15, 1
    %p80 = por %p78, %p79
    %p82 = scmp.ne.s32.totalorder %s67, %s81
    %p83 = scmp.eq.s32.totalorder %s15, 0
    %p84 = por %p82, %p83
    %s85 = ssub.s32 %s9, %s16
    %p86 = scmp.eq.s32.totalorder %s85, 0
    %s88 = sadd.s32 %s87, 1
    %s89 = scalar_select %p86, %s87, %s88
    %p92 = pneg %p86
    %p93 = scmp.eq.s32.totalorder %s9, 1
    %p94 = por %p92, %p93
    %p95 = scmp.ne.s32.totalorder %s87, %s90
    %p96 = scmp.eq.s32.totalorder %s9, 0
    %p97 = por %p95, %p96
    %p98 = scmp.ne.s32.totalorder %s87, %s90
    %p99 = scmp.eq.s32.totalorder %s14, 1
    %p100 = por %p98, %p99
    %p101 = scmp.ne.s32.totalorder %s90, %s91
    %p102 = scmp.eq.s32.totalorder %s14, 0
    %p103 = por %p101, %p102
    %p104 = scmp.ne.s32.totalorder %s90, %s91
    %p105 = scmp.eq.s32.totalorder %s15, 1
    %p106 = por %p104, %p105
    %p108 = scmp.ne.s32.totalorder %s91, %s107
    %p109 = scmp.eq.s32.totalorder %s15, 0
    %p110 = por %p108, %p109
    %p111 = scmp.le.s32.totalorder 1, %s9
    %p112 = scmp.lt.s32.totalorder %s9, 3
    %p113 = pnand %p111, %p112
    %p114 = pneg %p113
    // Predicated region
    $region9: #{forward.7} parent=5 // pred_check
      _
    $region10: #{forward.7} parent=5 // pred_check_branch
      %116 = sbr.rel (%p113) target = $region12
    $region11: #{forward.7} parent=5 // pred_region
      %s117 = ssub.s32 %s9, 1
      // Predicated region
      $region13: #{forward.7} parent=11 // pred_check
        %p118 = pneg %p56
      $region14: #{forward.7} parent=11 // pred_check_branch
        %120 = sbr.rel (%p118) target = $region16
      $region15: #{forward.7} parent=11 // pred_region
        _
      $region16: #{forward.7} parent=11 // pred_fallthru
        _
      // Predicated region
      $region17: #{forward.7} parent=11 // pred_check
        %p121 = pneg %p77
      $region18: #{forward.7} parent=11 // pred_check_branch
        %123 = sbr.rel (%p121) target = $region20
      $region19: #{forward.7} parent=11 // pred_region
        _
      $region20: #{forward.7} parent=11 // pred_fallthru
        _
    $region12: #{forward.7} parent=5 // pred_fallthru
      _
    %p124 = scmp.lt.s32.totalorder %s9, 2
    // Predicated region
    $region21: #{forward.7} parent=5 // pred_check
      %p125 = pneg %p124
    $region22: #{forward.7} parent=5 // pred_check_branch
      %127 = sbr.rel (%p125) target = $region24
    $region23: #{forward.7} parent=5 // pred_region
      // Predicated region
      $region25: #{forward.7} parent=23 // pred_check
        %p128 = pneg %p29
      $region26: #{forward.7} parent=23 // pred_check_branch
        %130 = sbr.rel (%p128) target = $region28
      $region27: #{forward.7} parent=23 // pred_region
        %s131 = smul.u32 32, %s9
        %p132 = scmp.lt.s32.totalorder %s131, 63
        %s133 = scalar_select %p132, %s131, 63
        %s134 = smul.addr %s133, 4
        %s135 = smul.addr %s134, 4
        %s136 = scalar_lea.vmem %s0, %s135
        %s137 = smul.u32 32, %s9
      $region28: #{forward.7} parent=23 // pred_fallthru
        _
    $region24: #{forward.7} parent=5 // pred_fallthru
      _
    %p138 = scmp.le.s32.totalorder 1, %s9
    %p139 = scmp.lt.s32.totalorder %s9, 3
    %p140 = pnand %p138, %p139
    %p141 = pneg %p140
    // Predicated region
    $region29: #{forward.7} parent=5 // pred_check
      _
    $region30: #{forward.7} parent=5 // pred_check_branch
      %143 = sbr.rel (%p140) target = $region32
    $region31: #{forward.7} parent=5 // pred_region
      %s144 = ssub.s32 %s9, 1
      %s145 = smul.u32 32, %s14
      %p146 = scmp.lt.s32.totalorder %s145, 63
      %s147 = scalar_select %p146, %s145, 63
      %s148 = smul.addr %s147, 4
      %s149 = smul.addr %s148, 4
      %s150 = scalar_lea.vmem %s0, %s149
      %p151 = pneg %p35
      %p152 = pneg %p32
      %p153 = pneg %p56
      %p154 = pneg %p53
      %p155 = pneg %p77
      %p156 = pneg %p74
      %p157 = pneg %p103
      %p158 = pneg %p100
      %s159 = smul.u32 32, %s14
      %p160 = scmp.lt.s32.totalorder %s159, 63
      %s161 = scalar_select %p160, %s159, 63
      %s162 = smul.addr %s161, 4
      %s163 = scalar_lea.vmem %s3, %s162
      %s164 = smul.u32 32, %s14
      %p165 = scmp.lt.s32.totalorder %s164, 63
      %s166 = scalar_select %p165, %s164, 63
      %s167 = smul.addr %s166, 4
      %s168 = smul.addr %s167, 4
      %s169 = scalar_lea.vmem %s0, %s168
      %s170 = smul.u32 32, %s14
      %s171 = smul.u32 32, %s14
      %p172 = scmp.lt.s32.totalorder %s171, 63
      %s173 = scalar_select %p172, %s171, 63
      %s174 = smul.addr %s173, 4
      %s175 = scalar_lea.vmem %s3, %s174
      %s176 = smul.u32 32, %s14
      %v178 = vld [vmem:[%s169] sm:$0xff]
      %v179 = vld [vmem:[%s169 + $0x8] sm:$0xff]
      %v180 = vld [vmem:[%s169 + $0x10] sm:$0xff]
      %v181 = vld [vmem:[%s169 + $0x18] sm:$0xff]
      %v182 = vld [vmem:[%s169 + $0x20] sm:$0xff]
      %v183 = vld [vmem:[%s169 + $0x28] sm:$0xff]
      %v184 = vld [vmem:[%s169 + $0x30] sm:$0xff]
      %v185 = vld [vmem:[%s169 + $0x38] sm:$0xff]
      %v186 = vld [vmem:[%s169 + $0x40] sm:$0xff]
      %v187 = vld [vmem:[%s169 + $0x48] sm:$0xff]
      %v188 = vld [vmem:[%s169 + $0x50] sm:$0xff]
      %v189 = vld [vmem:[%s169 + $0x58] sm:$0xff]
      %v190 = vld [vmem:[%s169 + $0x60] sm:$0xff]
      %v191 = vld [vmem:[%s169 + $0x68] sm:$0xff]
      %v192 = vld [vmem:[%s169 + $0x70] sm:$0xff]
      %v193 = vld [vmem:[%s169 + $0x78] sm:$0xff]
      %v194 = vld [vmem:[%s169 + $0x80] sm:$0xff]
      %v195 = vld [vmem:[%s169 + $0x88] sm:$0xff]
      %v196 = vld [vmem:[%s169 + $0x90] sm:$0xff]
      %v197 = vld [vmem:[%s169 + $0x98] sm:$0xff]
      %v198 = vld [vmem:[%s169 + $0xa0] sm:$0xff]
      %v199 = vld [vmem:[%s169 + $0xa8] sm:$0xff]
      %v200 = vld [vmem:[%s169 + $0xb0] sm:$0xff]
      %v201 = vld [vmem:[%s169 + $0xb8] sm:$0xff]
      %v202 = vld [vmem:[%s169 + $0xc0] sm:$0xff]
      %v203 = vld [vmem:[%s169 + $0xc8] sm:$0xff]
      %v204 = vld [vmem:[%s169 + $0xd0] sm:$0xff]
      %v205 = vld [vmem:[%s169 + $0xd8] sm:$0xff]
      %v206 = vld [vmem:[%s169 + $0xe0] sm:$0xff]
      %v207 = vld [vmem:[%s169 + $0xe8] sm:$0xff]
      %v208 = vld [vmem:[%s169 + $0xf0] sm:$0xff]
      %v209 = vld [vmem:[%s169 + $0xf8] sm:$0xff]
      %v210 = vld [vmem:[%s169 + $0x100] sm:$0xff]
      %v211 = vld [vmem:[%s169 + $0x108] sm:$0xff]
      %v212 = vld [vmem:[%s169 + $0x110] sm:$0xff]
      %v213 = vld [vmem:[%s169 + $0x118] sm:$0xff]
      %v214 = vld [vmem:[%s169 + $0x120] sm:$0xff]
      %v215 = vld [vmem:[%s169 + $0x128] sm:$0xff]
      %v216 = vld [vmem:[%s169 + $0x130] sm:$0xff]
      %v217 = vld [vmem:[%s169 + $0x138] sm:$0xff]
      %v218 = vld [vmem:[%s169 + $0x140] sm:$0xff]
      %v219 = vld [vmem:[%s169 + $0x148] sm:$0xff]
      %v220 = vld [vmem:[%s169 + $0x150] sm:$0xff]
      %v221 = vld [vmem:[%s169 + $0x158] sm:$0xff]
      %v222 = vld [vmem:[%s169 + $0x160] sm:$0xff]
      %v223 = vld [vmem:[%s169 + $0x168] sm:$0xff]
      %v224 = vld [vmem:[%s169 + $0x170] sm:$0xff]
      %v225 = vld [vmem:[%s169 + $0x178] sm:$0xff]
      %v226 = vld [vmem:[%s169 + $0x180] sm:$0xff]
      %v227 = vld [vmem:[%s169 + $0x188] sm:$0xff]
      %v228 = vld [vmem:[%s169 + $0x190] sm:$0xff]
      %v229 = vld [vmem:[%s169 + $0x198] sm:$0xff]
      %v230 = vld [vmem:[%s169 + $0x1a0] sm:$0xff]
      %v231 = vld [vmem:[%s169 + $0x1a8] sm:$0xff]
      %v232 = vld [vmem:[%s169 + $0x1b0] sm:$0xff]
      %v233 = vld [vmem:[%s169 + $0x1b8] sm:$0xff]
      %v234 = vld [vmem:[%s169 + $0x1c0] sm:$0xff]
      %v235 = vld [vmem:[%s169 + $0x1c8] sm:$0xff]
      %v236 = vld [vmem:[%s169 + $0x1d0] sm:$0xff]
      %v237 = vld [vmem:[%s169 + $0x1d8] sm:$0xff]
      %v238 = vld [vmem:[%s169 + $0x1e0] sm:$0xff]
      %v239 = vld [vmem:[%s169 + $0x1e8] sm:$0xff]
      %v240 = vld [vmem:[%s169 + $0x1f0] sm:$0xff]
      %v241 = vld [vmem:[%s169 + $0x1f8] sm:$0xff]
      %v242 = vld [vmem:[%s1] sm:$0xf]
      %v243 = vld [vmem:[%s1 + $0x4] sm:$0xf]
      %v244 = vld [vmem:[%s1 + $0x8] sm:$0xf]
      %v245 = vld [vmem:[%s1 + $0xc] sm:$0xf]
      %v246 = vld [vmem:[%s1 + $0x10] sm:$0xf]
      %v247 = vld [vmem:[%s1 + $0x14] sm:$0xf]
      %v248 = vld [vmem:[%s1 + $0x18] sm:$0xf]
      %v249 = vld [vmem:[%s1 + $0x1c] sm:$0xf]
      %v250 = vld [vmem:[%s1 + $0x20] sm:$0xf]
      %v251 = vld [vmem:[%s1 + $0x24] sm:$0xf]
      %v252 = vld [vmem:[%s1 + $0x28] sm:$0xf]
      %v253 = vld [vmem:[%s1 + $0x2c] sm:$0xf]
      %v254 = vld [vmem:[%s1 + $0x30] sm:$0xf]
      %v255 = vld [vmem:[%s1 + $0x34] sm:$0xf]
      %v256 = vld [vmem:[%s1 + $0x38] sm:$0xf]
      %v257 = vld [vmem:[%s1 + $0x3c] sm:$0xf]
      %v258 = vld [vmem:[%s1 + $0x40] sm:$0xf]
      %v259 = vld [vmem:[%s1 + $0x44] sm:$0xf]
      %v260 = vld [vmem:[%s1 + $0x48] sm:$0xf]
      %v261 = vld [vmem:[%s1 + $0x4c] sm:$0xf]
      %v262 = vld [vmem:[%s1 + $0x50] sm:$0xf]
      %v263 = vld [vmem:[%s1 + $0x54] sm:$0xf]
      %v264 = vld [vmem:[%s1 + $0x58] sm:$0xf]
      %v265 = vld [vmem:[%s1 + $0x5c] sm:$0xf]
      %v266 = vld [vmem:[%s1 + $0x60] sm:$0xf]
      %v267 = vld [vmem:[%s1 + $0x64] sm:$0xf]
      %v268 = vld [vmem:[%s1 + $0x68] sm:$0xf]
      %v269 = vld [vmem:[%s1 + $0x6c] sm:$0xf]
      %v270 = vld [vmem:[%s1 + $0x70] sm:$0xf]
      %v271 = vld [vmem:[%s1 + $0x74] sm:$0xf]
      %v272 = vld [vmem:[%s1 + $0x78] sm:$0xf]
      %v273 = vld [vmem:[%s1 + $0x7c] sm:$0xf]
      %v274 = vld [vmem:[%s1 + $0x80] sm:$0xf]
      %v275 = vld [vmem:[%s1 + $0x84] sm:$0xf]
      %v276 = vld [vmem:[%s1 + $0x88] sm:$0xf]
      %v277 = vld [vmem:[%s1 + $0x8c] sm:$0xf]
      %v278 = vld [vmem:[%s1 + $0x90] sm:$0xf]
      %v279 = vld [vmem:[%s1 + $0x94] sm:$0xf]
      %v280 = vld [vmem:[%s1 + $0x98] sm:$0xf]
      %v281 = vld [vmem:[%s1 + $0x9c] sm:$0xf]
      %v282 = vld [vmem:[%s1 + $0xa0] sm:$0xf]
      %v283 = vld [vmem:[%s1 + $0xa4] sm:$0xf]
      %v284 = vld [vmem:[%s1 + $0xa8] sm:$0xf]
      %v285 = vld [vmem:[%s1 + $0xac] sm:$0xf]
      %v286 = vld [vmem:[%s1 + $0xb0] sm:$0xf]
      %v287 = vld [vmem:[%s1 + $0xb4] sm:$0xf]
      %v288 = vld [vmem:[%s1 + $0xb8] sm:$0xf]
      %v289 = vld [vmem:[%s1 + $0xbc] sm:$0xf]
      %v290 = vld [vmem:[%s1 + $0xc0] sm:$0xf]
      %v291 = vld [vmem:[%s1 + $0xc4] sm:$0xf]
      %v292 = vld [vmem:[%s1 + $0xc8] sm:$0xf]
      %v293 = vld [vmem:[%s1 + $0xcc] sm:$0xf]
      %v294 = vld [vmem:[%s1 + $0xd0] sm:$0xf]
      %v295 = vld [vmem:[%s1 + $0xd4] sm:$0xf]
      %v296 = vld [vmem:[%s1 + $0xd8] sm:$0xf]
      %v297 = vld [vmem:[%s1 + $0xdc] sm:$0xf]
      %v298 = vld [vmem:[%s1 + $0xe0] sm:$0xf]
      %v299 = vld [vmem:[%s1 + $0xe4] sm:$0xf]
      %v300 = vld [vmem:[%s1 + $0xe8] sm:$0xf]
      %v301 = vld [vmem:[%s1 + $0xec] sm:$0xf]
      %v302 = vld [vmem:[%s1 + $0xf0] sm:$0xf]
      %v303 = vld [vmem:[%s1 + $0xf4] sm:$0xf]
      %v304 = vld [vmem:[%s1 + $0xf8] sm:$0xf]
      %v305 = vld [vmem:[%s1 + $0xfc] sm:$0xf]
      %v306 = vld [vmem:[%s2] sm:$0x1]
      %v308 = vlaneseq
      %v309 = vshrl.u32 %v308, 7
      %v310 = vsub.s32 0, %v309
      %v311 = vrot.slane %v306, %v310
      %v377 = vunpack.c.l.b16 %v178
      %v378 = vunpack.c.h.b16 %v178
      %v379 = vunpack.c.l.b16 %v179
      %v380 = vunpack.c.h.b16 %v179
      %v381 = vunpack.c.l.b16 %v180
      %v382 = vunpack.c.h.b16 %v180
      %v383 = vunpack.c.l.b16 %v181
      %v384 = vunpack.c.h.b16 %v181
      %v385 = vunpack.c.l.b16 %v182
      %v386 = vunpack.c.h.b16 %v182
      %v387 = vunpack.c.l.b16 %v183
      %v388 = vunpack.c.h.b16 %v183
      %v389 = vunpack.c.l.b16 %v184
      %v390 = vunpack.c.h.b16 %v184
      %v391 = vunpack.c.l.b16 %v185
      %v392 = vunpack.c.h.b16 %v185
      %v393 = vunpack.c.l.b16 %v186
      %v394 = vunpack.c.h.b16 %v186
      %v395 = vunpack.c.l.b16 %v187
      %v396 = vunpack.c.h.b16 %v187
      %v397 = vunpack.c.l.b16 %v188
      %v398 = vunpack.c.h.b16 %v188
      %v399 = vunpack.c.l.b16 %v189
      %v400 = vunpack.c.h.b16 %v189
      %v401 = vunpack.c.l.b16 %v190
      %v402 = vunpack.c.h.b16 %v190
      %v403 = vunpack.c.l.b16 %v191
      %v404 = vunpack.c.h.b16 %v191
      %v405 = vunpack.c.l.b16 %v192
      %v406 = vunpack.c.h.b16 %v192
      %v407 = vunpack.c.l.b16 %v193
      %v408 = vunpack.c.h.b16 %v193
      %v409 = vunpack.c.l.b16 %v194
      %v410 = vunpack.c.h.b16 %v194
      %v411 = vunpack.c.l.b16 %v195
      %v412 = vunpack.c.h.b16 %v195
      %v413 = vunpack.c.l.b16 %v196
      %v414 = vunpack.c.h.b16 %v196
      %v415 = vunpack.c.l.b16 %v197
      %v416 = vunpack.c.h.b16 %v197
      %v417 = vunpack.c.l.b16 %v198
      %v418 = vunpack.c.h.b16 %v198
      %v419 = vunpack.c.l.b16 %v199
      %v420 = vunpack.c.h.b16 %v199
      %v421 = vunpack.c.l.b16 %v200
      %v422 = vunpack.c.h.b16 %v200
      %v423 = vunpack.c.l.b16 %v201
      %v424 = vunpack.c.h.b16 %v201
      %v425 = vunpack.c.l.b16 %v202
      %v426 = vunpack.c.h.b16 %v202
      %v427 = vunpack.c.l.b16 %v203
      %v428 = vunpack.c.h.b16 %v203
      %v429 = vunpack.c.l.b16 %v204
      %v430 = vunpack.c.h.b16 %v204
      %v431 = vunpack.c.l.b16 %v205
      %v432 = vunpack.c.h.b16 %v205
      %v433 = vunpack.c.l.b16 %v206
      %v434 = vunpack.c.h.b16 %v206
      %v435 = vunpack.c.l.b16 %v207
      %v436 = vunpack.c.h.b16 %v207
      %v437 = vunpack.c.l.b16 %v208
      %v438 = vunpack.c.h.b16 %v208
      %v439 = vunpack.c.l.b16 %v209
      %v440 = vunpack.c.h.b16 %v209
      %v441 = vunpack.c.l.b16 %v210
      %v442 = vunpack.c.h.b16 %v210
      %v443 = vunpack.c.l.b16 %v211
      %v444 = vunpack.c.h.b16 %v211
      %v445 = vunpack.c.l.b16 %v212
      %v446 = vunpack.c.h.b16 %v212
      %v447 = vunpack.c.l.b16 %v213
      %v448 = vunpack.c.h.b16 %v213
      %v449 = vunpack.c.l.b16 %v214
      %v450 = vunpack.c.h.b16 %v214
      %v451 = vunpack.c.l.b16 %v215
      %v452 = vunpack.c.h.b16 %v215
      %v453 = vunpack.c.l.b16 %v216
      %v454 = vunpack.c.h.b16 %v216
      %v455 = vunpack.c.l.b16 %v217
      %v456 = vunpack.c.h.b16 %v217
      %v457 = vunpack.c.l.b16 %v218
      %v458 = vunpack.c.h.b16 %v218
      %v459 = vunpack.c.l.b16 %v219
      %v460 = vunpack.c.h.b16 %v219
      %v461 = vunpack.c.l.b16 %v220
      %v462 = vunpack.c.h.b16 %v220
      %v463 = vunpack.c.l.b16 %v221
      %v464 = vunpack.c.h.b16 %v221
      %v465 = vunpack.c.l.b16 %v222
      %v466 = vunpack.c.h.b16 %v222
      %v467 = vunpack.c.l.b16 %v223
      %v468 = vunpack.c.h.b16 %v223
      %v469 = vunpack.c.l.b16 %v224
      %v470 = vunpack.c.h.b16 %v224
      %v471 = vunpack.c.l.b16 %v225
      %v472 = vunpack.c.h.b16 %v225
      %v473 = vunpack.c.l.b16 %v226
      %v474 = vunpack.c.h.b16 %v226
      %v475 = vunpack.c.l.b16 %v227
      %v476 = vunpack.c.h.b16 %v227
      %v477 = vunpack.c.l.b16 %v228
      %v478 = vunpack.c.h.b16 %v228
      %v479 = vunpack.c.l.b16 %v229
      %v480 = vunpack.c.h.b16 %v229
      %v481 = vunpack.c.l.b16 %v230
      %v482 = vunpack.c.h.b16 %v230
      %v483 = vunpack.c.l.b16 %v231
      %v484 = vunpack.c.h.b16 %v231
      %v485 = vunpack.c.l.b16 %v232
      %v486 = vunpack.c.h.b16 %v232
      %v487 = vunpack.c.l.b16 %v233
      %v488 = vunpack.c.h.b16 %v233
      %v489 = vunpack.c.l.b16 %v234
      %v490 = vunpack.c.h.b16 %v234
      %v491 = vunpack.c.l.b16 %v235
      %v492 = vunpack.c.h.b16 %v235
      %v493 = vunpack.c.l.b16 %v236
      %v494 = vunpack.c.h.b16 %v236
      %v495 = vunpack.c.l.b16 %v237
      %v496 = vunpack.c.h.b16 %v237
      %v497 = vunpack.c.l.b16 %v238
      %v498 = vunpack.c.h.b16 %v238
      %v499 = vunpack.c.l.b16 %v239
      %v500 = vunpack.c.h.b16 %v239
      %v501 = vunpack.c.l.b16 %v240
      %v502 = vunpack.c.h.b16 %v240
      %v503 = vunpack.c.l.b16 %v241
      %v504 = vunpack.c.h.b16 %v241
      %v505 = vpack.c.b16 %v381, %v377
      %v506 = vpack.c.b16 %v382, %v378
      %v507 = vpack.c.b16 %v383, %v379
      %v508 = vpack.c.b16 %v384, %v380
      %v509 = vpack.c.b16 %v389, %v385
      %v510 = vpack.c.b16 %v390, %v386
      %v511 = vpack.c.b16 %v391, %v387
      %v512 = vpack.c.b16 %v392, %v388
      %v513 = vpack.c.b16 %v397, %v393
      %v514 = vpack.c.b16 %v398, %v394
      %v515 = vpack.c.b16 %v399, %v395
      %v516 = vpack.c.b16 %v400, %v396
      %v517 = vpack.c.b16 %v405, %v401
      %v518 = vpack.c.b16 %v406, %v402
      %v519 = vpack.c.b16 %v407, %v403
      %v520 = vpack.c.b16 %v408, %v404
      %v521 = vpack.c.b16 %v413, %v409
      %v522 = vpack.c.b16 %v414, %v410
      %v523 = vpack.c.b16 %v415, %v411
      %v524 = vpack.c.b16 %v416, %v412
      %v525 = vpack.c.b16 %v421, %v417
      %v526 = vpack.c.b16 %v422, %v418
      %v527 = vpack.c.b16 %v423, %v419
      %v528 = vpack.c.b16 %v424, %v420
      %v529 = vpack.c.b16 %v429, %v425
      %v530 = vpack.c.b16 %v430, %v426
      %v531 = vpack.c.b16 %v431, %v427
      %v532 = vpack.c.b16 %v432, %v428
      %v533 = vpack.c.b16 %v437, %v433
      %v534 = vpack.c.b16 %v438, %v434
      %v535 = vpack.c.b16 %v439, %v435
      %v536 = vpack.c.b16 %v440, %v436
      %v537 = vpack.c.b16 %v445, %v441
      %v538 = vpack.c.b16 %v446, %v442
      %v539 = vpack.c.b16 %v447, %v443
      %v540 = vpack.c.b16 %v448, %v444
      %v541 = vpack.c.b16 %v453, %v449
      %v542 = vpack.c.b16 %v454, %v450
      %v543 = vpack.c.b16 %v455, %v451
      %v544 = vpack.c.b16 %v456, %v452
      %v545 = vpack.c.b16 %v461, %v457
      %v546 = vpack.c.b16 %v462, %v458
      %v547 = vpack.c.b16 %v463, %v459
      %v548 = vpack.c.b16 %v464, %v460
      %v549 = vpack.c.b16 %v469, %v465
      %v550 = vpack.c.b16 %v470, %v466
      %v551 = vpack.c.b16 %v471, %v467
      %v552 = vpack.c.b16 %v472, %v468
      %v553 = vpack.c.b16 %v477, %v473
      %v554 = vpack.c.b16 %v478, %v474
      %v555 = vpack.c.b16 %v479, %v475
      %v556 = vpack.c.b16 %v480, %v476
      %v557 = vpack.c.b16 %v485, %v481
      %v558 = vpack.c.b16 %v486, %v482
      %v559 = vpack.c.b16 %v487, %v483
      %v560 = vpack.c.b16 %v488, %v484
      %v561 = vpack.c.b16 %v493, %v489
      %v562 = vpack.c.b16 %v494, %v490
      %v563 = vpack.c.b16 %v495, %v491
      %v564 = vpack.c.b16 %v496, %v492
      %v565 = vpack.c.b16 %v501, %v497
      %v566 = vpack.c.b16 %v502, %v498
      %v567 = vpack.c.b16 %v503, %v499
      %v568 = vpack.c.b16 %v504, %v500
      %v697 = vunpack.c.l.b16 %v242
      %v698 = vunpack.c.l.b16 %v243
      %v699 = vunpack.c.l.b16 %v244
      %v700 = vunpack.c.l.b16 %v245
      %v701 = vunpack.c.l.b16 %v246
      %v702 = vunpack.c.l.b16 %v247
      %v703 = vunpack.c.l.b16 %v248
      %v704 = vunpack.c.l.b16 %v249
      %v705 = vunpack.c.l.b16 %v250
      %v706 = vunpack.c.l.b16 %v251
      %v707 = vunpack.c.l.b16 %v252
      %v708 = vunpack.c.l.b16 %v253
      %v709 = vunpack.c.l.b16 %v254
      %v710 = vunpack.c.l.b16 %v255
      %v711 = vunpack.c.l.b16 %v256
      %v712 = vunpack.c.l.b16 %v257
      %v713 = vunpack.c.l.b16 %v258
      %v714 = vunpack.c.l.b16 %v259
      %v715 = vunpack.c.l.b16 %v260
      %v716 = vunpack.c.l.b16 %v261
      %v717 = vunpack.c.l.b16 %v262
      %v718 = vunpack.c.l.b16 %v263
      %v719 = vunpack.c.l.b16 %v264
      %v720 = vunpack.c.l.b16 %v265
      %v721 = vunpack.c.l.b16 %v266
      %v722 = vunpack.c.l.b16 %v267
      %v723 = vunpack.c.l.b16 %v268
      %v724 = vunpack.c.l.b16 %v269
      %v725 = vunpack.c.l.b16 %v270
      %v726 = vunpack.c.l.b16 %v271
      %v727 = vunpack.c.l.b16 %v272
      %v728 = vunpack.c.l.b16 %v273
      %v729 = vunpack.c.l.b16 %v274
      %v730 = vunpack.c.l.b16 %v275
      %v731 = vunpack.c.l.b16 %v276
      %v732 = vunpack.c.l.b16 %v277
      %v733 = vunpack.c.l.b16 %v278
      %v734 = vunpack.c.l.b16 %v279
      %v735 = vunpack.c.l.b16 %v280
      %v736 = vunpack.c.l.b16 %v281
      %v737 = vunpack.c.l.b16 %v282
      %v738 = vunpack.c.l.b16 %v283
      %v739 = vunpack.c.l.b16 %v284
      %v740 = vunpack.c.l.b16 %v285
      %v741 = vunpack.c.l.b16 %v286
      %v742 = vunpack.c.l.b16 %v287
      %v743 = vunpack.c.l.b16 %v288
      %v744 = vunpack.c.l.b16 %v289
      %v745 = vunpack.c.l.b16 %v290
      %v746 = vunpack.c.l.b16 %v291
      %v747 = vunpack.c.l.b16 %v292
      %v748 = vunpack.c.l.b16 %v293
      %v749 = vunpack.c.l.b16 %v294
      %v750 = vunpack.c.l.b16 %v295
      %v751 = vunpack.c.l.b16 %v296
      %v752 = vunpack.c.l.b16 %v297
      %v753 = vunpack.c.l.b16 %v298
      %v754 = vunpack.c.l.b16 %v299
      %v755 = vunpack.c.l.b16 %v300
      %v756 = vunpack.c.l.b16 %v301
      %v757 = vunpack.c.l.b16 %v302
      %v758 = vunpack.c.l.b16 %v303
      %v759 = vunpack.c.l.b16 %v304
      %v760 = vunpack.c.l.b16 %v305
      %v761 = vpack.c.b16 %v698, %v697
      %v762 = vpack.c.b16 %v700, %v699
      %v763 = vpack.c.b16 %v702, %v701
      %v764 = vpack.c.b16 %v704, %v703
      %v765 = vpack.c.b16 %v706, %v705
      %v766 = vpack.c.b16 %v708, %v707
      %v767 = vpack.c.b16 %v710, %v709
      %v768 = vpack.c.b16 %v712, %v711
      %v769 = vpack.c.b16 %v714, %v713
      %v770 = vpack.c.b16 %v716, %v715
      %v771 = vpack.c.b16 %v718, %v717
      %v772 = vpack.c.b16 %v720, %v719
      %v773 = vpack.c.b16 %v722, %v721
      %v774 = vpack.c.b16 %v724, %v723
      %v775 = vpack.c.b16 %v726, %v725
      %v776 = vpack.c.b16 %v728, %v727
      %v777 = vpack.c.b16 %v730, %v729
      %v778 = vpack.c.b16 %v732, %v731
      %v779 = vpack.c.b16 %v734, %v733
      %v780 = vpack.c.b16 %v736, %v735
      %v781 = vpack.c.b16 %v738, %v737
      %v782 = vpack.c.b16 %v740, %v739
      %v783 = vpack.c.b16 %v742, %v741
      %v784 = vpack.c.b16 %v744, %v743
      %v785 = vpack.c.b16 %v746, %v745
      %v786 = vpack.c.b16 %v748, %v747
      %v787 = vpack.c.b16 %v750, %v749
      %v788 = vpack.c.b16 %v752, %v751
      %v789 = vpack.c.b16 %v754, %v753
      %v790 = vpack.c.b16 %v756, %v755
      %v791 = vpack.c.b16 %v758, %v757
      %v792 = vpack.c.b16 %v760, %v759
      %825 = vmatprep.subr.bf16.mxu0 0
      %826 = vmatpush1.bf16.msra.mxu0 %v761
      %827 = vmatprep.subr.bf16.mxu0 0
      %828 = vmatpush1.bf16.msra.mxu0 %v762
      %829 = vmatprep.subr.bf16.mxu0 0
      %830 = vmatpush1.bf16.msra.mxu0 %v763
      %831 = vmatprep.subr.bf16.mxu0 0
      %832 = vmatpush1.bf16.msra.mxu0 %v764
      %833 = vmatprep.subr.bf16.mxu0 0
      %834 = vmatpush1.bf16.msra.mxu0 %v765
      %835 = vmatprep.subr.bf16.mxu0 0
      %836 = vmatpush1.bf16.msra.mxu0 %v766
      %837 = vmatprep.subr.bf16.mxu0 0
      %838 = vmatpush1.bf16.msra.mxu0 %v767
      %839 = vmatprep.subr.bf16.mxu0 0
      %840 = vmatpush1.bf16.msra.mxu0 %v768
      %841 = vmatprep.subr.bf16.mxu0 0
      %842 = vmatpush1.bf16.msra.mxu0 %v769
      %843 = vmatprep.subr.bf16.mxu0 0
      %844 = vmatpush1.bf16.msra.mxu0 %v770
      %845 = vmatprep.subr.bf16.mxu0 0
      %846 = vmatpush1.bf16.msra.mxu0 %v771
      %847 = vmatprep.subr.bf16.mxu0 0
      %848 = vmatpush1.bf16.msra.mxu0 %v772
      %849 = vmatprep.subr.bf16.mxu0 0
      %850 = vmatpush1.bf16.msra.mxu0 %v773
      %851 = vmatprep.subr.bf16.mxu0 0
      %852 = vmatpush1.bf16.msra.mxu0 %v774
      %853 = vmatprep.subr.bf16.mxu0 0
      %854 = vmatpush1.bf16.msra.mxu0 %v775
      %855 = vmatprep.subr.bf16.mxu0 0
      %856 = vmatpush1.bf16.msra.mxu0 %v776
      %857 = vmatprep.mubr.bf16.mxu0 %v506
      %858 = vmatmul.mubr.bf16.gmra.mrb[0].mxu0 %v505
      %v859 = vpop.f32.mrb[0].mxu0
      %v860 = vadd.f32 %v311, %v859
      %v861 = vpop.f32.mrb[0].mxu0
      %v862 = vpop.f32.mrb[0].mxu0
      %v863 = vadd.f32 %v311, %v862
      %v864 = vpop.f32.mrb[0].mxu0
      %865 = vmatprep.mubr.bf16.mxu0 %v510
      %866 = vmatmul.mubr.bf16.gmra.mrb[0].mxu0 %v509
      %v867 = vpop.f32.mrb[0].mxu0
      %v868 = vadd.f32 %v311, %v867
      %v869 = vpop.f32.mrb[0].mxu0
      %v870 = vpop.f32.mrb[0].mxu0
      %v871 = vadd.f32 %v311, %v870
      %v872 = vpop.f32.mrb[0].mxu0
      %873 = vmatprep.mubr.bf16.mxu0 %v514
      %874 = vmatmul.mubr.bf16.gmra.mrb[0].mxu0 %v513
      %v875 = vpop.f32.mrb[0].mxu0
      %v876 = vadd.f32 %v311, %v875
      %v877 = vpop.f32.mrb[0].mxu0
      %v878 = vpop.f32.mrb[0].mxu0
      %v879 = vadd.f32 %v311, %v878
      %v880 = vpop.f32.mrb[0].mxu0
      %881 = vmatprep.mubr.bf16.mxu0 %v518
      %882 = vmatmul.mubr.bf16.gmra.mrb[0].mxu0 %v517
      %v883 = vpop.f32.mrb[0].mxu0
      %v884 = vadd.f32 %v311, %v883
      %v885 = vpop.f32.mrb[0].mxu0
      %v886 = vpop.f32.mrb[0].mxu0
      %v887 = vadd.f32 %v311, %v886
      %v888 = vpop.f32.mrb[0].mxu0
      %889 = vmatprep.mubr.bf16.mxu0 %v522
      %890 = vmatmul.mubr.bf16.gmra.mrb[0].mxu0 %v521
      %v891 = vpop.f32.mrb[0].mxu0
      %v892 = vadd.f32 %v311, %v891
      %v893 = vpop.f32.mrb[0].mxu0
      %v894 = vpop.f32.mrb[0].mxu0
      %v895 = vadd.f32 %v311, %v894
      %v896 = vpop.f32.mrb[0].mxu0
      %897 = vmatprep.mubr.bf16.mxu0 %v526
      %898 = vmatmul.mubr.bf16.gmra.mrb[0].mxu0 %v525
      %v899 = vpop.f32.mrb[0].mxu0
      %v900 = vadd.f32 %v311, %v899
      %v901 = vpop.f32.mrb[0].mxu0
      %v902 = vpop.f32.mrb[0].mxu0
      %v903 = vadd.f32 %v311, %v902
      %v904 = vpop.f32.mrb[0].mxu0
      %905 = vmatprep.mubr.bf16.mxu0 %v530
      %906 = vmatmul.mubr.bf16.gmra.mrb[0].mxu0 %v529
      %v907 = vpop.f32.mrb[0].mxu0
      %v908 = vadd.f32 %v311, %v907
      %v909 = vpop.f32.mrb[0].mxu0
      %v910 = vpop.f32.mrb[0].mxu0
      %v911 = vadd.f32 %v311, %v910
      %v912 = vpop.f32.mrb[0].mxu0
      %913 = vmatprep.mubr.bf16.mxu0 %v534
      %914 = vmatmul.mubr.bf16.gmra.mrb[0].mxu0 %v533
      %v915 = vpop.f32.mrb[0].mxu0
      %v916 = vadd.f32 %v311, %v915
      %v917 = vpop.f32.mrb[0].mxu0
      %v918 = vpop.f32.mrb[0].mxu0
      %v919 = vadd.f32 %v311, %v918
      %v920 = vpop.f32.mrb[0].mxu0
      %921 = vmatprep.mubr.bf16.mxu0 %v538
      %922 = vmatmul.mubr.bf16.gmra.mrb[0].mxu0 %v537
      %v923 = vpop.f32.mrb[0].mxu0
      %v924 = vadd.f32 %v311, %v923
      %v925 = vpop.f32.mrb[0].mxu0
      %v926 = vpop.f32.mrb[0].mxu0
      %v927 = vadd.f32 %v311, %v926
      %v928 = vpop.f32.mrb[0].mxu0
      %929 = vmatprep.mubr.bf16.mxu0 %v542
      %930 = vmatmul.mubr.bf16.gmra.mrb[0].mxu0 %v541
      %v931 = vpop.f32.mrb[0].mxu0
      %v932 = vadd.f32 %v311, %v931
      %v933 = vpop.f32.mrb[0].mxu0
      %v934 = vpop.f32.mrb[0].mxu0
      %v935 = vadd.f32 %v311, %v934
      %v936 = vpop.f32.mrb[0].mxu0
      %937 = vmatprep.mubr.bf16.mxu0 %v546
      %938 = vmatmul.mubr.bf16.gmra.mrb[0].mxu0 %v545
      %v939 = vpop.f32.mrb[0].mxu0
      %v940 = vadd.f32 %v311, %v939
      %v941 = vpop.f32.mrb[0].mxu0
      %v942 = vpop.f32.mrb[0].mxu0
      %v943 = vadd.f32 %v311, %v942
      %v944 = vpop.f32.mrb[0].mxu0
      %945 = vmatprep.mubr.bf16.mxu0 %v550
      %946 = vmatmul.mubr.bf16.gmra.mrb[0].mxu0 %v549
      %v947 = vpop.f32.mrb[0].mxu0
      %v948 = vadd.f32 %v311, %v947
      %v949 = vpop.f32.mrb[0].mxu0
      %v950 = vpop.f32.mrb[0].mxu0
      %v951 = vadd.f32 %v311, %v950
      %v952 = vpop.f32.mrb[0].mxu0
      %953 = vmatprep.mubr.bf16.mxu0 %v554
      %954 = vmatmul.mubr.bf16.gmra.mrb[0].mxu0 %v553
      %v955 = vpop.f32.mrb[0].mxu0
      %v956 = vadd.f32 %v311, %v955
      %v957 = vpop.f32.mrb[0].mxu0
      %v958 = vpop.f32.mrb[0].mxu0
      %v959 = vadd.f32 %v311, %v958
      %v960 = vpop.f32.mrb[0].mxu0
      %961 = vmatprep.mubr.bf16.mxu0 %v558
      %962 = vmatmul.mubr.bf16.gmra.mrb[0].mxu0 %v557
      %v963 = vpop.f32.mrb[0].mxu0
      %v964 = vadd.f32 %v311, %v963
      %v965 = vpop.f32.mrb[0].mxu0
      %v966 = vpop.f32.mrb[0].mxu0
      %v967 = vadd.f32 %v311, %v966
      %v968 = vpop.f32.mrb[0].mxu0
      %969 = vmatprep.mubr.bf16.mxu0 %v562
      %970 = vmatmul.mubr.bf16.gmra.mrb[0].mxu0 %v561
      %v971 = vpop.f32.mrb[0].mxu0
      %v972 = vadd.f32 %v311, %v971
      %v973 = vpop.f32.mrb[0].mxu0
      %v974 = vpop.f32.mrb[0].mxu0
      %v975 = vadd.f32 %v311, %v974
      %v976 = vpop.f32.mrb[0].mxu0
      %977 = vmatprep.mubr.bf16.mxu0 %v566
      %978 = vmatmul.mubr.bf16.gmra.mrb[0].mxu0 %v565
      %v979 = vpop.f32.mrb[0].mxu0
      %v980 = vadd.f32 %v311, %v979
      %v981 = vpop.f32.mrb[0].mxu0
      %v982 = vpop.f32.mrb[0].mxu0
      %v983 = vadd.f32 %v311, %v982
      %v984 = vpop.f32.mrb[0].mxu0
      %985 = vdwg.mxu0
      %986 = vmatprep.subr.bf16.mxu0 0
      %987 = vmatpush1.bf16.msra.mxu0 %v777
      %988 = vmatprep.subr.bf16.mxu0 0
      %989 = vmatpush1.bf16.msra.mxu0 %v778
      %990 = vmatprep.subr.bf16.mxu0 0
      %991 = vmatpush1.bf16.msra.mxu0 %v779
      %992 = vmatprep.subr.bf16.mxu0 0
      %993 = vmatpush1.bf16.msra.mxu0 %v780
      %994 = vmatprep.subr.bf16.mxu0 0
      %995 = vmatpush1.bf16.msra.mxu0 %v781
      %996 = vmatprep.subr.bf16.mxu0 0
      %997 = vmatpush1.bf16.msra.mxu0 %v782
      %998 = vmatprep.subr.bf16.mxu0 0
      %999 = vmatpush1.bf16.msra.mxu0 %v783
      %1000 = vmatprep.subr.bf16.mxu0 0
      %1001 = vmatpush1.bf16.msra.mxu0 %v784
      %1002 = vmatprep.subr.bf16.mxu0 0
      %1003 = vmatpush1.bf16.msra.mxu0 %v785
      %1004 = vmatprep.subr.bf16.mxu0 0
      %1005 = vmatpush1.bf16.msra.mxu0 %v786
      %1006 = vmatprep.subr.bf16.mxu0 0
      %1007 = vmatpush1.bf16.msra.mxu0 %v787
      %1008 = vmatprep.subr.bf16.mxu0 0
      %1009 = vmatpush1.bf16.msra.mxu0 %v788
      %1010 = vmatprep.subr.bf16.mxu0 0
      %1011 = vmatpush1.bf16.msra.mxu0 %v789
      %1012 = vmatprep.subr.bf16.mxu0 0
      %1013 = vmatpush1.bf16.msra.mxu0 %v790
      %1014 = vmatprep.subr.bf16.mxu0 0
      %1015 = vmatpush1.bf16.msra.mxu0 %v791
      %1016 = vmatprep.subr.bf16.mxu0 0
      %1017 = vmatpush1.bf16.msra.mxu0 %v792
      %1018 = vmatprep.mubr.bf16.mxu0 %v508
      %1019 = vmatmul.mubr.bf16.gmra.mrb[0].mxu0 %v507
      %v1020 = vpop.f32.mrb[0].mxu0
      %v1021 = vadd.f32 %v860, %v1020
      %v1022 = vpop.f32.mrb[0].mxu0
      %v1023 = vpop.f32.mrb[0].mxu0
      %v1024 = vadd.f32 %v863, %v1023
      %v1025 = vpop.f32.mrb[0].mxu0
      %1026 = vmatprep.mubr.bf16.mxu0 %v512
      %1027 = vmatmul.mubr.bf16.gmra.mrb[0].mxu0 %v511
      %v1028 = vpop.f32.mrb[0].mxu0
      %v1029 = vadd.f32 %v868, %v1028
      %v1030 = vpop.f32.mrb[0].mxu0
      %v1031 = vpop.f32.mrb[0].mxu0
      %v1032 = vadd.f32 %v871, %v1031
      %v1033 = vpop.f32.mrb[0].mxu0
      %1034 = vmatprep.mubr.bf16.mxu0 %v516
      %1035 = vmatmul.mubr.bf16.gmra.mrb[0].mxu0 %v515
      %v1036 = vpop.f32.mrb[0].mxu0
      %v1037 = vadd.f32 %v876, %v1036
      %v1038 = vpop.f32.mrb[0].mxu0
      %v1039 = vpop.f32.mrb[0].mxu0
      %v1040 = vadd.f32 %v879, %v1039
      %v1041 = vpop.f32.mrb[0].mxu0
      %1042 = vmatprep.mubr.bf16.mxu0 %v520
      %1043 = vmatmul.mubr.bf16.gmra.mrb[0].mxu0 %v519
      %v1044 = vpop.f32.mrb[0].mxu0
      %v1045 = vadd.f32 %v884, %v1044
      %v1046 = vpop.f32.mrb[0].mxu0
      %v1047 = vpop.f32.mrb[0].mxu0
      %v1048 = vadd.f32 %v887, %v1047
      %v1049 = vpop.f32.mrb[0].mxu0
      %1050 = vmatprep.mubr.bf16.mxu0 %v524
      %1051 = vmatmul.mubr.bf16.gmra.mrb[0].mxu0 %v523
      %v1052 = vpop.f32.mrb[0].mxu0
      %v1053 = vadd.f32 %v892, %v1052
      %v1054 = vpop.f32.mrb[0].mxu0
      %v1055 = vpop.f32.mrb[0].mxu0
      %v1056 = vadd.f32 %v895, %v1055
      %v1057 = vpop.f32.mrb[0].mxu0
      %1058 = vmatprep.mubr.bf16.mxu0 %v528
      %1059 = vmatmul.mubr.bf16.gmra.mrb[0].mxu0 %v527
      %v1060 = vpop.f32.mrb[0].mxu0
      %v1061 = vadd.f32 %v900, %v1060
      %v1062 = vpop.f32.mrb[0].mxu0
      %v1063 = vpop.f32.mrb[0].mxu0
      %v1064 = vadd.f32 %v903, %v1063
      %v1065 = vpop.f32.mrb[0].mxu0
      %1066 = vmatprep.mubr.bf16.mxu0 %v532
      %1067 = vmatmul.mubr.bf16.gmra.mrb[0].mxu0 %v531
      %v1068 = vpop.f32.mrb[0].mxu0
      %v1069 = vadd.f32 %v908, %v1068
      %v1070 = vpop.f32.mrb[0].mxu0
      %v1071 = vpop.f32.mrb[0].mxu0
      %v1072 = vadd.f32 %v911, %v1071
      %v1073 = vpop.f32.mrb[0].mxu0
      %1074 = vmatprep.mubr.bf16.mxu0 %v536
      %1075 = vmatmul.mubr.bf16.gmra.mrb[0].mxu0 %v535
      %v1076 = vpop.f32.mrb[0].mxu0
      %v1077 = vadd.f32 %v916, %v1076
      %v1078 = vpop.f32.mrb[0].mxu0
      %v1079 = vpop.f32.mrb[0].mxu0
      %v1080 = vadd.f32 %v919, %v1079
      %v1081 = vpop.f32.mrb[0].mxu0
      %1082 = vmatprep.mubr.bf16.mxu0 %v540
      %1083 = vmatmul.mubr.bf16.gmra.mrb[0].mxu0 %v539
      %v1084 = vpop.f32.mrb[0].mxu0
      %v1085 = vadd.f32 %v924, %v1084
      %v1086 = vpop.f32.mrb[0].mxu0
      %v1087 = vpop.f32.mrb[0].mxu0
      %v1088 = vadd.f32 %v927, %v1087
      %v1089 = vpop.f32.mrb[0].mxu0
      %1090 = vmatprep.mubr.bf16.mxu0 %v544
      %1091 = vmatmul.mubr.bf16.gmra.mrb[0].mxu0 %v543
      %v1092 = vpop.f32.mrb[0].mxu0
      %v1093 = vadd.f32 %v932, %v1092
      %v1094 = vpop.f32.mrb[0].mxu0
      %v1095 = vpop.f32.mrb[0].mxu0
      %v1096 = vadd.f32 %v935, %v1095
      %v1097 = vpop.f32.mrb[0].mxu0
      %1098 = vmatprep.mubr.bf16.mxu0 %v548
      %1099 = vmatmul.mubr.bf16.gmra.mrb[0].mxu0 %v547
      %v1100 = vpop.f32.mrb[0].mxu0
      %v1101 = vadd.f32 %v940, %v1100
      %v1102 = vpop.f32.mrb[0].mxu0
      %v1103 = vpop.f32.mrb[0].mxu0
      %v1104 = vadd.f32 %v943, %v1103
      %v1105 = vpop.f32.mrb[0].mxu0
      %1106 = vmatprep.mubr.bf16.mxu0 %v552
      %1107 = vmatmul.mubr.bf16.gmra.mrb[0].mxu0 %v551
      %v1108 = vpop.f32.mrb[0].mxu0
      %v1109 = vadd.f32 %v948, %v1108
      %v1110 = vpop.f32.mrb[0].mxu0
      %v1111 = vpop.f32.mrb[0].mxu0
      %v1112 = vadd.f32 %v951, %v1111
      %v1113 = vpop.f32.mrb[0].mxu0
      %1114 = vmatprep.mubr.bf16.mxu0 %v556
      %1115 = vmatmul.mubr.bf16.gmra.mrb[0].mxu0 %v555
      %v1116 = vpop.f32.mrb[0].mxu0
      %v1117 = vadd.f32 %v956, %v1116
      %v1118 = vpop.f32.mrb[0].mxu0
      %v1119 = vpop.f32.mrb[0].mxu0
      %v1120 = vadd.f32 %v959, %v1119
      %v1121 = vpop.f32.mrb[0].mxu0
      %1122 = vmatprep.mubr.bf16.mxu0 %v560
      %1123 = vmatmul.mubr.bf16.gmra.mrb[0].mxu0 %v559
      %v1124 = vpop.f32.mrb[0].mxu0
      %v1125 = vadd.f32 %v964, %v1124
      %v1126 = vpop.f32.mrb[0].mxu0
      %v1127 = vpop.f32.mrb[0].mxu0
      %v1128 = vadd.f32 %v967, %v1127
      %v1129 = vpop.f32.mrb[0].mxu0
      %1130 = vmatprep.mubr.bf16.mxu0 %v564
      %1131 = vmatmul.mubr.bf16.gmra.mrb[0].mxu0 %v563
      %v1132 = vpop.f32.mrb[0].mxu0
      %v1133 = vadd.f32 %v972, %v1132
      %v1134 = vpop.f32.mrb[0].mxu0
      %v1135 = vpop.f32.mrb[0].mxu0
      %v1136 = vadd.f32 %v975, %v1135
      %v1137 = vpop.f32.mrb[0].mxu0
      %1138 = vmatprep.mubr.bf16.mxu0 %v568
      %1139 = vmatmul.mubr.bf16.gmra.mrb[0].mxu0 %v567
      %v1140 = vpop.f32.mrb[0].mxu0
      %v1141 = vadd.f32 %v980, %v1140
      %v1142 = vpop.f32.mrb[0].mxu0
      %v1143 = vpop.f32.mrb[0].mxu0
      %v1144 = vadd.f32 %v983, %v1143
      %v1145 = vpop.f32.mrb[0].mxu0
      %1146 = vdwg.mxu0
      %v1147 = vmax.f32 %v1021, 0.0
      %v1148 = vmax.f32 %v1024, 0.0
      %v1149 = vmax.f32 %v1029, 0.0
      %v1150 = vmax.f32 %v1032, 0.0
      %v1151 = vmax.f32 %v1037, 0.0
      %v1152 = vmax.f32 %v1040, 0.0
      %v1153 = vmax.f32 %v1045, 0.0
      %v1154 = vmax.f32 %v1048, 0.0
      %v1155 = vmax.f32 %v1053, 0.0
      %v1156 = vmax.f32 %v1056, 0.0
      %v1157 = vmax.f32 %v1061, 0.0
      %v1158 = vmax.f32 %v1064, 0.0
      %v1159 = vmax.f32 %v1069, 0.0
      %v1160 = vmax.f32 %v1072, 0.0
      %v1161 = vmax.f32 %v1077, 0.0
      %v1162 = vmax.f32 %v1080, 0.0
      %v1163 = vmax.f32 %v1085, 0.0
      %v1164 = vmax.f32 %v1088, 0.0
      %v1165 = vmax.f32 %v1093, 0.0
      %v1166 = vmax.f32 %v1096, 0.0
      %v1167 = vmax.f32 %v1101, 0.0
      %v1168 = vmax.f32 %v1104, 0.0
      %v1169 = vmax.f32 %v1109, 0.0
      %v1170 = vmax.f32 %v1112, 0.0
      %v1171 = vmax.f32 %v1117, 0.0
      %v1172 = vmax.f32 %v1120, 0.0
      %v1173 = vmax.f32 %v1125, 0.0
      %v1174 = vmax.f32 %v1128, 0.0
      %v1175 = vmax.f32 %v1133, 0.0
      %v1176 = vmax.f32 %v1136, 0.0
      %v1177 = vmax.f32 %v1141, 0.0
      %v1178 = vmax.f32 %v1144, 0.0
      %v1179 = vpack.c.bf16 %v1148, %v1147
      %v1180 = vpack.c.bf16 %v1150, %v1149
      %v1181 = vpack.c.bf16 %v1152, %v1151
      %v1182 = vpack.c.bf16 %v1154, %v1153
      %v1183 = vpack.c.bf16 %v1156, %v1155
      %v1184 = vpack.c.bf16 %v1158, %v1157
      %v1185 = vpack.c.bf16 %v1160, %v1159
      %v1186 = vpack.c.bf16 %v1162, %v1161
      %v1187 = vpack.c.bf16 %v1164, %v1163
      %v1188 = vpack.c.bf16 %v1166, %v1165
      %v1189 = vpack.c.bf16 %v1168, %v1167
      %v1190 = vpack.c.bf16 %v1170, %v1169
      %v1191 = vpack.c.bf16 %v1172, %v1171
      %v1192 = vpack.c.bf16 %v1174, %v1173
      %v1193 = vpack.c.bf16 %v1176, %v1175
      %v1194 = vpack.c.bf16 %v1178, %v1177
      %v1211 = vunpack.c.l.b16 %v1179
      %v1212 = vunpack.c.h.b16 %v1179
      %v1213 = vunpack.c.l.b16 %v1180
      %v1214 = vunpack.c.h.b16 %v1180
      %v1215 = vunpack.c.l.b16 %v1181
      %v1216 = vunpack.c.h.b16 %v1181
      %v1217 = vunpack.c.l.b16 %v1182
      %v1218 = vunpack.c.h.b16 %v1182
      %v1219 = vunpack.c.l.b16 %v1183
      %v1220 = vunpack.c.h.b16 %v1183
      %v1221 = vunpack.c.l.b16 %v1184
      %v1222 = vunpack.c.h.b16 %v1184
      %v1223 = vunpack.c.l.b16 %v1185
      %v1224 = vunpack.c.h.b16 %v1185
      %v1225 = vunpack.c.l.b16 %v1186
      %v1226 = vunpack.c.h.b16 %v1186
      %v1227 = vunpack.c.l.b16 %v1187
      %v1228 = vunpack.c.h.b16 %v1187
      %v1229 = vunpack.c.l.b16 %v1188
      %v1230 = vunpack.c.h.b16 %v1188
      %v1231 = vunpack.c.l.b16 %v1189
      %v1232 = vunpack.c.h.b16 %v1189
      %v1233 = vunpack.c.l.b16 %v1190
      %v1234 = vunpack.c.h.b16 %v1190
      %v1235 = vunpack.c.l.b16 %v1191
      %v1236 = vunpack.c.h.b16 %v1191
      %v1237 = vunpack.c.l.b16 %v1192
      %v1238 = vunpack.c.h.b16 %v1192
      %v1239 = vunpack.c.l.b16 %v1193
      %v1240 = vunpack.c.h.b16 %v1193
      %v1241 = vunpack.c.l.b16 %v1194
      %v1242 = vunpack.c.h.b16 %v1194
      %v1243 = vpack.c.b16 %v1211, %v1211
      %v1244 = vpack.c.b16 %v1212, %v1212
      %v1245 = vpack.c.b16 %v1213, %v1213
      %v1246 = vpack.c.b16 %v1214, %v1214
      %v1247 = vpack.c.b16 %v1215, %v1215
      %v1248 = vpack.c.b16 %v1216, %v1216
      %v1249 = vpack.c.b16 %v1217, %v1217
      %v1250 = vpack.c.b16 %v1218, %v1218
      %v1251 = vpack.c.b16 %v1219, %v1219
      %v1252 = vpack.c.b16 %v1220, %v1220
      %v1253 = vpack.c.b16 %v1221, %v1221
      %v1254 = vpack.c.b16 %v1222, %v1222
      %v1255 = vpack.c.b16 %v1223, %v1223
      %v1256 = vpack.c.b16 %v1224, %v1224
      %v1257 = vpack.c.b16 %v1225, %v1225
      %v1258 = vpack.c.b16 %v1226, %v1226
      %v1259 = vpack.c.b16 %v1227, %v1227
      %v1260 = vpack.c.b16 %v1228, %v1228
      %v1261 = vpack.c.b16 %v1229, %v1229
      %v1262 = vpack.c.b16 %v1230, %v1230
      %v1263 = vpack.c.b16 %v1231, %v1231
      %v1264 = vpack.c.b16 %v1232, %v1232
      %v1265 = vpack.c.b16 %v1233, %v1233
      %v1266 = vpack.c.b16 %v1234, %v1234
      %v1267 = vpack.c.b16 %v1235, %v1235
      %v1268 = vpack.c.b16 %v1236, %v1236
      %v1269 = vpack.c.b16 %v1237, %v1237
      %v1270 = vpack.c.b16 %v1238, %v1238
      %v1271 = vpack.c.b16 %v1239, %v1239
      %v1272 = vpack.c.b16 %v1240, %v1240
      %v1273 = vpack.c.b16 %v1241, %v1241
      %v1274 = vpack.c.b16 %v1242, %v1242
      %1307 = vst [vmem:[%s175] sm:$0xf] %v1243
      %1308 = vst [vmem:[%s175 + $0x4] sm:$0xf] %v1244
      %1309 = vst [vmem:[%s175 + $0x8] sm:$0xf] %v1245
      %1310 = vst [vmem:[%s175 + $0xc] sm:$0xf] %v1246
      %1311 = vst [vmem:[%s175 + $0x10] sm:$0xf] %v1247
      %1312 = vst [vmem:[%s175 + $0x14] sm:$0xf] %v1248
      %1313 = vst [vmem:[%s175 + $0x18] sm:$0xf] %v1249
      %1314 = vst [vmem:[%s175 + $0x1c] sm:$0xf] %v1250
      %1315 = vst [vmem:[%s175 + $0x20] sm:$0xf] %v1251
      %1316 = vst [vmem:[%s175 + $0x24] sm:$0xf] %v1252
      %1317 = vst [vmem:[%s175 + $0x28] sm:$0xf] %v1253
      %1318 = vst [vmem:[%s175 + $0x2c] sm:$0xf] %v1254
      %1319 = vst [vmem:[%s175 + $0x30] sm:$0xf] %v1255
      %1320 = vst [vmem:[%s175 + $0x34] sm:$0xf] %v1256
      %1321 = vst [vmem:[%s175 + $0x38] sm:$0xf] %v1257
      %1322 = vst [vmem:[%s175 + $0x3c] sm:$0xf] %v1258
      %1323 = vst [vmem:[%s175 + $0x40] sm:$0xf] %v1259
      %1324 = vst [vmem:[%s175 + $0x44] sm:$0xf] %v1260
      %1325 = vst [vmem:[%s175 + $0x48] sm:$0xf] %v1261
      %1326 = vst [vmem:[%s175 + $0x4c] sm:$0xf] %v1262
      %1327 = vst [vmem:[%s175 + $0x50] sm:$0xf] %v1263
      %1328 = vst [vmem:[%s175 + $0x54] sm:$0xf] %v1264
      %1329 = vst [vmem:[%s175 + $0x58] sm:$0xf] %v1265
      %1330 = vst [vmem:[%s175 + $0x5c] sm:$0xf] %v1266
      %1331 = vst [vmem:[%s175 + $0x60] sm:$0xf] %v1267
      %1332 = vst [vmem:[%s175 + $0x64] sm:$0xf] %v1268
      %1333 = vst [vmem:[%s175 + $0x68] sm:$0xf] %v1269
      %1334 = vst [vmem:[%s175 + $0x6c] sm:$0xf] %v1270
      %1335 = vst [vmem:[%s175 + $0x70] sm:$0xf] %v1271
      %1336 = vst [vmem:[%s175 + $0x74] sm:$0xf] %v1272
      %1337 = vst [vmem:[%s175 + $0x78] sm:$0xf] %v1273
      %1338 = vst [vmem:[%s175 + $0x7c] sm:$0xf] %v1274
      %s1339 = smul.u32 32, %s14
      %p1340 = scmp.lt.s32.totalorder %s1339, 63
      %s1341 = scalar_select %p1340, %s1339, 63
      %s1342 = smul.addr %s1341, 4
      %s1343 = scalar_lea.vmem %s3, %s1342
      // Predicated region
      $region33: #{forward.7} parent=31 // pred_check
        %p1344 = pneg %p100
      $region34: #{forward.7} parent=31 // pred_check_branch
        %1346 = sbr.rel (%p1344) target = $region36
      $region35: #{forward.7} parent=31 // pred_region
        %s1347 = smul.u32 32, %s14
      $region36: #{forward.7} parent=31 // pred_fallthru
        _
    $region32: #{forward.7} parent=5 // pred_fallthru
      _
    %p1348 = scmp.le.s32.totalorder 2, %s9
    // Predicated region
    $region37: #{forward.7} parent=5 // pred_check
      %p1349 = pneg %p1348
    $region38: #{forward.7} parent=5 // pred_check_branch
      %1351 = sbr.rel (%p1349) target = $region40
    $region39: #{forward.7} parent=5 // pred_region
      %s1352 = ssub.s32 %s9, 2
      // Predicated region
      $region41: #{forward.7} parent=39 // pred_check
        %p1353 = pneg %p106
      $region42: #{forward.7} parent=39 // pred_check_branch
        %1355 = sbr.rel (%p1353) target = $region44
      $region43: #{forward.7} parent=39 // pred_region
        %s1356 = smul.u32 32, %s15
        %p1357 = scmp.lt.s32.totalorder %s1356, 63
        %s1358 = scalar_select %p1357, %s1356, 63
        %s1359 = smul.addr %s1358, 4
        %s1360 = scalar_lea.vmem %s3, %s1359
      $region44: #{forward.7} parent=39 // pred_fallthru
        _
    $region40: #{forward.7} parent=5 // pred_fallthru
      _
  $region6: #{forward.7} parent=0 // loop_footer
    %s13 = sadd.s32 1, %s9
  $region7: #{forward.7} parent=0 // loop_footer_branch
    %8 = sbr.rel target = $region3
  $region8: #{forward.7} parent=0 // loop_exit
    _

// kernel: forward.8
$region0: #{forward.8}
  #allocation0 [shape = 'u32[]', space=smem, size = 0x4, offset = 0x4, fixed_abs, tag = 'smem constant byte address 0x4 - core index']
  #allocation1 [shape = 'u32[144,128]{1,0:T(1,128)}', space=vmem, size = 0x12000, scoped, tag = 'internal scratch']
  %s0 = inlined_call_operand.vmem [shape: bf16[2048,256], index: 0, kind: input, shape index: {}]
  %s1 = inlined_call_operand.vmem [shape: bf16[256,128], index: 1, kind: input, shape index: {}]
  %s2 = inlined_call_operand.vmem [shape: f32[1,128], index: 2, kind: input, shape index: {}]
  %s3 = inlined_call_operand.vmem [shape: bf16[2048,128], index: 3, kind: output, shape index: {}]
  %s4 = sld [smem:[#allocation0]]
  $region45: #{forward.8} parent=0
    _
  %s6 = ssub.s32 1, %s4
  %s7 = scalar_select 0, %s6, %s4
  loop: start=0, step=1, limit=6
  $region2: #{forward.8} parent=0 // loop_pre_header
    _
  $region3: #{forward.8} parent=0 // loop_header
    %s9 = sphi 0, %s13
    %p10 = scmp.ge.s32.totalorder %s9, 6
    %s19 = sphi 0, %s21
    %s22 = sphi 0, %s19
    %s23 = sphi 0, %s22
    %s39 = sphi 0, %s23
    %s43 = sphi 0, %s43
    %s45 = sphi 0, %s43
    %s46 = sphi 0, %s45
    %s60 = sphi 0, %s46
    %s64 = sphi 0, %s64
    %s66 = sphi 0, %s64
    %s67 = sphi 0, %s66
    %s81 = sphi 0, %s67
    %s87 = sphi 0, %s89
    %s90 = sphi 0, %s87
    %s91 = sphi 0, %s90
    %s107 = sphi 0, %s91
  $region4: #{forward.8} parent=0 // loop_header_branch
    %12 = sbr.rel (%p10) target = $region8
  $region5: #{forward.8} parent=0 // loop_body
    %s14 = ssub.s32 %s9, 1
    %s15 = ssub.s32 %s9, 2
    %s16 = sadd.s32 %s9, 1
    %s17 = ssub.s32 %s9, %s16
    %p18 = scmp.eq.s32.totalorder %s17, 0
    %s20 = sadd.s32 %s19, 1
    %s21 = scalar_select %p18, %s19, %s20
    %p24 = pneg %p18
    %p25 = scmp.eq.s32.totalorder %s9, 3
    %p26 = por %p24, %p25
    %p27 = scmp.ne.s32.totalorder %s19, %s22
    %p28 = scmp.eq.s32.totalorder %s9, 0
    %p29 = por %p27, %p28
    %p30 = scmp.ne.s32.totalorder %s19, %s22
    %p31 = scmp.eq.s32.totalorder %s14, 3
    %p32 = por %p30, %p31
    %p33 = scmp.ne.s32.totalorder %s22, %s23
    %p34 = scmp.eq.s32.totalorder %s14, 0
    %p35 = por %p33, %p34
    %p36 = scmp.ne.s32.totalorder %s22, %s23
    %p37 = scmp.eq.s32.totalorder %s15, 3
    %p38 = por %p36, %p37
    %p40 = scmp.ne.s32.totalorder %s23, %s39
    %p41 = scmp.eq.s32.totalorder %s15, 0
    %p42 = por %p40, %p41
    %s44 = sadd.s32 %s43, 1
    %p47 = scmp.eq.s32.totalorder %s9, 3
    %p48 = scmp.ne.s32.totalorder %s43, %s45
    %p49 = scmp.eq.s32.totalorder %s9, 0
    %p50 = por %p48, %p49
    %p51 = scmp.ne.s32.totalorder %s43, %s45
    %p52 = scmp.eq.s32.totalorder %s14, 3
    %p53 = por %p51, %p52
    %p54 = scmp.ne.s32.totalorder %s45, %s46
    %p55 = scmp.eq.s32.totalorder %s14, 0
    %p56 = por %p54, %p55
    %p57 = scmp.ne.s32.totalorder %s45, %s46
    %p58 = scmp.eq.s32.totalorder %s15, 3
    %p59 = por %p57, %p58
    %p61 = scmp.ne.s32.totalorder %s46, %s60
    %p62 = scmp.eq.s32.totalorder %s15, 0
    %p63 = por %p61, %p62
    %s65 = sadd.s32 %s64, 1
    %p68 = scmp.eq.s32.totalorder %s9, 3
    %p69 = scmp.ne.s32.totalorder %s64, %s66
    %p70 = scmp.eq.s32.totalorder %s9, 0
    %p71 = por %p69, %p70
    %p72 = scmp.ne.s32.totalorder %s64, %s66
    %p73 = scmp.eq.s32.totalorder %s14, 3
    %p74 = por %p72, %p73
    %p75 = scmp.ne.s32.totalorder %s66, %s67
    %p76 = scmp.eq.s32.totalorder %s14, 0
    %p77 = por %p75, %p76
    %p78 = scmp.ne.s32.totalorder %s66, %s67
    %p79 = scmp.eq.s32.totalorder %s15, 3
    %p80 = por %p78, %p79
    %p82 = scmp.ne.s32.totalorder %s67, %s81
    %p83 = scmp.eq.s32.totalorder %s15, 0
    %p84 = por %p82, %p83
    %s85 = ssub.s32 %s9, %s16
    %p86 = scmp.eq.s32.totalorder %s85, 0
    %s88 = sadd.s32 %s87, 1
    %s89 = scalar_select %p86, %s87, %s88
    %p92 = pneg %p86
    %p93 = scmp.eq.s32.totalorder %s9, 3
    %p94 = por %p92, %p93
    %p95 = scmp.ne.s32.totalorder %s87, %s90
    %p96 = scmp.eq.s32.totalorder %s9, 0
    %p97 = por %p95, %p96
    %p98 = scmp.ne.s32.totalorder %s87, %s90
    %p99 = scmp.eq.s32.totalorder %s14, 3
    %p100 = por %p98, %p99
    %p101 = scmp.ne.s32.totalorder %s90, %s91
    %p102 = scmp.eq.s32.totalorder %s14, 0
    %p103 = por %p101, %p102
    %p104 = scmp.ne.s32.totalorder %s90, %s91
    %p105 = scmp.eq.s32.totalorder %s15, 3
    %p106 = por %p104, %p105
    %p108 = scmp.ne.s32.totalorder %s91, %s107
    %p109 = scmp.eq.s32.totalorder %s15, 0
    %p110 = por %p108, %p109
    %p111 = scmp.le.s32.totalorder 1, %s9
    %p112 = scmp.lt.s32.totalorder %s9, 5
    %p113 = pnand %p111, %p112
    %p114 = pneg %p113
    // Predicated region
    $region9: #{forward.8} parent=5 // pred_check
      _
    $region10: #{forward.8} parent=5 // pred_check_branch
      %116 = sbr.rel (%p113) target = $region12
    $region11: #{forward.8} parent=5 // pred_region
      %s117 = ssub.s32 %s9, 1
      // Predicated region
      $region13: #{forward.8} parent=11 // pred_check
        %p118 = pneg %p56
      $region14: #{forward.8} parent=11 // pred_check_branch
        %120 = sbr.rel (%p118) target = $region16
      $region15: #{forward.8} parent=11 // pred_region
        _
      $region16: #{forward.8} parent=11 // pred_fallthru
        _
      // Predicated region
      $region17: #{forward.8} parent=11 // pred_check
        %p121 = pneg %p77
      $region18: #{forward.8} parent=11 // pred_check_branch
        %123 = sbr.rel (%p121) target = $region20
      $region19: #{forward.8} parent=11 // pred_region
        _
      $region20: #{forward.8} parent=11 // pred_fallthru
        _
    $region12: #{forward.8} parent=5 // pred_fallthru
      _
    %p124 = scmp.lt.s32.totalorder %s9, 4
    // Predicated region
    $region21: #{forward.8} parent=5 // pred_check
      %p125 = pneg %p124
    $region22: #{forward.8} parent=5 // pred_check_branch
      %127 = sbr.rel (%p125) target = $region24
    $region23: #{forward.8} parent=5 // pred_region
      // Predicated region
      $region25: #{forward.8} parent=23 // pred_check
        %p128 = pneg %p29
      $region26: #{forward.8} parent=23 // pred_check_branch
        %130 = sbr.rel (%p128) target = $region28
      $region27: #{forward.8} parent=23 // pred_region
        %s131 = smul.u32 64, %s9
        %p132 = scmp.lt.s32.totalorder %s131, 255
        %s133 = scalar_select %p132, %s131, 255
        %s134 = smul.addr %s133, 2
        %s135 = smul.addr %s134, 4
        %s136 = scalar_lea.vmem %s0, %s135
        %s137 = smul.u32 64, %s9
      $region28: #{forward.8} parent=23 // pred_fallthru
        _
    $region24: #{forward.8} parent=5 // pred_fallthru
      _
    %p138 = scmp.le.s32.totalorder 1, %s9
    %p139 = scmp.lt.s32.totalorder %s9, 5
    %p140 = pnand %p138, %p139
    %p141 = pneg %p140
    // Predicated region
    $region29: #{forward.8} parent=5 // pred_check
      _
    $region30: #{forward.8} parent=5 // pred_check_branch
      %143 = sbr.rel (%p140) target = $region32
    $region31: #{forward.8} parent=5 // pred_region
      %s144 = ssub.s32 %s9, 1
      %s145 = smul.u32 64, %s14
      %p146 = scmp.lt.s32.totalorder %s145, 255
      %s147 = scalar_select %p146, %s145, 255
      %s148 = smul.addr %s147, 2
      %s149 = smul.addr %s148, 4
      %s150 = scalar_lea.vmem %s0, %s149
      %p151 = pneg %p35
      %p152 = pneg %p32
      %p153 = pneg %p56
      %p154 = pneg %p53
      %p155 = pneg %p77
      %p156 = pneg %p74
      %p157 = pneg %p103
      %p158 = pneg %p100
      %s159 = smul.u32 64, %s14
      %p160 = scmp.lt.s32.totalorder %s159, 255
      %s161 = scalar_select %p160, %s159, 255
      %s162 = smul.addr %s161, 4
      %s163 = scalar_lea.vmem %s3, %s162
      %s164 = smul.u32 64, %s14
      %p165 = scmp.lt.s32.totalorder %s164, 255
      %s166 = scalar_select %p165, %s164, 255
      %s167 = smul.addr %s166, 2
      %s168 = smul.addr %s167, 4
      %s169 = scalar_lea.vmem %s0, %s168
      %s170 = smul.u32 64, %s14
      %s171 = smul.u32 64, %s14
      %p172 = scmp.lt.s32.totalorder %s171, 255
      %s173 = scalar_select %p172, %s171, 255
      %s174 = smul.addr %s173, 4
      %s175 = scalar_lea.vmem %s3, %s174
      %s176 = smul.u32 64, %s14
      %v178 = vld [vmem:[%s169] sm:$0xff]
      %v179 = vld [vmem:[%s169 + $0x8] sm:$0xff]
      %v180 = vld [vmem:[%s169 + $0x10] sm:$0xff]
      %v181 = vld [vmem:[%s169 + $0x18] sm:$0xff]
      %v182 = vld [vmem:[%s169 + $0x20] sm:$0xff]
      %v183 = vld [vmem:[%s169 + $0x28] sm:$0xff]
      %v184 = vld [vmem:[%s169 + $0x30] sm:$0xff]
      %v185 = vld [vmem:[%s169 + $0x38] sm:$0xff]
      %v186 = vld [vmem:[%s169 + $0x40] sm:$0xff]
      %v187 = vld [vmem:[%s169 + $0x48] sm:$0xff]
      %v188 = vld [vmem:[%s169 + $0x50] sm:$0xff]
      %v189 = vld [vmem:[%s169 + $0x58] sm:$0xff]
      %v190 = vld [vmem:[%s169 + $0x60] sm:$0xff]
      %v191 = vld [vmem:[%s169 + $0x68] sm:$0xff]
      %v192 = vld [vmem:[%s169 + $0x70] sm:$0xff]
      %v193 = vld [vmem:[%s169 + $0x78] sm:$0xff]
      %v194 = vld [vmem:[%s169 + $0x80] sm:$0xff]
      %v195 = vld [vmem:[%s169 + $0x88] sm:$0xff]
      %v196 = vld [vmem:[%s169 + $0x90] sm:$0xff]
      %v197 = vld [vmem:[%s169 + $0x98] sm:$0xff]
      %v198 = vld [vmem:[%s169 + $0xa0] sm:$0xff]
      %v199 = vld [vmem:[%s169 + $0xa8] sm:$0xff]
      %v200 = vld [vmem:[%s169 + $0xb0] sm:$0xff]
      %v201 = vld [vmem:[%s169 + $0xb8] sm:$0xff]
      %v202 = vld [vmem:[%s169 + $0xc0] sm:$0xff]
      %v203 = vld [vmem:[%s169 + $0xc8] sm:$0xff]
      %v204 = vld [vmem:[%s169 + $0xd0] sm:$0xff]
      %v205 = vld [vmem:[%s169 + $0xd8] sm:$0xff]
      %v206 = vld [vmem:[%s169 + $0xe0] sm:$0xff]
      %v207 = vld [vmem:[%s169 + $0xe8] sm:$0xff]
      %v208 = vld [vmem:[%s169 + $0xf0] sm:$0xff]
      %v209 = vld [vmem:[%s169 + $0xf8] sm:$0xff]
      %v210 = vld [vmem:[%s169 + $0x100] sm:$0xff]
      %v211 = vld [vmem:[%s169 + $0x108] sm:$0xff]
      %v212 = vld [vmem:[%s169 + $0x110] sm:$0xff]
      %v213 = vld [vmem:[%s169 + $0x118] sm:$0xff]
      %v214 = vld [vmem:[%s169 + $0x120] sm:$0xff]
      %v215 = vld [vmem:[%s169 + $0x128] sm:$0xff]
      %v216 = vld [vmem:[%s169 + $0x130] sm:$0xff]
      %v217 = vld [vmem:[%s169 + $0x138] sm:$0xff]
      %v218 = vld [vmem:[%s169 + $0x140] sm:$0xff]
      %v219 = vld [vmem:[%s169 + $0x148] sm:$0xff]
      %v220 = vld [vmem:[%s169 + $0x150] sm:$0xff]
      %v221 = vld [vmem:[%s169 + $0x158] sm:$0xff]
      %v222 = vld [vmem:[%s169 + $0x160] sm:$0xff]
      %v223 = vld [vmem:[%s169 + $0x168] sm:$0xff]
      %v224 = vld [vmem:[%s169 + $0x170] sm:$0xff]
      %v225 = vld [vmem:[%s169 + $0x178] sm:$0xff]
      %v226 = vld [vmem:[%s169 + $0x180] sm:$0xff]
      %v227 = vld [vmem:[%s169 + $0x188] sm:$0xff]
      %v228 = vld [vmem:[%s169 + $0x190] sm:$0xff]
      %v229 = vld [vmem:[%s169 + $0x198] sm:$0xff]
      %v230 = vld [vmem:[%s169 + $0x1a0] sm:$0xff]
      %v231 = vld [vmem:[%s169 + $0x1a8] sm:$0xff]
      %v232 = vld [vmem:[%s169 + $0x1b0] sm:$0xff]
      %v233 = vld [vmem:[%s169 + $0x1b8] sm:$0xff]
      %v234 = vld [vmem:[%s169 + $0x1c0] sm:$0xff]
      %v235 = vld [vmem:[%s169 + $0x1c8] sm:$0xff]
      %v236 = vld [vmem:[%s169 + $0x1d0] sm:$0xff]
      %v237 = vld [vmem:[%s169 + $0x1d8] sm:$0xff]
      %v238 = vld [vmem:[%s169 + $0x1e0] sm:$0xff]
      %v239 = vld [vmem:[%s169 + $0x1e8] sm:$0xff]
      %v240 = vld [vmem:[%s169 + $0x1f0] sm:$0xff]
      %v241 = vld [vmem:[%s169 + $0x1f8] sm:$0xff]
      %v242 = vld [vmem:[%s1] sm:$0xf]
      %v243 = vld [vmem:[%s1 + $0x4] sm:$0xf]
      %v244 = vld [vmem:[%s1 + $0x8] sm:$0xf]
      %v245 = vld [vmem:[%s1 + $0xc] sm:$0xf]
      %v246 = vld [vmem:[%s1 + $0x10] sm:$0xf]
      %v247 = vld [vmem:[%s1 + $0x14] sm:$0xf]
      %v248 = vld [vmem:[%s1 + $0x18] sm:$0xf]
      %v249 = vld [vmem:[%s1 + $0x1c] sm:$0xf]
      %v250 = vld [vmem:[%s1 + $0x20] sm:$0xf]
      %v251 = vld [vmem:[%s1 + $0x24] sm:$0xf]
      %v252 = vld [vmem:[%s1 + $0x28] sm:$0xf]
      %v253 = vld [vmem:[%s1 + $0x2c] sm:$0xf]
      %v254 = vld [vmem:[%s1 + $0x30] sm:$0xf]
      %v255 = vld [vmem:[%s1 + $0x34] sm:$0xf]
      %v256 = vld [vmem:[%s1 + $0x38] sm:$0xf]
      %v257 = vld [vmem:[%s1 + $0x3c] sm:$0xf]
      %v258 = vld [vmem:[%s1 + $0x40] sm:$0xf]
      %v259 = vld [vmem:[%s1 + $0x44] sm:$0xf]
      %v260 = vld [vmem:[%s1 + $0x48] sm:$0xf]
      %v261 = vld [vmem:[%s1 + $0x4c] sm:$0xf]
      %v262 = vld [vmem:[%s1 + $0x50] sm:$0xf]
      %v263 = vld [vmem:[%s1 + $0x54] sm:$0xf]
      %v264 = vld [vmem:[%s1 + $0x58] sm:$0xf]
      %v265 = vld [vmem:[%s1 + $0x5c] sm:$0xf]
      %v266 = vld [vmem:[%s1 + $0x60] sm:$0xf]
      %v267 = vld [vmem:[%s1 + $0x64] sm:$0xf]
      %v268 = vld [vmem:[%s1 + $0x68] sm:$0xf]
      %v269 = vld [vmem:[%s1 + $0x6c] sm:$0xf]
      %v270 = vld [vmem:[%s1 + $0x70] sm:$0xf]
      %v271 = vld [vmem:[%s1 + $0x74] sm:$0xf]
      %v272 = vld [vmem:[%s1 + $0x78] sm:$0xf]
      %v273 = vld [vmem:[%s1 + $0x7c] sm:$0xf]
      %v274 = vld [vmem:[%s2] sm:$0x1]
      %v276 = vlaneseq
      %v277 = vshrl.u32 %v276, 7
      %v278 = vsub.s32 0, %v277
      %v279 = vrot.slane %v274, %v278
      %v345 = vunpack.c.l.b16 %v178
      %v346 = vunpack.c.h.b16 %v178
      %v347 = vunpack.c.l.b16 %v179
      %v348 = vunpack.c.h.b16 %v179
      %v349 = vunpack.c.l.b16 %v180
      %v350 = vunpack.c.h.b16 %v180
      %v351 = vunpack.c.l.b16 %v181
      %v352 = vunpack.c.h.b16 %v181
      %v353 = vunpack.c.l.b16 %v182
      %v354 = vunpack.c.h.b16 %v182
      %v355 = vunpack.c.l.b16 %v183
      %v356 = vunpack.c.h.b16 %v183
      %v357 = vunpack.c.l.b16 %v184
      %v358 = vunpack.c.h.b16 %v184
      %v359 = vunpack.c.l.b16 %v185
      %v360 = vunpack.c.h.b16 %v185
      %v361 = vunpack.c.l.b16 %v186
      %v362 = vunpack.c.h.b16 %v186
      %v363 = vunpack.c.l.b16 %v187
      %v364 = vunpack.c.h.b16 %v187
      %v365 = vunpack.c.l.b16 %v188
      %v366 = vunpack.c.h.b16 %v188
      %v367 = vunpack.c.l.b16 %v189
      %v368 = vunpack.c.h.b16 %v189
      %v369 = vunpack.c.l.b16 %v190
      %v370 = vunpack.c.h.b16 %v190
      %v371 = vunpack.c.l.b16 %v191
      %v372 = vunpack.c.h.b16 %v191
      %v373 = vunpack.c.l.b16 %v192
      %v374 = vunpack.c.h.b16 %v192
      %v375 = vunpack.c.l.b16 %v193
      %v376 = vunpack.c.h.b16 %v193
      %v377 = vunpack.c.l.b16 %v194
      %v378 = vunpack.c.h.b16 %v194
      %v379 = vunpack.c.l.b16 %v195
      %v380 = vunpack.c.h.b16 %v195
      %v381 = vunpack.c.l.b16 %v196
      %v382 = vunpack.c.h.b16 %v196
      %v383 = vunpack.c.l.b16 %v197
      %v384 = vunpack.c.h.b16 %v197
      %v385 = vunpack.c.l.b16 %v198
      %v386 = vunpack.c.h.b16 %v198
      %v387 = vunpack.c.l.b16 %v199
      %v388 = vunpack.c.h.b16 %v199
      %v389 = vunpack.c.l.b16 %v200
      %v390 = vunpack.c.h.b16 %v200
      %v391 = vunpack.c.l.b16 %v201
      %v392 = vunpack.c.h.b16 %v201
      %v393 = vunpack.c.l.b16 %v202
      %v394 = vunpack.c.h.b16 %v202
      %v395 = vunpack.c.l.b16 %v203
      %v396 = vunpack.c.h.b16 %v203
      %v397 = vunpack.c.l.b16 %v204
      %v398 = vunpack.c.h.b16 %v204
      %v399 = vunpack.c.l.b16 %v205
      %v400 = vunpack.c.h.b16 %v205
      %v401 = vunpack.c.l.b16 %v206
      %v402 = vunpack.c.h.b16 %v206
      %v403 = vunpack.c.l.b16 %v207
      %v404 = vunpack.c.h.b16 %v207
      %v405 = vunpack.c.l.b16 %v208
      %v406 = vunpack.c.h.b16 %v208
      %v407 = vunpack.c.l.b16 %v209
      %v408 = vunpack.c.h.b16 %v209
      %v409 = vunpack.c.l.b16 %v210
      %v410 = vunpack.c.h.b16 %v210
      %v411 = vunpack.c.l.b16 %v211
      %v412 = vunpack.c.h.b16 %v211
      %v413 = vunpack.c.l.b16 %v212
      %v414 = vunpack.c.h.b16 %v212
      %v415 = vunpack.c.l.b16 %v213
      %v416 = vunpack.c.h.b16 %v213
      %v417 = vunpack.c.l.b16 %v214
      %v418 = vunpack.c.h.b16 %v214
      %v419 = vunpack.c.l.b16 %v215
      %v420 = vunpack.c.h.b16 %v215
      %v421 = vunpack.c.l.b16 %v216
      %v422 = vunpack.c.h.b16 %v216
      %v423 = vunpack.c.l.b16 %v217
      %v424 = vunpack.c.h.b16 %v217
      %v425 = vunpack.c.l.b16 %v218
      %v426 = vunpack.c.h.b16 %v218
      %v427 = vunpack.c.l.b16 %v219
      %v428 = vunpack.c.h.b16 %v219
      %v429 = vunpack.c.l.b16 %v220
      %v430 = vunpack.c.h.b16 %v220
      %v431 = vunpack.c.l.b16 %v221
      %v432 = vunpack.c.h.b16 %v221
      %v433 = vunpack.c.l.b16 %v222
      %v434 = vunpack.c.h.b16 %v222
      %v435 = vunpack.c.l.b16 %v223
      %v436 = vunpack.c.h.b16 %v223
      %v437 = vunpack.c.l.b16 %v224
      %v438 = vunpack.c.h.b16 %v224
      %v439 = vunpack.c.l.b16 %v225
      %v440 = vunpack.c.h.b16 %v225
      %v441 = vunpack.c.l.b16 %v226
      %v442 = vunpack.c.h.b16 %v226
      %v443 = vunpack.c.l.b16 %v227
      %v444 = vunpack.c.h.b16 %v227
      %v445 = vunpack.c.l.b16 %v228
      %v446 = vunpack.c.h.b16 %v228
      %v447 = vunpack.c.l.b16 %v229
      %v448 = vunpack.c.h.b16 %v229
      %v449 = vunpack.c.l.b16 %v230
      %v450 = vunpack.c.h.b16 %v230
      %v451 = vunpack.c.l.b16 %v231
      %v452 = vunpack.c.h.b16 %v231
      %v453 = vunpack.c.l.b16 %v232
      %v454 = vunpack.c.h.b16 %v232
      %v455 = vunpack.c.l.b16 %v233
      %v456 = vunpack.c.h.b16 %v233
      %v457 = vunpack.c.l.b16 %v234
      %v458 = vunpack.c.h.b16 %v234
      %v459 = vunpack.c.l.b16 %v235
      %v460 = vunpack.c.h.b16 %v235
      %v461 = vunpack.c.l.b16 %v236
      %v462 = vunpack.c.h.b16 %v236
      %v463 = vunpack.c.l.b16 %v237
      %v464 = vunpack.c.h.b16 %v237
      %v465 = vunpack.c.l.b16 %v238
      %v466 = vunpack.c.h.b16 %v238
      %v467 = vunpack.c.l.b16 %v239
      %v468 = vunpack.c.h.b16 %v239
      %v469 = vunpack.c.l.b16 %v240
      %v470 = vunpack.c.h.b16 %v240
      %v471 = vunpack.c.l.b16 %v241
      %v472 = vunpack.c.h.b16 %v241
      %v473 = vpack.c.b16 %v347, %v345
      %v474 = vpack.c.b16 %v348, %v346
      %v475 = vpack.c.b16 %v351, %v349
      %v476 = vpack.c.b16 %v352, %v350
      %v477 = vpack.c.b16 %v355, %v353
      %v478 = vpack.c.b16 %v356, %v354
      %v479 = vpack.c.b16 %v359, %v357
      %v480 = vpack.c.b16 %v360, %v358
      %v481 = vpack.c.b16 %v363, %v361
      %v482 = vpack.c.b16 %v364, %v362
      %v483 = vpack.c.b16 %v367, %v365
      %v484 = vpack.c.b16 %v368, %v366
      %v485 = vpack.c.b16 %v371, %v369
      %v486 = vpack.c.b16 %v372, %v370
      %v487 = vpack.c.b16 %v375, %v373
      %v488 = vpack.c.b16 %v376, %v374
      %v489 = vpack.c.b16 %v379, %v377
      %v490 = vpack.c.b16 %v380, %v378
      %v491 = vpack.c.b16 %v383, %v381
      %v492 = vpack.c.b16 %v384, %v382
      %v493 = vpack.c.b16 %v387, %v385
      %v494 = vpack.c.b16 %v388, %v386
      %v495 = vpack.c.b16 %v391, %v389
      %v496 = vpack.c.b16 %v392, %v390
      %v497 = vpack.c.b16 %v395, %v393
      %v498 = vpack.c.b16 %v396, %v394
      %v499 = vpack.c.b16 %v399, %v397
      %v500 = vpack.c.b16 %v400, %v398
      %v501 = vpack.c.b16 %v403, %v401
      %v502 = vpack.c.b16 %v404, %v402
      %v503 = vpack.c.b16 %v407, %v405
      %v504 = vpack.c.b16 %v408, %v406
      %v505 = vpack.c.b16 %v411, %v409
      %v506 = vpack.c.b16 %v412, %v410
      %v507 = vpack.c.b16 %v415, %v413
      %v508 = vpack.c.b16 %v416, %v414
      %v509 = vpack.c.b16 %v419, %v417
      %v510 = vpack.c.b16 %v420, %v418
      %v511 = vpack.c.b16 %v423, %v421
      %v512 = vpack.c.b16 %v424, %v422
      %v513 = vpack.c.b16 %v427, %v425
      %v514 = vpack.c.b16 %v428, %v426
      %v515 = vpack.c.b16 %v431, %v429
      %v516 = vpack.c.b16 %v432, %v430
      %v517 = vpack.c.b16 %v435, %v433
      %v518 = vpack.c.b16 %v436, %v434
      %v519 = vpack.c.b16 %v439, %v437
      %v520 = vpack.c.b16 %v440, %v438
      %v521 = vpack.c.b16 %v443, %v441
      %v522 = vpack.c.b16 %v444, %v442
      %v523 = vpack.c.b16 %v447, %v445
      %v524 = vpack.c.b16 %v448, %v446
      %v525 = vpack.c.b16 %v451, %v449
      %v526 = vpack.c.b16 %v452, %v450
      %v527 = vpack.c.b16 %v455, %v453
      %v528 = vpack.c.b16 %v456, %v454
      %v529 = vpack.c.b16 %v459, %v457
      %v530 = vpack.c.b16 %v460, %v458
      %v531 = vpack.c.b16 %v463, %v461
      %v532 = vpack.c.b16 %v464, %v462
      %v533 = vpack.c.b16 %v467, %v465
      %v534 = vpack.c.b16 %v468, %v466
      %v535 = vpack.c.b16 %v471, %v469
      %v536 = vpack.c.b16 %v472, %v470
      %v633 = vunpack.c.l.b16 %v242
      %v634 = vunpack.c.l.b16 %v243
      %v635 = vunpack.c.l.b16 %v244
      %v636 = vunpack.c.l.b16 %v245
      %v637 = vunpack.c.l.b16 %v246
      %v638 = vunpack.c.l.b16 %v247
      %v639 = vunpack.c.l.b16 %v248
      %v640 = vunpack.c.l.b16 %v249
      %v641 = vunpack.c.l.b16 %v250
      %v642 = vunpack.c.l.b16 %v251
      %v643 = vunpack.c.l.b16 %v252
      %v644 = vunpack.c.l.b16 %v253
      %v645 = vunpack.c.l.b16 %v254
      %v646 = vunpack.c.l.b16 %v255
      %v647 = vunpack.c.l.b16 %v256
      %v648 = vunpack.c.l.b16 %v257
      %v649 = vunpack.c.l.b16 %v258
      %v650 = vunpack.c.l.b16 %v259
      %v651 = vunpack.c.l.b16 %v260
      %v652 = vunpack.c.l.b16 %v261
      %v653 = vunpack.c.l.b16 %v262
      %v654 = vunpack.c.l.b16 %v263
      %v655 = vunpack.c.l.b16 %v264
      %v656 = vunpack.c.l.b16 %v265
      %v657 = vunpack.c.l.b16 %v266
      %v658 = vunpack.c.l.b16 %v267
      %v659 = vunpack.c.l.b16 %v268
      %v660 = vunpack.c.l.b16 %v269
      %v661 = vunpack.c.l.b16 %v270
      %v662 = vunpack.c.l.b16 %v271
      %v663 = vunpack.c.l.b16 %v272
      %v664 = vunpack.c.l.b16 %v273
      %v665 = vpack.c.b16 %v634, %v633
      %v666 = vpack.c.b16 %v636, %v635
      %v667 = vpack.c.b16 %v638, %v637
      %v668 = vpack.c.b16 %v640, %v639
      %v669 = vpack.c.b16 %v642, %v641
      %v670 = vpack.c.b16 %v644, %v643
      %v671 = vpack.c.b16 %v646, %v645
      %v672 = vpack.c.b16 %v648, %v647
      %v673 = vpack.c.b16 %v650, %v649
      %v674 = vpack.c.b16 %v652, %v651
      %v675 = vpack.c.b16 %v654, %v653
      %v676 = vpack.c.b16 %v656, %v655
      %v677 = vpack.c.b16 %v658, %v657
      %v678 = vpack.c.b16 %v660, %v659
      %v679 = vpack.c.b16 %v662, %v661
      %v680 = vpack.c.b16 %v664, %v663
      %697 = vmatprep.subr.bf16.mxu0 0
      %698 = vmatpush1.bf16.msra.mxu0 %v665
      %699 = vmatprep.subr.bf16.mxu0 0
      %700 = vmatpush1.bf16.msra.mxu0 %v666
      %701 = vmatprep.subr.bf16.mxu0 0
      %702 = vmatpush1.bf16.msra.mxu0 %v667
      %703 = vmatprep.subr.bf16.mxu0 0
      %704 = vmatpush1.bf16.msra.mxu0 %v668
      %705 = vmatprep.subr.bf16.mxu0 0
      %706 = vmatpush1.bf16.msra.mxu0 %v669
      %707 = vmatprep.subr.bf16.mxu0 0
      %708 = vmatpush1.bf16.msra.mxu0 %v670
      %709 = vmatprep.subr.bf16.mxu0 0
      %710 = vmatpush1.bf16.msra.mxu0 %v671
      %711 = vmatprep.subr.bf16.mxu0 0
      %712 = vmatpush1.bf16.msra.mxu0 %v672
      %713 = vmatprep.subr.bf16.mxu0 0
      %714 = vmatpush1.bf16.msra.mxu0 %v673
      %715 = vmatprep.subr.bf16.mxu0 0
      %716 = vmatpush1.bf16.msra.mxu0 %v674
      %717 = vmatprep.subr.bf16.mxu0 0
      %718 = vmatpush1.bf16.msra.mxu0 %v675
      %719 = vmatprep.subr.bf16.mxu0 0
      %720 = vmatpush1.bf16.msra.mxu0 %v676
      %721 = vmatprep.subr.bf16.mxu0 0
      %722 = vmatpush1.bf16.msra.mxu0 %v677
      %723 = vmatprep.subr.bf16.mxu0 0
      %724 = vmatpush1.bf16.msra.mxu0 %v678
      %725 = vmatprep.subr.bf16.mxu0 0
      %726 = vmatpush1.bf16.msra.mxu0 %v679
      %727 = vmatprep.subr.bf16.mxu0 0
      %728 = vmatpush1.bf16.msra.mxu0 %v680
      %729 = vmatprep.mubr.bf16.mxu0 %v474
      %730 = vmatmul.mubr.bf16.gmra.mrb[0].mxu0 %v473
      %v731 = vpop.f32.mrb[0].mxu0
      %v732 = vadd.f32 %v279, %v731
      %v733 = vpop.f32.mrb[0].mxu0
      %v734 = vpop.f32.mrb[0].mxu0
      %v735 = vadd.f32 %v279, %v734
      %v736 = vpop.f32.mrb[0].mxu0
      %737 = vmatprep.mubr.bf16.mxu0 %v476
      %738 = vmatmul.mubr.bf16.gmra.mrb[0].mxu0 %v475
      %v739 = vpop.f32.mrb[0].mxu0
      %v740 = vadd.f32 %v279, %v739
      %v741 = vpop.f32.mrb[0].mxu0
      %v742 = vpop.f32.mrb[0].mxu0
      %v743 = vadd.f32 %v279, %v742
      %v744 = vpop.f32.mrb[0].mxu0
      %745 = vmatprep.mubr.bf16.mxu0 %v478
      %746 = vmatmul.mubr.bf16.gmra.mrb[0].mxu0 %v477
      %v747 = vpop.f32.mrb[0].mxu0
      %v748 = vadd.f32 %v279, %v747
      %v749 = vpop.f32.mrb[0].mxu0
      %v750 = vpop.f32.mrb[0].mxu0
      %v751 = vadd.f32 %v279, %v750
      %v752 = vpop.f32.mrb[0].mxu0
      %753 = vmatprep.mubr.bf16.mxu0 %v480
      %754 = vmatmul.mubr.bf16.gmra.mrb[0].mxu0 %v479
      %v755 = vpop.f32.mrb[0].mxu0
      %v756 = vadd.f32 %v279, %v755
      %v757 = vpop.f32.mrb[0].mxu0
      %v758 = vpop.f32.mrb[0].mxu0
      %v759 = vadd.f32 %v279, %v758
      %v760 = vpop.f32.mrb[0].mxu0
      %761 = vmatprep.mubr.bf16.mxu0 %v482
      %762 = vmatmul.mubr.bf16.gmra.mrb[0].mxu0 %v481
      %v763 = vpop.f32.mrb[0].mxu0
      %v764 = vadd.f32 %v279, %v763
      %v765 = vpop.f32.mrb[0].mxu0
      %v766 = vpop.f32.mrb[0].mxu0
      %v767 = vadd.f32 %v279, %v766
      %v768 = vpop.f32.mrb[0].mxu0
      %769 = vmatprep.mubr.bf16.mxu0 %v484
      %770 = vmatmul.mubr.bf16.gmra.mrb[0].mxu0 %v483
      %v771 = vpop.f32.mrb[0].mxu0
      %v772 = vadd.f32 %v279, %v771
      %v773 = vpop.f32.mrb[0].mxu0
      %v774 = vpop.f32.mrb[0].mxu0
      %v775 = vadd.f32 %v279, %v774
      %v776 = vpop.f32.mrb[0].mxu0
      %777 = vmatprep.mubr.bf16.mxu0 %v486
      %778 = vmatmul.mubr.bf16.gmra.mrb[0].mxu0 %v485
      %v779 = vpop.f32.mrb[0].mxu0
      %v780 = vadd.f32 %v279, %v779
      %v781 = vpop.f32.mrb[0].mxu0
      %v782 = vpop.f32.mrb[0].mxu0
      %v783 = vadd.f32 %v279, %v782
      %v784 = vpop.f32.mrb[0].mxu0
      %785 = vmatprep.mubr.bf16.mxu0 %v488
      %786 = vmatmul.mubr.bf16.gmra.mrb[0].mxu0 %v487
      %v787 = vpop.f32.mrb[0].mxu0
      %v788 = vadd.f32 %v279, %v787
      %v789 = vpop.f32.mrb[0].mxu0
      %v790 = vpop.f32.mrb[0].mxu0
      %v791 = vadd.f32 %v279, %v790
      %v792 = vpop.f32.mrb[0].mxu0
      %793 = vmatprep.mubr.bf16.mxu0 %v490
      %794 = vmatmul.mubr.bf16.gmra.mrb[0].mxu0 %v489
      %v795 = vpop.f32.mrb[0].mxu0
      %v796 = vadd.f32 %v279, %v795
      %v797 = vpop.f32.mrb[0].mxu0
      %v798 = vpop.f32.mrb[0].mxu0
      %v799 = vadd.f32 %v279, %v798
      %v800 = vpop.f32.mrb[0].mxu0
      %801 = vmatprep.mubr.bf16.mxu0 %v492
      %802 = vmatmul.mubr.bf16.gmra.mrb[0].mxu0 %v491
      %v803 = vpop.f32.mrb[0].mxu0
      %v804 = vadd.f32 %v279, %v803
      %v805 = vpop.f32.mrb[0].mxu0
      %v806 = vpop.f32.mrb[0].mxu0
      %v807 = vadd.f32 %v279, %v806
      %v808 = vpop.f32.mrb[0].mxu0
      %809 = vmatprep.mubr.bf16.mxu0 %v494
      %810 = vmatmul.mubr.bf16.gmra.mrb[0].mxu0 %v493
      %v811 = vpop.f32.mrb[0].mxu0
      %v812 = vadd.f32 %v279, %v811
      %v813 = vpop.f32.mrb[0].mxu0
      %v814 = vpop.f32.mrb[0].mxu0
      %v815 = vadd.f32 %v279, %v814
      %v816 = vpop.f32.mrb[0].mxu0
      %817 = vmatprep.mubr.bf16.mxu0 %v496
      %818 = vmatmul.mubr.bf16.gmra.mrb[0].mxu0 %v495
      %v819 = vpop.f32.mrb[0].mxu0
      %v820 = vadd.f32 %v279, %v819
      %v821 = vpop.f32.mrb[0].mxu0
      %v822 = vpop.f32.mrb[0].mxu0
      %v823 = vadd.f32 %v279, %v822
      %v824 = vpop.f32.mrb[0].mxu0
      %825 = vmatprep.mubr.bf16.mxu0 %v498
      %826 = vmatmul.mubr.bf16.gmra.mrb[0].mxu0 %v497
      %v827 = vpop.f32.mrb[0].mxu0
      %v828 = vadd.f32 %v279, %v827
      %v829 = vpop.f32.mrb[0].mxu0
      %v830 = vpop.f32.mrb[0].mxu0
      %v831 = vadd.f32 %v279, %v830
      %v832 = vpop.f32.mrb[0].mxu0
      %833 = vmatprep.mubr.bf16.mxu0 %v500
      %834 = vmatmul.mubr.bf16.gmra.mrb[0].mxu0 %v499
      %v835 = vpop.f32.mrb[0].mxu0
      %v836 = vadd.f32 %v279, %v835
      %v837 = vpop.f32.mrb[0].mxu0
      %v838 = vpop.f32.mrb[0].mxu0
      %v839 = vadd.f32 %v279, %v838
      %v840 = vpop.f32.mrb[0].mxu0
      %841 = vmatprep.mubr.bf16.mxu0 %v502
      %842 = vmatmul.mubr.bf16.gmra.mrb[0].mxu0 %v501
      %v843 = vpop.f32.mrb[0].mxu0
      %v844 = vadd.f32 %v279, %v843
      %v845 = vpop.f32.mrb[0].mxu0
      %v846 = vpop.f32.mrb[0].mxu0
      %v847 = vadd.f32 %v279, %v846
      %v848 = vpop.f32.mrb[0].mxu0
      %849 = vmatprep.mubr.bf16.mxu0 %v504
      %850 = vmatmul.mubr.bf16.gmra.mrb[0].mxu0 %v503
      %v851 = vpop.f32.mrb[0].mxu0
      %v852 = vadd.f32 %v279, %v851
      %v853 = vpop.f32.mrb[0].mxu0
      %v854 = vpop.f32.mrb[0].mxu0
      %v855 = vadd.f32 %v279, %v854
      %v856 = vpop.f32.mrb[0].mxu0
      %857 = vmatprep.mubr.bf16.mxu0 %v506
      %858 = vmatmul.mubr.bf16.gmra.mrb[0].mxu0 %v505
      %v859 = vpop.f32.mrb[0].mxu0
      %v860 = vadd.f32 %v279, %v859
      %v861 = vpop.f32.mrb[0].mxu0
      %v862 = vpop.f32.mrb[0].mxu0
      %v863 = vadd.f32 %v279, %v862
      %v864 = vpop.f32.mrb[0].mxu0
      %865 = vmatprep.mubr.bf16.mxu0 %v508
      %866 = vmatmul.mubr.bf16.gmra.mrb[0].mxu0 %v507
      %v867 = vpop.f32.mrb[0].mxu0
      %v868 = vadd.f32 %v279, %v867
      %v869 = vpop.f32.mrb[0].mxu0
      %v870 = vpop.f32.mrb[0].mxu0
      %v871 = vadd.f32 %v279, %v870
      %v872 = vpop.f32.mrb[0].mxu0
      %873 = vmatprep.mubr.bf16.mxu0 %v510
      %874 = vmatmul.mubr.bf16.gmra.mrb[0].mxu0 %v509
      %v875 = vpop.f32.mrb[0].mxu0
      %v876 = vadd.f32 %v279, %v875
      %v877 = vpop.f32.mrb[0].mxu0
      %v878 = vpop.f32.mrb[0].mxu0
      %v879 = vadd.f32 %v279, %v878
      %v880 = vpop.f32.mrb[0].mxu0
      %881 = vmatprep.mubr.bf16.mxu0 %v512
      %882 = vmatmul.mubr.bf16.gmra.mrb[0].mxu0 %v511
      %v883 = vpop.f32.mrb[0].mxu0
      %v884 = vadd.f32 %v279, %v883
      %v885 = vpop.f32.mrb[0].mxu0
      %v886 = vpop.f32.mrb[0].mxu0
      %v887 = vadd.f32 %v279, %v886
      %v888 = vpop.f32.mrb[0].mxu0
      %889 = vmatprep.mubr.bf16.mxu0 %v514
      %890 = vmatmul.mubr.bf16.gmra.mrb[0].mxu0 %v513
      %v891 = vpop.f32.mrb[0].mxu0
      %v892 = vadd.f32 %v279, %v891
      %v893 = vpop.f32.mrb[0].mxu0
      %v894 = vpop.f32.mrb[0].mxu0
      %v895 = vadd.f32 %v279, %v894
      %v896 = vpop.f32.mrb[0].mxu0
      %897 = vmatprep.mubr.bf16.mxu0 %v516
      %898 = vmatmul.mubr.bf16.gmra.mrb[0].mxu0 %v515
      %v899 = vpop.f32.mrb[0].mxu0
      %v900 = vadd.f32 %v279, %v899
      %v901 = vpop.f32.mrb[0].mxu0
      %v902 = vpop.f32.mrb[0].mxu0
      %v903 = vadd.f32 %v279, %v902
      %v904 = vpop.f32.mrb[0].mxu0
      %905 = vmatprep.mubr.bf16.mxu0 %v518
      %906 = vmatmul.mubr.bf16.gmra.mrb[0].mxu0 %v517
      %v907 = vpop.f32.mrb[0].mxu0
      %v908 = vadd.f32 %v279, %v907
      %v909 = vpop.f32.mrb[0].mxu0
      %v910 = vpop.f32.mrb[0].mxu0
      %v911 = vadd.f32 %v279, %v910
      %v912 = vpop.f32.mrb[0].mxu0
      %913 = vmatprep.mubr.bf16.mxu0 %v520
      %914 = vmatmul.mubr.bf16.gmra.mrb[0].mxu0 %v519
      %v915 = vpop.f32.mrb[0].mxu0
      %v916 = vadd.f32 %v279, %v915
      %v917 = vpop.f32.mrb[0].mxu0
      %v918 = vpop.f32.mrb[0].mxu0
      %v919 = vadd.f32 %v279, %v918
      %v920 = vpop.f32.mrb[0].mxu0
      %921 = vmatprep.mubr.bf16.mxu0 %v522
      %922 = vmatmul.mubr.bf16.gmra.mrb[0].mxu0 %v521
      %v923 = vpop.f32.mrb[0].mxu0
      %v924 = vadd.f32 %v279, %v923
      %v925 = vpop.f32.mrb[0].mxu0
      %v926 = vpop.f32.mrb[0].mxu0
      %v927 = vadd.f32 %v279, %v926
      %v928 = vpop.f32.mrb[0].mxu0
      %929 = vmatprep.mubr.bf16.mxu0 %v524
      %930 = vmatmul.mubr.bf16.gmra.mrb[0].mxu0 %v523
      %v931 = vpop.f32.mrb[0].mxu0
      %v932 = vadd.f32 %v279, %v931
      %v933 = vpop.f32.mrb[0].mxu0
      %v934 = vpop.f32.mrb[0].mxu0
      %v935 = vadd.f32 %v279, %v934
      %v936 = vpop.f32.mrb[0].mxu0
      %937 = vmatprep.mubr.bf16.mxu0 %v526
      %938 = vmatmul.mubr.bf16.gmra.mrb[0].mxu0 %v525
      %v939 = vpop.f32.mrb[0].mxu0
      %v940 = vadd.f32 %v279, %v939
      %v941 = vpop.f32.mrb[0].mxu0
      %v942 = vpop.f32.mrb[0].mxu0
      %v943 = vadd.f32 %v279, %v942
      %v944 = vpop.f32.mrb[0].mxu0
      %945 = vmatprep.mubr.bf16.mxu0 %v528
      %946 = vmatmul.mubr.bf16.gmra.mrb[0].mxu0 %v527
      %v947 = vpop.f32.mrb[0].mxu0
      %v948 = vadd.f32 %v279, %v947
      %v949 = vpop.f32.mrb[0].mxu0
      %v950 = vpop.f32.mrb[0].mxu0
      %v951 = vadd.f32 %v279, %v950
      %v952 = vpop.f32.mrb[0].mxu0
      %953 = vmatprep.mubr.bf16.mxu0 %v530
      %954 = vmatmul.mubr.bf16.gmra.mrb[0].mxu0 %v529
      %v955 = vpop.f32.mrb[0].mxu0
      %v956 = vadd.f32 %v279, %v955
      %v957 = vpop.f32.mrb[0].mxu0
      %v958 = vpop.f32.mrb[0].mxu0
      %v959 = vadd.f32 %v279, %v958
      %v960 = vpop.f32.mrb[0].mxu0
      %961 = vmatprep.mubr.bf16.mxu0 %v532
      %962 = vmatmul.mubr.bf16.gmra.mrb[0].mxu0 %v531
      %v963 = vpop.f32.mrb[0].mxu0
      %v964 = vadd.f32 %v279, %v963
      %v965 = vpop.f32.mrb[0].mxu0
      %v966 = vpop.f32.mrb[0].mxu0
      %v967 = vadd.f32 %v279, %v966
      %v968 = vpop.f32.mrb[0].mxu0
      %969 = vmatprep.mubr.bf16.mxu0 %v534
      %970 = vmatmul.mubr.bf16.gmra.mrb[0].mxu0 %v533
      %v971 = vpop.f32.mrb[0].mxu0
      %v972 = vadd.f32 %v279, %v971
      %v973 = vpop.f32.mrb[0].mxu0
      %v974 = vpop.f32.mrb[0].mxu0
      %v975 = vadd.f32 %v279, %v974
      %v976 = vpop.f32.mrb[0].mxu0
      %977 = vmatprep.mubr.bf16.mxu0 %v536
      %978 = vmatmul.mubr.bf16.gmra.mrb[0].mxu0 %v535
      %v979 = vpop.f32.mrb[0].mxu0
      %v980 = vadd.f32 %v279, %v979
      %v981 = vpop.f32.mrb[0].mxu0
      %v982 = vpop.f32.mrb[0].mxu0
      %v983 = vadd.f32 %v279, %v982
      %v984 = vpop.f32.mrb[0].mxu0
      %985 = vdwg.mxu0
      %v986 = vmax.f32 %v732, 0.0
      %v987 = vmax.f32 %v735, 0.0
      %v988 = vmax.f32 %v740, 0.0
      %v989 = vmax.f32 %v743, 0.0
      %v990 = vmax.f32 %v748, 0.0
      %v991 = vmax.f32 %v751, 0.0
      %v992 = vmax.f32 %v756, 0.0
      %v993 = vmax.f32 %v759, 0.0
      %v994 = vmax.f32 %v764, 0.0
      %v995 = vmax.f32 %v767, 0.0
      %v996 = vmax.f32 %v772, 0.0
      %v997 = vmax.f32 %v775, 0.0
      %v998 = vmax.f32 %v780, 0.0
      %v999 = vmax.f32 %v783, 0.0
      %v1000 = vmax.f32 %v788, 0.0
      %v1001 = vmax.f32 %v791, 0.0
      %v1002 = vmax.f32 %v796, 0.0
      %v1003 = vmax.f32 %v799, 0.0
      %v1004 = vmax.f32 %v804, 0.0
      %v1005 = vmax.f32 %v807, 0.0
      %v1006 = vmax.f32 %v812, 0.0
      %v1007 = vmax.f32 %v815, 0.0
      %v1008 = vmax.f32 %v820, 0.0
      %v1009 = vmax.f32 %v823, 0.0
      %v1010 = vmax.f32 %v828, 0.0
      %v1011 = vmax.f32 %v831, 0.0
      %v1012 = vmax.f32 %v836, 0.0
      %v1013 = vmax.f32 %v839, 0.0
      %v1014 = vmax.f32 %v844, 0.0
      %v1015 = vmax.f32 %v847, 0.0
      %v1016 = vmax.f32 %v852, 0.0
      %v1017 = vmax.f32 %v855, 0.0
      %v1018 = vmax.f32 %v860, 0.0
      %v1019 = vmax.f32 %v863, 0.0
      %v1020 = vmax.f32 %v868, 0.0
      %v1021 = vmax.f32 %v871, 0.0
      %v1022 = vmax.f32 %v876, 0.0
      %v1023 = vmax.f32 %v879, 0.0
      %v1024 = vmax.f32 %v884, 0.0
      %v1025 = vmax.f32 %v887, 0.0
      %v1026 = vmax.f32 %v892, 0.0
      %v1027 = vmax.f32 %v895, 0.0
      %v1028 = vmax.f32 %v900, 0.0
      %v1029 = vmax.f32 %v903, 0.0
      %v1030 = vmax.f32 %v908, 0.0
      %v1031 = vmax.f32 %v911, 0.0
      %v1032 = vmax.f32 %v916, 0.0
      %v1033 = vmax.f32 %v919, 0.0
      %v1034 = vmax.f32 %v924, 0.0
      %v1035 = vmax.f32 %v927, 0.0
      %v1036 = vmax.f32 %v932, 0.0
      %v1037 = vmax.f32 %v935, 0.0
      %v1038 = vmax.f32 %v940, 0.0
      %v1039 = vmax.f32 %v943, 0.0
      %v1040 = vmax.f32 %v948, 0.0
      %v1041 = vmax.f32 %v951, 0.0
      %v1042 = vmax.f32 %v956, 0.0
      %v1043 = vmax.f32 %v959, 0.0
      %v1044 = vmax.f32 %v964, 0.0
      %v1045 = vmax.f32 %v967, 0.0
      %v1046 = vmax.f32 %v972, 0.0
      %v1047 = vmax.f32 %v975, 0.0
      %v1048 = vmax.f32 %v980, 0.0
      %v1049 = vmax.f32 %v983, 0.0
      %v1050 = vpack.c.bf16 %v987, %v986
      %v1051 = vpack.c.bf16 %v989, %v988
      %v1052 = vpack.c.bf16 %v991, %v990
      %v1053 = vpack.c.bf16 %v993, %v992
      %v1054 = vpack.c.bf16 %v995, %v994
      %v1055 = vpack.c.bf16 %v997, %v996
      %v1056 = vpack.c.bf16 %v999, %v998
      %v1057 = vpack.c.bf16 %v1001, %v1000
      %v1058 = vpack.c.bf16 %v1003, %v1002
      %v1059 = vpack.c.bf16 %v1005, %v1004
      %v1060 = vpack.c.bf16 %v1007, %v1006
      %v1061 = vpack.c.bf16 %v1009, %v1008
      %v1062 = vpack.c.bf16 %v1011, %v1010
      %v1063 = vpack.c.bf16 %v1013, %v1012
      %v1064 = vpack.c.bf16 %v1015, %v1014
      %v1065 = vpack.c.bf16 %v1017, %v1016
      %v1066 = vpack.c.bf16 %v1019, %v1018
      %v1067 = vpack.c.bf16 %v1021, %v1020
      %v1068 = vpack.c.bf16 %v1023, %v1022
      %v1069 = vpack.c.bf16 %v1025, %v1024
      %v1070 = vpack.c.bf16 %v1027, %v1026
      %v1071 = vpack.c.bf16 %v1029, %v1028
      %v1072 = vpack.c.bf16 %v1031, %v1030
      %v1073 = vpack.c.bf16 %v1033, %v1032
      %v1074 = vpack.c.bf16 %v1035, %v1034
      %v1075 = vpack.c.bf16 %v1037, %v1036
      %v1076 = vpack.c.bf16 %v1039, %v1038
      %v1077 = vpack.c.bf16 %v1041, %v1040
      %v1078 = vpack.c.bf16 %v1043, %v1042
      %v1079 = vpack.c.bf16 %v1045, %v1044
      %v1080 = vpack.c.bf16 %v1047, %v1046
      %v1081 = vpack.c.bf16 %v1049, %v1048
      %v1114 = vunpack.c.l.b16 %v1050
      %v1115 = vunpack.c.h.b16 %v1050
      %v1116 = vunpack.c.l.b16 %v1051
      %v1117 = vunpack.c.h.b16 %v1051
      %v1118 = vunpack.c.l.b16 %v1052
      %v1119 = vunpack.c.h.b16 %v1052
      %v1120 = vunpack.c.l.b16 %v1053
      %v1121 = vunpack.c.h.b16 %v1053
      %v1122 = vunpack.c.l.b16 %v1054
      %v1123 = vunpack.c.h.b16 %v1054
      %v1124 = vunpack.c.l.b16 %v1055
      %v1125 = vunpack.c.h.b16 %v1055
      %v1126 = vunpack.c.l.b16 %v1056
      %v1127 = vunpack.c.h.b16 %v1056
      %v1128 = vunpack.c.l.b16 %v1057
      %v1129 = vunpack.c.h.b16 %v1057
      %v1130 = vunpack.c.l.b16 %v1058
      %v1131 = vunpack.c.h.b16 %v1058
      %v1132 = vunpack.c.l.b16 %v1059
      %v1133 = vunpack.c.h.b16 %v1059
      %v1134 = vunpack.c.l.b16 %v1060
      %v1135 = vunpack.c.h.b16 %v1060
      %v1136 = vunpack.c.l.b16 %v1061
      %v1137 = vunpack.c.h.b16 %v1061
      %v1138 = vunpack.c.l.b16 %v1062
      %v1139 = vunpack.c.h.b16 %v1062
      %v1140 = vunpack.c.l.b16 %v1063
      %v1141 = vunpack.c.h.b16 %v1063
      %v1142 = vunpack.c.l.b16 %v1064
      %v1143 = vunpack.c.h.b16 %v1064
      %v1144 = vunpack.c.l.b16 %v1065
      %v1145 = vunpack.c.h.b16 %v1065
      %v1146 = vunpack.c.l.b16 %v1066
      %v1147 = vunpack.c.h.b16 %v1066
      %v1148 = vunpack.c.l.b16 %v1067
      %v1149 = vunpack.c.h.b16 %v1067
      %v1150 = vunpack.c.l.b16 %v1068
      %v1151 = vunpack.c.h.b16 %v1068
      %v1152 = vunpack.c.l.b16 %v1069
      %v1153 = vunpack.c.h.b16 %v1069
      %v1154 = vunpack.c.l.b16 %v1070
      %v1155 = vunpack.c.h.b16 %v1070
      %v1156 = vunpack.c.l.b16 %v1071
      %v1157 = vunpack.c.h.b16 %v1071
      %v1158 = vunpack.c.l.b16 %v1072
      %v1159 = vunpack.c.h.b16 %v1072
      %v1160 = vunpack.c.l.b16 %v1073
      %v1161 = vunpack.c.h.b16 %v1073
      %v1162 = vunpack.c.l.b16 %v1074
      %v1163 = vunpack.c.h.b16 %v1074
      %v1164 = vunpack.c.l.b16 %v1075
      %v1165 = vunpack.c.h.b16 %v1075
      %v1166 = vunpack.c.l.b16 %v1076
      %v1167 = vunpack.c.h.b16 %v1076
      %v1168 = vunpack.c.l.b16 %v1077
      %v1169 = vunpack.c.h.b16 %v1077
      %v1170 = vunpack.c.l.b16 %v1078
      %v1171 = vunpack.c.h.b16 %v1078
      %v1172 = vunpack.c.l.b16 %v1079
      %v1173 = vunpack.c.h.b16 %v1079
      %v1174 = vunpack.c.l.b16 %v1080
      %v1175 = vunpack.c.h.b16 %v1080
      %v1176 = vunpack.c.l.b16 %v1081
      %v1177 = vunpack.c.h.b16 %v1081
      %v1178 = vpack.c.b16 %v1114, %v1114
      %v1179 = vpack.c.b16 %v1115, %v1115
      %v1180 = vpack.c.b16 %v1116, %v1116
      %v1181 = vpack.c.b16 %v1117, %v1117
      %v1182 = vpack.c.b16 %v1118, %v1118
      %v1183 = vpack.c.b16 %v1119, %v1119
      %v1184 = vpack.c.b16 %v1120, %v1120
      %v1185 = vpack.c.b16 %v1121, %v1121
      %v1186 = vpack.c.b16 %v1122, %v1122
      %v1187 = vpack.c.b16 %v1123, %v1123
      %v1188 = vpack.c.b16 %v1124, %v1124
      %v1189 = vpack.c.b16 %v1125, %v1125
      %v1190 = vpack.c.b16 %v1126, %v1126
      %v1191 = vpack.c.b16 %v1127, %v1127
      %v1192 = vpack.c.b16 %v1128, %v1128
      %v1193 = vpack.c.b16 %v1129, %v1129
      %v1194 = vpack.c.b16 %v1130, %v1130
      %v1195 = vpack.c.b16 %v1131, %v1131
      %v1196 = vpack.c.b16 %v1132, %v1132
      %v1197 = vpack.c.b16 %v1133, %v1133
      %v1198 = vpack.c.b16 %v1134, %v1134
      %v1199 = vpack.c.b16 %v1135, %v1135
      %v1200 = vpack.c.b16 %v1136, %v1136
      %v1201 = vpack.c.b16 %v1137, %v1137
      %v1202 = vpack.c.b16 %v1138, %v1138
      %v1203 = vpack.c.b16 %v1139, %v1139
      %v1204 = vpack.c.b16 %v1140, %v1140
      %v1205 = vpack.c.b16 %v1141, %v1141
      %v1206 = vpack.c.b16 %v1142, %v1142
      %v1207 = vpack.c.b16 %v1143, %v1143
      %v1208 = vpack.c.b16 %v1144, %v1144
      %v1209 = vpack.c.b16 %v1145, %v1145
      %v1210 = vpack.c.b16 %v1146, %v1146
      %v1211 = vpack.c.b16 %v1147, %v1147
      %v1212 = vpack.c.b16 %v1148, %v1148
      %v1213 = vpack.c.b16 %v1149, %v1149
      %v1214 = vpack.c.b16 %v1150, %v1150
      %v1215 = vpack.c.b16 %v1151, %v1151
      %v1216 = vpack.c.b16 %v1152, %v1152
      %v1217 = vpack.c.b16 %v1153, %v1153
      %v1218 = vpack.c.b16 %v1154, %v1154
      %v1219 = vpack.c.b16 %v1155, %v1155
      %v1220 = vpack.c.b16 %v1156, %v1156
      %v1221 = vpack.c.b16 %v1157, %v1157
      %v1222 = vpack.c.b16 %v1158, %v1158
      %v1223 = vpack.c.b16 %v1159, %v1159
      %v1224 = vpack.c.b16 %v1160, %v1160
      %v1225 = vpack.c.b16 %v1161, %v1161
      %v1226 = vpack.c.b16 %v1162, %v1162
      %v1227 = vpack.c.b16 %v1163, %v1163
      %v1228 = vpack.c.b16 %v1164, %v1164
      %v1229 = vpack.c.b16 %v1165, %v1165
      %v1230 = vpack.c.b16 %v1166, %v1166
      %v1231 = vpack.c.b16 %v1167, %v1167
      %v1232 = vpack.c.b16 %v1168, %v1168
      %v1233 = vpack.c.b16 %v1169, %v1169
      %v1234 = vpack.c.b16 %v1170, %v1170
      %v1235 = vpack.c.b16 %v1171, %v1171
      %v1236 = vpack.c.b16 %v1172, %v1172
      %v1237 = vpack.c.b16 %v1173, %v1173
      %v1238 = vpack.c.b16 %v1174, %v1174
      %v1239 = vpack.c.b16 %v1175, %v1175
      %v1240 = vpack.c.b16 %v1176, %v1176
      %v1241 = vpack.c.b16 %v1177, %v1177
      %1306 = vst [vmem:[%s175] sm:$0xf] %v1178
      %1307 = vst [vmem:[%s175 + $0x4] sm:$0xf] %v1179
      %1308 = vst [vmem:[%s175 + $0x8] sm:$0xf] %v1180
      %1309 = vst [vmem:[%s175 + $0xc] sm:$0xf] %v1181
      %1310 = vst [vmem:[%s175 + $0x10] sm:$0xf] %v1182
      %1311 = vst [vmem:[%s175 + $0x14] sm:$0xf] %v1183
      %1312 = vst [vmem:[%s175 + $0x18] sm:$0xf] %v1184
      %1313 = vst [vmem:[%s175 + $0x1c] sm:$0xf] %v1185
      %1314 = vst [vmem:[%s175 + $0x20] sm:$0xf] %v1186
      %1315 = vst [vmem:[%s175 + $0x24] sm:$0xf] %v1187
      %1316 = vst [vmem:[%s175 + $0x28] sm:$0xf] %v1188
      %1317 = vst [vmem:[%s175 + $0x2c] sm:$0xf] %v1189
      %1318 = vst [vmem:[%s175 + $0x30] sm:$0xf] %v1190
      %1319 = vst [vmem:[%s175 + $0x34] sm:$0xf] %v1191
      %1320 = vst [vmem:[%s175 + $0x38] sm:$0xf] %v1192
      %1321 = vst [vmem:[%s175 + $0x3c] sm:$0xf] %v1193
      %1322 = vst [vmem:[%s175 + $0x40] sm:$0xf] %v1194
      %1323 = vst [vmem:[%s175 + $0x44] sm:$0xf] %v1195
      %1324 = vst [vmem:[%s175 + $0x48] sm:$0xf] %v1196
      %1325 = vst [vmem:[%s175 + $0x4c] sm:$0xf] %v1197
      %1326 = vst [vmem:[%s175 + $0x50] sm:$0xf] %v1198
      %1327 = vst [vmem:[%s175 + $0x54] sm:$0xf] %v1199
      %1328 = vst [vmem:[%s175 + $0x58] sm:$0xf] %v1200
      %1329 = vst [vmem:[%s175 + $0x5c] sm:$0xf] %v1201
      %1330 = vst [vmem:[%s175 + $0x60] sm:$0xf] %v1202
      %1331 = vst [vmem:[%s175 + $0x64] sm:$0xf] %v1203
      %1332 = vst [vmem:[%s175 + $0x68] sm:$0xf] %v1204
      %1333 = vst [vmem:[%s175 + $0x6c] sm:$0xf] %v1205
      %1334 = vst [vmem:[%s175 + $0x70] sm:$0xf] %v1206
      %1335 = vst [vmem:[%s175 + $0x74] sm:$0xf] %v1207
      %1336 = vst [vmem:[%s175 + $0x78] sm:$0xf] %v1208
      %1337 = vst [vmem:[%s175 + $0x7c] sm:$0xf] %v1209
      %1338 = vst [vmem:[%s175 + $0x80] sm:$0xf] %v1210
      %1339 = vst [vmem:[%s175 + $0x84] sm:$0xf] %v1211
      %1340 = vst [vmem:[%s175 + $0x88] sm:$0xf] %v1212
      %1341 = vst [vmem:[%s175 + $0x8c] sm:$0xf] %v1213
      %1342 = vst [vmem:[%s175 + $0x90] sm:$0xf] %v1214
      %1343 = vst [vmem:[%s175 + $0x94] sm:$0xf] %v1215
      %1344 = vst [vmem:[%s175 + $0x98] sm:$0xf] %v1216
      %1345 = vst [vmem:[%s175 + $0x9c] sm:$0xf] %v1217
      %1346 = vst [vmem:[%s175 + $0xa0] sm:$0xf] %v1218
      %1347 = vst [vmem:[%s175 + $0xa4] sm:$0xf] %v1219
      %1348 = vst [vmem:[%s175 + $0xa8] sm:$0xf] %v1220
      %1349 = vst [vmem:[%s175 + $0xac] sm:$0xf] %v1221
      %1350 = vst [vmem:[%s175 + $0xb0] sm:$0xf] %v1222
      %1351 = vst [vmem:[%s175 + $0xb4] sm:$0xf] %v1223
      %1352 = vst [vmem:[%s175 + $0xb8] sm:$0xf] %v1224
      %1353 = vst [vmem:[%s175 + $0xbc] sm:$0xf] %v1225
      %1354 = vst [vmem:[%s175 + $0xc0] sm:$0xf] %v1226
      %1355 = vst [vmem:[%s175 + $0xc4] sm:$0xf] %v1227
      %1356 = vst [vmem:[%s175 + $0xc8] sm:$0xf] %v1228
      %1357 = vst [vmem:[%s175 + $0xcc] sm:$0xf] %v1229
      %1358 = vst [vmem:[%s175 + $0xd0] sm:$0xf] %v1230
      %1359 = vst [vmem:[%s175 + $0xd4] sm:$0xf] %v1231
      %1360 = vst [vmem:[%s175 + $0xd8] sm:$0xf] %v1232
      %1361 = vst [vmem:[%s175 + $0xdc] sm:$0xf] %v1233
      %1362 = vst [vmem:[%s175 + $0xe0] sm:$0xf] %v1234
      %1363 = vst [vmem:[%s175 + $0xe4] sm:$0xf] %v1235
      %1364 = vst [vmem:[%s175 + $0xe8] sm:$0xf] %v1236
      %1365 = vst [vmem:[%s175 + $0xec] sm:$0xf] %v1237
      %1366 = vst [vmem:[%s175 + $0xf0] sm:$0xf] %v1238
      %1367 = vst [vmem:[%s175 + $0xf4] sm:$0xf] %v1239
      %1368 = vst [vmem:[%s175 + $0xf8] sm:$0xf] %v1240
      %1369 = vst [vmem:[%s175 + $0xfc] sm:$0xf] %v1241
      %s1370 = smul.u32 64, %s14
      %p1371 = scmp.lt.s32.totalorder %s1370, 255
      %s1372 = scalar_select %p1371, %s1370, 255
      %s1373 = smul.addr %s1372, 4
      %s1374 = scalar_lea.vmem %s3, %s1373
      // Predicated region
      $region33: #{forward.8} parent=31 // pred_check
        %p1375 = pneg %p100
      $region34: #{forward.8} parent=31 // pred_check_branch
        %1377 = sbr.rel (%p1375) target = $region36
      $region35: #{forward.8} parent=31 // pred_region
        %s1378 = smul.u32 64, %s14
      $region36: #{forward.8} parent=31 // pred_fallthru
        _
    $region32: #{forward.8} parent=5 // pred_fallthru
      _
    %p1379 = scmp.le.s32.totalorder 2, %s9
    // Predicated region
    $region37: #{forward.8} parent=5 // pred_check
      %p1380 = pneg %p1379
    $region38: #{forward.8} parent=5 // pred_check_branch
      %1382 = sbr.rel (%p1380) target = $region40
    $region39: #{forward.8} parent=5 // pred_region
      %s1383 = ssub.s32 %s9, 2
      // Predicated region
      $region41: #{forward.8} parent=39 // pred_check
        %p1384 = pneg %p106
      $region42: #{forward.8} parent=39 // pred_check_branch
        %1386 = sbr.rel (%p1384) target = $region44
      $region43: #{forward.8} parent=39 // pred_region
        %s1387 = smul.u32 64, %s15
        %p1388 = scmp.lt.s32.totalorder %s1387, 255
        %s1389 = scalar_select %p1388, %s1387, 255
        %s1390 = smul.addr %s1389, 4
        %s1391 = scalar_lea.vmem %s3, %s1390
      $region44: #{forward.8} parent=39 // pred_fallthru
        _
    $region40: #{forward.8} parent=5 // pred_fallthru
      _
  $region6: #{forward.8} parent=0 // loop_footer
    %s13 = sadd.s32 1, %s9
  $region7: #{forward.8} parent=0 // loop_footer_branch
    %8 = sbr.rel target = $region3
  $region8: #{forward.8} parent=0 // loop_exit
    _

// kernel: forward.9
$region0: #{forward.9}
  #allocation0 [shape = 'u32[]', space=smem, size = 0x4, offset = 0x4, fixed_abs, tag = 'smem constant byte address 0x4 - core index']
  #allocation1 [shape = 'u32[144,128]{1,0:T(1,128)}', space=vmem, size = 0x12000, scoped, tag = 'internal scratch']
  %s0 = inlined_call_operand.vmem [shape: bf16[8192,128], index: 0, kind: input, shape index: {}]
  %s1 = inlined_call_operand.vmem [shape: bf16[128,128], index: 1, kind: input, shape index: {}]
  %s2 = inlined_call_operand.vmem [shape: f32[1,128], index: 2, kind: input, shape index: {}]
  %s3 = inlined_call_operand.vmem [shape: f32[8192,128], index: 3, kind: output, shape index: {}]
  %s4 = sld [smem:[#allocation0]]
  $region45: #{forward.9} parent=0
    _
  %s6 = ssub.s32 1, %s4
  %s7 = scalar_select 0, %s6, %s4
  loop: start=0, step=1, limit=18
  $region2: #{forward.9} parent=0 // loop_pre_header
    _
  $region3: #{forward.9} parent=0 // loop_header
    %s9 = sphi 0, %s13
    %p10 = scmp.ge.s32.totalorder %s9, 18
    %s19 = sphi 0, %s21
    %s22 = sphi 0, %s19
    %s23 = sphi 0, %s22
    %s39 = sphi 0, %s23
    %s43 = sphi 0, %s43
    %s45 = sphi 0, %s43
    %s46 = sphi 0, %s45
    %s60 = sphi 0, %s46
    %s64 = sphi 0, %s64
    %s66 = sphi 0, %s64
    %s67 = sphi 0, %s66
    %s81 = sphi 0, %s67
    %s87 = sphi 0, %s89
    %s90 = sphi 0, %s87
    %s91 = sphi 0, %s90
    %s107 = sphi 0, %s91
  $region4: #{forward.9} parent=0 // loop_header_branch
    %12 = sbr.rel (%p10) target = $region8
  $region5: #{forward.9} parent=0 // loop_body
    %s14 = ssub.s32 %s9, 1
    %s15 = ssub.s32 %s9, 2
    %s16 = sadd.s32 %s9, 1
    %s17 = ssub.s32 %s9, %s16
    %p18 = scmp.eq.s32.totalorder %s17, 0
    %s20 = sadd.s32 %s19, 1
    %s21 = scalar_select %p18, %s19, %s20
    %p24 = pneg %p18
    %p25 = scmp.eq.s32.totalorder %s9, 15
    %p26 = por %p24, %p25
    %p27 = scmp.ne.s32.totalorder %s19, %s22
    %p28 = scmp.eq.s32.totalorder %s9, 0
    %p29 = por %p27, %p28
    %p30 = scmp.ne.s32.totalorder %s19, %s22
    %p31 = scmp.eq.s32.totalorder %s14, 15
    %p32 = por %p30, %p31
    %p33 = scmp.ne.s32.totalorder %s22, %s23
    %p34 = scmp.eq.s32.totalorder %s14, 0
    %p35 = por %p33, %p34
    %p36 = scmp.ne.s32.totalorder %s22, %s23
    %p37 = scmp.eq.s32.totalorder %s15, 15
    %p38 = por %p36, %p37
    %p40 = scmp.ne.s32.totalorder %s23, %s39
    %p41 = scmp.eq.s32.totalorder %s15, 0
    %p42 = por %p40, %p41
    %s44 = sadd.s32 %s43, 1
    %p47 = scmp.eq.s32.totalorder %s9, 15
    %p48 = scmp.ne.s32.totalorder %s43, %s45
    %p49 = scmp.eq.s32.totalorder %s9, 0
    %p50 = por %p48, %p49
    %p51 = scmp.ne.s32.totalorder %s43, %s45
    %p52 = scmp.eq.s32.totalorder %s14, 15
    %p53 = por %p51, %p52
    %p54 = scmp.ne.s32.totalorder %s45, %s46
    %p55 = scmp.eq.s32.totalorder %s14, 0
    %p56 = por %p54, %p55
    %p57 = scmp.ne.s32.totalorder %s45, %s46
    %p58 = scmp.eq.s32.totalorder %s15, 15
    %p59 = por %p57, %p58
    %p61 = scmp.ne.s32.totalorder %s46, %s60
    %p62 = scmp.eq.s32.totalorder %s15, 0
    %p63 = por %p61, %p62
    %s65 = sadd.s32 %s64, 1
    %p68 = scmp.eq.s32.totalorder %s9, 15
    %p69 = scmp.ne.s32.totalorder %s64, %s66
    %p70 = scmp.eq.s32.totalorder %s9, 0
    %p71 = por %p69, %p70
    %p72 = scmp.ne.s32.totalorder %s64, %s66
    %p73 = scmp.eq.s32.totalorder %s14, 15
    %p74 = por %p72, %p73
    %p75 = scmp.ne.s32.totalorder %s66, %s67
    %p76 = scmp.eq.s32.totalorder %s14, 0
    %p77 = por %p75, %p76
    %p78 = scmp.ne.s32.totalorder %s66, %s67
    %p79 = scmp.eq.s32.totalorder %s15, 15
    %p80 = por %p78, %p79
    %p82 = scmp.ne.s32.totalorder %s67, %s81
    %p83 = scmp.eq.s32.totalorder %s15, 0
    %p84 = por %p82, %p83
    %s85 = ssub.s32 %s9, %s16
    %p86 = scmp.eq.s32.totalorder %s85, 0
    %s88 = sadd.s32 %s87, 1
    %s89 = scalar_select %p86, %s87, %s88
    %p92 = pneg %p86
    %p93 = scmp.eq.s32.totalorder %s9, 15
    %p94 = por %p92, %p93
    %p95 = scmp.ne.s32.totalorder %s87, %s90
    %p96 = scmp.eq.s32.totalorder %s9, 0
    %p97 = por %p95, %p96
    %p98 = scmp.ne.s32.totalorder %s87, %s90
    %p99 = scmp.eq.s32.totalorder %s14, 15
    %p100 = por %p98, %p99
    %p101 = scmp.ne.s32.totalorder %s90, %s91
    %p102 = scmp.eq.s32.totalorder %s14, 0
    %p103 = por %p101, %p102
    %p104 = scmp.ne.s32.totalorder %s90, %s91
    %p105 = scmp.eq.s32.totalorder %s15, 15
    %p106 = por %p104, %p105
    %p108 = scmp.ne.s32.totalorder %s91, %s107
    %p109 = scmp.eq.s32.totalorder %s15, 0
    %p110 = por %p108, %p109
    %p111 = scmp.le.s32.totalorder 1, %s9
    %p112 = scmp.lt.s32.totalorder %s9, 17
    %p113 = pnand %p111, %p112
    %p114 = pneg %p113
    // Predicated region
    $region9: #{forward.9} parent=5 // pred_check
      _
    $region10: #{forward.9} parent=5 // pred_check_branch
      %116 = sbr.rel (%p113) target = $region12
    $region11: #{forward.9} parent=5 // pred_region
      %s117 = ssub.s32 %s9, 1
      // Predicated region
      $region13: #{forward.9} parent=11 // pred_check
        %p118 = pneg %p56
      $region14: #{forward.9} parent=11 // pred_check_branch
        %120 = sbr.rel (%p118) target = $region16
      $region15: #{forward.9} parent=11 // pred_region
        _
      $region16: #{forward.9} parent=11 // pred_fallthru
        _
      // Predicated region
      $region17: #{forward.9} parent=11 // pred_check
        %p121 = pneg %p77
      $region18: #{forward.9} parent=11 // pred_check_branch
        %123 = sbr.rel (%p121) target = $region20
      $region19: #{forward.9} parent=11 // pred_region
        _
      $region20: #{forward.9} parent=11 // pred_fallthru
        _
    $region12: #{forward.9} parent=5 // pred_fallthru
      _
    %p124 = scmp.lt.s32.totalorder %s9, 16
    // Predicated region
    $region21: #{forward.9} parent=5 // pred_check
      %p125 = pneg %p124
    $region22: #{forward.9} parent=5 // pred_check_branch
      %127 = sbr.rel (%p125) target = $region24
    $region23: #{forward.9} parent=5 // pred_region
      // Predicated region
      $region25: #{forward.9} parent=23 // pred_check
        %p128 = pneg %p29
      $region26: #{forward.9} parent=23 // pred_check_branch
        %130 = sbr.rel (%p128) target = $region28
      $region27: #{forward.9} parent=23 // pred_region
        %s131 = smul.u32 64, %s9
        %p132 = scmp.lt.s32.totalorder %s131, 1023
        %s133 = scalar_select %p132, %s131, 1023
        %s134 = smul.addr %s133, 4
        %s135 = scalar_lea.vmem %s0, %s134
        %s136 = smul.u32 64, %s9
      $region28: #{forward.9} parent=23 // pred_fallthru
        _
    $region24: #{forward.9} parent=5 // pred_fallthru
      _
    %p137 = scmp.le.s32.totalorder 1, %s9
    %p138 = scmp.lt.s32.totalorder %s9, 17
    %p139 = pnand %p137, %p138
    %p140 = pneg %p139
    // Predicated region
    $region29: #{forward.9} parent=5 // pred_check
      _
    $region30: #{forward.9} parent=5 // pred_check_branch
      %142 = sbr.rel (%p139) target = $region32
    $region31: #{forward.9} parent=5 // pred_region
      %s143 = ssub.s32 %s9, 1
      %s144 = smul.u32 64, %s14
      %p145 = scmp.lt.s32.totalorder %s144, 1023
      %s146 = scalar_select %p145, %s144, 1023
      %s147 = smul.addr %s146, 4
      %s148 = scalar_lea.vmem %s0, %s147
      %p149 = pneg %p35
      %p150 = pneg %p32
      %p151 = pneg %p56
      %p152 = pneg %p53
      %p153 = pneg %p77
      %p154 = pneg %p74
      %p155 = pneg %p103
      %p156 = pneg %p100
      %s157 = smul.u32 64, %s14
      %p158 = scmp.lt.s32.totalorder %s157, 1023
      %s159 = scalar_select %p158, %s157, 1023
      %s160 = smul.addr %s159, 8
      %s161 = scalar_lea.vmem %s3, %s160
      %s162 = smul.u32 64, %s14
      %p163 = scmp.lt.s32.totalorder %s162, 1023
      %s164 = scalar_select %p163, %s162, 1023
      %s165 = smul.addr %s164, 4
      %s166 = scalar_lea.vmem %s0, %s165
      %s167 = smul.u32 64, %s14
      %s168 = smul.u32 64, %s14
      %p169 = scmp.lt.s32.totalorder %s168, 1023
      %s170 = scalar_select %p169, %s168, 1023
      %s171 = smul.addr %s170, 8
      %s172 = scalar_lea.vmem %s3, %s171
      %s173 = smul.u32 64, %s14
      %v175 = vld [vmem:[%s166] sm:$0xf]
      %v176 = vld [vmem:[%s166 + $0x4] sm:$0xf]
      %v177 = vld [vmem:[%s166 + $0x8] sm:$0xf]
      %v178 = vld [vmem:[%s166 + $0xc] sm:$0xf]
      %v179 = vld [vmem:[%s166 + $0x10] sm:$0xf]
      %v180 = vld [vmem:[%s166 + $0x14] sm:$0xf]
      %v181 = vld [vmem:[%s166 + $0x18] sm:$0xf]
      %v182 = vld [vmem:[%s166 + $0x1c] sm:$0xf]
      %v183 = vld [vmem:[%s166 + $0x20] sm:$0xf]
      %v184 = vld [vmem:[%s166 + $0x24] sm:$0xf]
      %v185 = vld [vmem:[%s166 + $0x28] sm:$0xf]
      %v186 = vld [vmem:[%s166 + $0x2c] sm:$0xf]
      %v187 = vld [vmem:[%s166 + $0x30] sm:$0xf]
      %v188 = vld [vmem:[%s166 + $0x34] sm:$0xf]
      %v189 = vld [vmem:[%s166 + $0x38] sm:$0xf]
      %v190 = vld [vmem:[%s166 + $0x3c] sm:$0xf]
      %v191 = vld [vmem:[%s166 + $0x40] sm:$0xf]
      %v192 = vld [vmem:[%s166 + $0x44] sm:$0xf]
      %v193 = vld [vmem:[%s166 + $0x48] sm:$0xf]
      %v194 = vld [vmem:[%s166 + $0x4c] sm:$0xf]
      %v195 = vld [vmem:[%s166 + $0x50] sm:$0xf]
      %v196 = vld [vmem:[%s166 + $0x54] sm:$0xf]
      %v197 = vld [vmem:[%s166 + $0x58] sm:$0xf]
      %v198 = vld [vmem:[%s166 + $0x5c] sm:$0xf]
      %v199 = vld [vmem:[%s166 + $0x60] sm:$0xf]
      %v200 = vld [vmem:[%s166 + $0x64] sm:$0xf]
      %v201 = vld [vmem:[%s166 + $0x68] sm:$0xf]
      %v202 = vld [vmem:[%s166 + $0x6c] sm:$0xf]
      %v203 = vld [vmem:[%s166 + $0x70] sm:$0xf]
      %v204 = vld [vmem:[%s166 + $0x74] sm:$0xf]
      %v205 = vld [vmem:[%s166 + $0x78] sm:$0xf]
      %v206 = vld [vmem:[%s166 + $0x7c] sm:$0xf]
      %v207 = vld [vmem:[%s166 + $0x80] sm:$0xf]
      %v208 = vld [vmem:[%s166 + $0x84] sm:$0xf]
      %v209 = vld [vmem:[%s166 + $0x88] sm:$0xf]
      %v210 = vld [vmem:[%s166 + $0x8c] sm:$0xf]
      %v211 = vld [vmem:[%s166 + $0x90] sm:$0xf]
      %v212 = vld [vmem:[%s166 + $0x94] sm:$0xf]
      %v213 = vld [vmem:[%s166 + $0x98] sm:$0xf]
      %v214 = vld [vmem:[%s166 + $0x9c] sm:$0xf]
      %v215 = vld [vmem:[%s166 + $0xa0] sm:$0xf]
      %v216 = vld [vmem:[%s166 + $0xa4] sm:$0xf]
      %v217 = vld [vmem:[%s166 + $0xa8] sm:$0xf]
      %v218 = vld [vmem:[%s166 + $0xac] sm:$0xf]
      %v219 = vld [vmem:[%s166 + $0xb0] sm:$0xf]
      %v220 = vld [vmem:[%s166 + $0xb4] sm:$0xf]
      %v221 = vld [vmem:[%s166 + $0xb8] sm:$0xf]
      %v222 = vld [vmem:[%s166 + $0xbc] sm:$0xf]
      %v223 = vld [vmem:[%s166 + $0xc0] sm:$0xf]
      %v224 = vld [vmem:[%s166 + $0xc4] sm:$0xf]
      %v225 = vld [vmem:[%s166 + $0xc8] sm:$0xf]
      %v226 = vld [vmem:[%s166 + $0xcc] sm:$0xf]
      %v227 = vld [vmem:[%s166 + $0xd0] sm:$0xf]
      %v228 = vld [vmem:[%s166 + $0xd4] sm:$0xf]
      %v229 = vld [vmem:[%s166 + $0xd8] sm:$0xf]
      %v230 = vld [vmem:[%s166 + $0xdc] sm:$0xf]
      %v231 = vld [vmem:[%s166 + $0xe0] sm:$0xf]
      %v232 = vld [vmem:[%s166 + $0xe4] sm:$0xf]
      %v233 = vld [vmem:[%s166 + $0xe8] sm:$0xf]
      %v234 = vld [vmem:[%s166 + $0xec] sm:$0xf]
      %v235 = vld [vmem:[%s166 + $0xf0] sm:$0xf]
      %v236 = vld [vmem:[%s166 + $0xf4] sm:$0xf]
      %v237 = vld [vmem:[%s166 + $0xf8] sm:$0xf]
      %v238 = vld [vmem:[%s166 + $0xfc] sm:$0xf]
      %v239 = vld [vmem:[%s1] sm:$0xf]
      %v240 = vld [vmem:[%s1 + $0x4] sm:$0xf]
      %v241 = vld [vmem:[%s1 + $0x8] sm:$0xf]
      %v242 = vld [vmem:[%s1 + $0xc] sm:$0xf]
      %v243 = vld [vmem:[%s1 + $0x10] sm:$0xf]
      %v244 = vld [vmem:[%s1 + $0x14] sm:$0xf]
      %v245 = vld [vmem:[%s1 + $0x18] sm:$0xf]
      %v246 = vld [vmem:[%s1 + $0x1c] sm:$0xf]
      %v247 = vld [vmem:[%s1 + $0x20] sm:$0xf]
      %v248 = vld [vmem:[%s1 + $0x24] sm:$0xf]
      %v249 = vld [vmem:[%s1 + $0x28] sm:$0xf]
      %v250 = vld [vmem:[%s1 + $0x2c] sm:$0xf]
      %v251 = vld [vmem:[%s1 + $0x30] sm:$0xf]
      %v252 = vld [vmem:[%s1 + $0x34] sm:$0xf]
      %v253 = vld [vmem:[%s1 + $0x38] sm:$0xf]
      %v254 = vld [vmem:[%s1 + $0x3c] sm:$0xf]
      %v255 = vld [vmem:[%s2] sm:$0x1]
      %v257 = vlaneseq
      %v258 = vshrl.u32 %v257, 7
      %v259 = vsub.s32 0, %v258
      %v260 = vrot.slane %v255, %v259
      %v326 = vunpack.c.l.b16 %v175
      %v327 = vunpack.c.l.b16 %v176
      %v328 = vunpack.c.l.b16 %v177
      %v329 = vunpack.c.l.b16 %v178
      %v330 = vunpack.c.l.b16 %v179
      %v331 = vunpack.c.l.b16 %v180
      %v332 = vunpack.c.l.b16 %v181
      %v333 = vunpack.c.l.b16 %v182
      %v334 = vunpack.c.l.b16 %v183
      %v335 = vunpack.c.l.b16 %v184
      %v336 = vunpack.c.l.b16 %v185
      %v337 = vunpack.c.l.b16 %v186
      %v338 = vunpack.c.l.b16 %v187
      %v339 = vunpack.c.l.b16 %v188
      %v340 = vunpack.c.l.b16 %v189
      %v341 = vunpack.c.l.b16 %v190
      %v342 = vunpack.c.l.b16 %v191
      %v343 = vunpack.c.l.b16 %v192
      %v344 = vunpack.c.l.b16 %v193
      %v345 = vunpack.c.l.b16 %v194
      %v346 = vunpack.c.l.b16 %v195
      %v347 = vunpack.c.l.b16 %v196
      %v348 = vunpack.c.l.b16 %v197
      %v349 = vunpack.c.l.b16 %v198
      %v350 = vunpack.c.l.b16 %v199
      %v351 = vunpack.c.l.b16 %v200
      %v352 = vunpack.c.l.b16 %v201
      %v353 = vunpack.c.l.b16 %v202
      %v354 = vunpack.c.l.b16 %v203
      %v355 = vunpack.c.l.b16 %v204
      %v356 = vunpack.c.l.b16 %v205
      %v357 = vunpack.c.l.b16 %v206
      %v358 = vunpack.c.l.b16 %v207
      %v359 = vunpack.c.l.b16 %v208
      %v360 = vunpack.c.l.b16 %v209
      %v361 = vunpack.c.l.b16 %v210
      %v362 = vunpack.c.l.b16 %v211
      %v363 = vunpack.c.l.b16 %v212
      %v364 = vunpack.c.l.b16 %v213
      %v365 = vunpack.c.l.b16 %v214
      %v366 = vunpack.c.l.b16 %v215
      %v367 = vunpack.c.l.b16 %v216
      %v368 = vunpack.c.l.b16 %v217
      %v369 = vunpack.c.l.b16 %v218
      %v370 = vunpack.c.l.b16 %v219
      %v371 = vunpack.c.l.b16 %v220
      %v372 = vunpack.c.l.b16 %v221
      %v373 = vunpack.c.l.b16 %v222
      %v374 = vunpack.c.l.b16 %v223
      %v375 = vunpack.c.l.b16 %v224
      %v376 = vunpack.c.l.b16 %v225
      %v377 = vunpack.c.l.b16 %v226
      %v378 = vunpack.c.l.b16 %v227
      %v379 = vunpack.c.l.b16 %v228
      %v380 = vunpack.c.l.b16 %v229
      %v381 = vunpack.c.l.b16 %v230
      %v382 = vunpack.c.l.b16 %v231
      %v383 = vunpack.c.l.b16 %v232
      %v384 = vunpack.c.l.b16 %v233
      %v385 = vunpack.c.l.b16 %v234
      %v386 = vunpack.c.l.b16 %v235
      %v387 = vunpack.c.l.b16 %v236
      %v388 = vunpack.c.l.b16 %v237
      %v389 = vunpack.c.l.b16 %v238
      %v390 = vpack.c.b16 %v327, %v326
      %v391 = vpack.c.b16 %v329, %v328
      %v392 = vpack.c.b16 %v331, %v330
      %v393 = vpack.c.b16 %v333, %v332
      %v394 = vpack.c.b16 %v335, %v334
      %v395 = vpack.c.b16 %v337, %v336
      %v396 = vpack.c.b16 %v339, %v338
      %v397 = vpack.c.b16 %v341, %v340
      %v398 = vpack.c.b16 %v343, %v342
      %v399 = vpack.c.b16 %v345, %v344
      %v400 = vpack.c.b16 %v347, %v346
      %v401 = vpack.c.b16 %v349, %v348
      %v402 = vpack.c.b16 %v351, %v350
      %v403 = vpack.c.b16 %v353, %v352
      %v404 = vpack.c.b16 %v355, %v354
      %v405 = vpack.c.b16 %v357, %v356
      %v406 = vpack.c.b16 %v359, %v358
      %v407 = vpack.c.b16 %v361, %v360
      %v408 = vpack.c.b16 %v363, %v362
      %v409 = vpack.c.b16 %v365, %v364
      %v410 = vpack.c.b16 %v367, %v366
      %v411 = vpack.c.b16 %v369, %v368
      %v412 = vpack.c.b16 %v371, %v370
      %v413 = vpack.c.b16 %v373, %v372
      %v414 = vpack.c.b16 %v375, %v374
      %v415 = vpack.c.b16 %v377, %v376
      %v416 = vpack.c.b16 %v379, %v378
      %v417 = vpack.c.b16 %v381, %v380
      %v418 = vpack.c.b16 %v383, %v382
      %v419 = vpack.c.b16 %v385, %v384
      %v420 = vpack.c.b16 %v387, %v386
      %v421 = vpack.c.b16 %v389, %v388
      %v470 = vunpack.c.l.b16 %v239
      %v471 = vunpack.c.l.b16 %v240
      %v472 = vunpack.c.l.b16 %v241
      %v473 = vunpack.c.l.b16 %v242
      %v474 = vunpack.c.l.b16 %v243
      %v475 = vunpack.c.l.b16 %v244
      %v476 = vunpack.c.l.b16 %v245
      %v477 = vunpack.c.l.b16 %v246
      %v478 = vunpack.c.l.b16 %v247
      %v479 = vunpack.c.l.b16 %v248
      %v480 = vunpack.c.l.b16 %v249
      %v481 = vunpack.c.l.b16 %v250
      %v482 = vunpack.c.l.b16 %v251
      %v483 = vunpack.c.l.b16 %v252
      %v484 = vunpack.c.l.b16 %v253
      %v485 = vunpack.c.l.b16 %v254
      %v486 = vpack.c.b16 %v471, %v470
      %v487 = vpack.c.b16 %v473, %v472
      %v488 = vpack.c.b16 %v475, %v474
      %v489 = vpack.c.b16 %v477, %v476
      %v490 = vpack.c.b16 %v479, %v478
      %v491 = vpack.c.b16 %v481, %v480
      %v492 = vpack.c.b16 %v483, %v482
      %v493 = vpack.c.b16 %v485, %v484
      %502 = vmatprep.subr.bf16.mxu0 0
      %503 = vmatpush1.bf16.msra.mxu0 %v486
      %504 = vmatprep.subr.bf16.mxu0 0
      %505 = vmatpush1.bf16.msra.mxu0 %v487
      %506 = vmatprep.subr.bf16.mxu0 0
      %507 = vmatpush1.bf16.msra.mxu0 %v488
      %508 = vmatprep.subr.bf16.mxu0 0
      %509 = vmatpush1.bf16.msra.mxu0 %v489
      %510 = vmatprep.subr.bf16.mxu0 0
      %511 = vmatpush1.bf16.msra.mxu0 %v490
      %512 = vmatprep.subr.bf16.mxu0 0
      %513 = vmatpush1.bf16.msra.mxu0 %v491
      %514 = vmatprep.subr.bf16.mxu0 0
      %515 = vmatpush1.bf16.msra.mxu0 %v492
      %516 = vmatprep.subr.bf16.mxu0 0
      %517 = vmatpush1.bf16.msra.mxu0 %v493
      %518 = vmatprep.subr.bf16.mxu0 0
      %519 = vmatpush1.bf16.msra.mxu0 0
      %520 = vmatprep.subr.bf16.mxu0 0
      %521 = vmatpush1.bf16.msra.mxu0 0
      %522 = vmatprep.subr.bf16.mxu0 0
      %523 = vmatpush1.bf16.msra.mxu0 0
      %524 = vmatprep.subr.bf16.mxu0 0
      %525 = vmatpush1.bf16.msra.mxu0 0
      %526 = vmatprep.subr.bf16.mxu0 0
      %527 = vmatpush1.bf16.msra.mxu0 0
      %528 = vmatprep.subr.bf16.mxu0 0
      %529 = vmatpush1.bf16.msra.mxu0 0
      %530 = vmatprep.subr.bf16.mxu0 0
      %531 = vmatpush1.bf16.msra.mxu0 0
      %532 = vmatprep.subr.bf16.mxu0 0
      %533 = vmatpush1.bf16.msra.mxu0 0
      %534 = vmatprep.mubr.bf16.mxu0 0
      %535 = vmatmul.mubr.bf16.gmra.mrb[0].mxu0 %v390
      %v536 = vpop.f32.mrb[0].mxu0
      %v537 = vadd.f32 %v260, %v536
      %v538 = vpop.f32.mrb[0].mxu0
      %v539 = vpop.f32.mrb[0].mxu0
      %v540 = vadd.f32 %v260, %v539
      %v541 = vpop.f32.mrb[0].mxu0
      %542 = vmatprep.mubr.bf16.mxu0 0
      %543 = vmatmul.mubr.bf16.gmra.mrb[0].mxu0 %v391
      %v544 = vpop.f32.mrb[0].mxu0
      %v545 = vadd.f32 %v260, %v544
      %v546 = vpop.f32.mrb[0].mxu0
      %v547 = vpop.f32.mrb[0].mxu0
      %v548 = vadd.f32 %v260, %v547
      %v549 = vpop.f32.mrb[0].mxu0
      %550 = vmatprep.mubr.bf16.mxu0 0
      %551 = vmatmul.mubr.bf16.gmra.mrb[0].mxu0 %v392
      %v552 = vpop.f32.mrb[0].mxu0
      %v553 = vadd.f32 %v260, %v552
      %v554 = vpop.f32.mrb[0].mxu0
      %v555 = vpop.f32.mrb[0].mxu0
      %v556 = vadd.f32 %v260, %v555
      %v557 = vpop.f32.mrb[0].mxu0
      %558 = vmatprep.mubr.bf16.mxu0 0
      %559 = vmatmul.mubr.bf16.gmra.mrb[0].mxu0 %v393
      %v560 = vpop.f32.mrb[0].mxu0
      %v561 = vadd.f32 %v260, %v560
      %v562 = vpop.f32.mrb[0].mxu0
      %v563 = vpop.f32.mrb[0].mxu0
      %v564 = vadd.f32 %v260, %v563
      %v565 = vpop.f32.mrb[0].mxu0
      %566 = vmatprep.mubr.bf16.mxu0 0
      %567 = vmatmul.mubr.bf16.gmra.mrb[0].mxu0 %v394
      %v568 = vpop.f32.mrb[0].mxu0
      %v569 = vadd.f32 %v260, %v568
      %v570 = vpop.f32.mrb[0].mxu0
      %v571 = vpop.f32.mrb[0].mxu0
      %v572 = vadd.f32 %v260, %v571
      %v573 = vpop.f32.mrb[0].mxu0
      %574 = vmatprep.mubr.bf16.mxu0 0
      %575 = vmatmul.mubr.bf16.gmra.mrb[0].mxu0 %v395
      %v576 = vpop.f32.mrb[0].mxu0
      %v577 = vadd.f32 %v260, %v576
      %v578 = vpop.f32.mrb[0].mxu0
      %v579 = vpop.f32.mrb[0].mxu0
      %v580 = vadd.f32 %v260, %v579
      %v581 = vpop.f32.mrb[0].mxu0
      %582 = vmatprep.mubr.bf16.mxu0 0
      %583 = vmatmul.mubr.bf16.gmra.mrb[0].mxu0 %v396
      %v584 = vpop.f32.mrb[0].mxu0
      %v585 = vadd.f32 %v260, %v584
      %v586 = vpop.f32.mrb[0].mxu0
      %v587 = vpop.f32.mrb[0].mxu0
      %v588 = vadd.f32 %v260, %v587
      %v589 = vpop.f32.mrb[0].mxu0
      %590 = vmatprep.mubr.bf16.mxu0 0
      %591 = vmatmul.mubr.bf16.gmra.mrb[0].mxu0 %v397
      %v592 = vpop.f32.mrb[0].mxu0
      %v593 = vadd.f32 %v260, %v592
      %v594 = vpop.f32.mrb[0].mxu0
      %v595 = vpop.f32.mrb[0].mxu0
      %v596 = vadd.f32 %v260, %v595
      %v597 = vpop.f32.mrb[0].mxu0
      %598 = vmatprep.mubr.bf16.mxu0 0
      %599 = vmatmul.mubr.bf16.gmra.mrb[0].mxu0 %v398
      %v600 = vpop.f32.mrb[0].mxu0
      %v601 = vadd.f32 %v260, %v600
      %v602 = vpop.f32.mrb[0].mxu0
      %v603 = vpop.f32.mrb[0].mxu0
      %v604 = vadd.f32 %v260, %v603
      %v605 = vpop.f32.mrb[0].mxu0
      %606 = vmatprep.mubr.bf16.mxu0 0
      %607 = vmatmul.mubr.bf16.gmra.mrb[0].mxu0 %v399
      %v608 = vpop.f32.mrb[0].mxu0
      %v609 = vadd.f32 %v260, %v608
      %v610 = vpop.f32.mrb[0].mxu0
      %v611 = vpop.f32.mrb[0].mxu0
      %v612 = vadd.f32 %v260, %v611
      %v613 = vpop.f32.mrb[0].mxu0
      %614 = vmatprep.mubr.bf16.mxu0 0
      %615 = vmatmul.mubr.bf16.gmra.mrb[0].mxu0 %v400
      %v616 = vpop.f32.mrb[0].mxu0
      %v617 = vadd.f32 %v260, %v616
      %v618 = vpop.f32.mrb[0].mxu0
      %v619 = vpop.f32.mrb[0].mxu0
      %v620 = vadd.f32 %v260, %v619
      %v621 = vpop.f32.mrb[0].mxu0
      %622 = vmatprep.mubr.bf16.mxu0 0
      %623 = vmatmul.mubr.bf16.gmra.mrb[0].mxu0 %v401
      %v624 = vpop.f32.mrb[0].mxu0
      %v625 = vadd.f32 %v260, %v624
      %v626 = vpop.f32.mrb[0].mxu0
      %v627 = vpop.f32.mrb[0].mxu0
      %v628 = vadd.f32 %v260, %v627
      %v629 = vpop.f32.mrb[0].mxu0
      %630 = vmatprep.mubr.bf16.mxu0 0
      %631 = vmatmul.mubr.bf16.gmra.mrb[0].mxu0 %v402
      %v632 = vpop.f32.mrb[0].mxu0
      %v633 = vadd.f32 %v260, %v632
      %v634 = vpop.f32.mrb[0].mxu0
      %v635 = vpop.f32.mrb[0].mxu0
      %v636 = vadd.f32 %v260, %v635
      %v637 = vpop.f32.mrb[0].mxu0
      %638 = vmatprep.mubr.bf16.mxu0 0
      %639 = vmatmul.mubr.bf16.gmra.mrb[0].mxu0 %v403
      %v640 = vpop.f32.mrb[0].mxu0
      %v641 = vadd.f32 %v260, %v640
      %v642 = vpop.f32.mrb[0].mxu0
      %v643 = vpop.f32.mrb[0].mxu0
      %v644 = vadd.f32 %v260, %v643
      %v645 = vpop.f32.mrb[0].mxu0
      %646 = vmatprep.mubr.bf16.mxu0 0
      %647 = vmatmul.mubr.bf16.gmra.mrb[0].mxu0 %v404
      %v648 = vpop.f32.mrb[0].mxu0
      %v649 = vadd.f32 %v260, %v648
      %v650 = vpop.f32.mrb[0].mxu0
      %v651 = vpop.f32.mrb[0].mxu0
      %v652 = vadd.f32 %v260, %v651
      %v653 = vpop.f32.mrb[0].mxu0
      %654 = vmatprep.mubr.bf16.mxu0 0
      %655 = vmatmul.mubr.bf16.gmra.mrb[0].mxu0 %v405
      %v656 = vpop.f32.mrb[0].mxu0
      %v657 = vadd.f32 %v260, %v656
      %v658 = vpop.f32.mrb[0].mxu0
      %v659 = vpop.f32.mrb[0].mxu0
      %v660 = vadd.f32 %v260, %v659
      %v661 = vpop.f32.mrb[0].mxu0
      %662 = vmatprep.mubr.bf16.mxu0 0
      %663 = vmatmul.mubr.bf16.gmra.mrb[0].mxu0 %v406
      %v664 = vpop.f32.mrb[0].mxu0
      %v665 = vadd.f32 %v260, %v664
      %v666 = vpop.f32.mrb[0].mxu0
      %v667 = vpop.f32.mrb[0].mxu0
      %v668 = vadd.f32 %v260, %v667
      %v669 = vpop.f32.mrb[0].mxu0
      %670 = vmatprep.mubr.bf16.mxu0 0
      %671 = vmatmul.mubr.bf16.gmra.mrb[0].mxu0 %v407
      %v672 = vpop.f32.mrb[0].mxu0
      %v673 = vadd.f32 %v260, %v672
      %v674 = vpop.f32.mrb[0].mxu0
      %v675 = vpop.f32.mrb[0].mxu0
      %v676 = vadd.f32 %v260, %v675
      %v677 = vpop.f32.mrb[0].mxu0
      %678 = vmatprep.mubr.bf16.mxu0 0
      %679 = vmatmul.mubr.bf16.gmra.mrb[0].mxu0 %v408
      %v680 = vpop.f32.mrb[0].mxu0
      %v681 = vadd.f32 %v260, %v680
      %v682 = vpop.f32.mrb[0].mxu0
      %v683 = vpop.f32.mrb[0].mxu0
      %v684 = vadd.f32 %v260, %v683
      %v685 = vpop.f32.mrb[0].mxu0
      %686 = vmatprep.mubr.bf16.mxu0 0
      %687 = vmatmul.mubr.bf16.gmra.mrb[0].mxu0 %v409
      %v688 = vpop.f32.mrb[0].mxu0
      %v689 = vadd.f32 %v260, %v688
      %v690 = vpop.f32.mrb[0].mxu0
      %v691 = vpop.f32.mrb[0].mxu0
      %v692 = vadd.f32 %v260, %v691
      %v693 = vpop.f32.mrb[0].mxu0
      %694 = vmatprep.mubr.bf16.mxu0 0
      %695 = vmatmul.mubr.bf16.gmra.mrb[0].mxu0 %v410
      %v696 = vpop.f32.mrb[0].mxu0
      %v697 = vadd.f32 %v260, %v696
      %v698 = vpop.f32.mrb[0].mxu0
      %v699 = vpop.f32.mrb[0].mxu0
      %v700 = vadd.f32 %v260, %v699
      %v701 = vpop.f32.mrb[0].mxu0
      %702 = vmatprep.mubr.bf16.mxu0 0
      %703 = vmatmul.mubr.bf16.gmra.mrb[0].mxu0 %v411
      %v704 = vpop.f32.mrb[0].mxu0
      %v705 = vadd.f32 %v260, %v704
      %v706 = vpop.f32.mrb[0].mxu0
      %v707 = vpop.f32.mrb[0].mxu0
      %v708 = vadd.f32 %v260, %v707
      %v709 = vpop.f32.mrb[0].mxu0
      %710 = vmatprep.mubr.bf16.mxu0 0
      %711 = vmatmul.mubr.bf16.gmra.mrb[0].mxu0 %v412
      %v712 = vpop.f32.mrb[0].mxu0
      %v713 = vadd.f32 %v260, %v712
      %v714 = vpop.f32.mrb[0].mxu0
      %v715 = vpop.f32.mrb[0].mxu0
      %v716 = vadd.f32 %v260, %v715
      %v717 = vpop.f32.mrb[0].mxu0
      %718 = vmatprep.mubr.bf16.mxu0 0
      %719 = vmatmul.mubr.bf16.gmra.mrb[0].mxu0 %v413
      %v720 = vpop.f32.mrb[0].mxu0
      %v721 = vadd.f32 %v260, %v720
      %v722 = vpop.f32.mrb[0].mxu0
      %v723 = vpop.f32.mrb[0].mxu0
      %v724 = vadd.f32 %v260, %v723
      %v725 = vpop.f32.mrb[0].mxu0
      %726 = vmatprep.mubr.bf16.mxu0 0
      %727 = vmatmul.mubr.bf16.gmra.mrb[0].mxu0 %v414
      %v728 = vpop.f32.mrb[0].mxu0
      %v729 = vadd.f32 %v260, %v728
      %v730 = vpop.f32.mrb[0].mxu0
      %v731 = vpop.f32.mrb[0].mxu0
      %v732 = vadd.f32 %v260, %v731
      %v733 = vpop.f32.mrb[0].mxu0
      %734 = vmatprep.mubr.bf16.mxu0 0
      %735 = vmatmul.mubr.bf16.gmra.mrb[0].mxu0 %v415
      %v736 = vpop.f32.mrb[0].mxu0
      %v737 = vadd.f32 %v260, %v736
      %v738 = vpop.f32.mrb[0].mxu0
      %v739 = vpop.f32.mrb[0].mxu0
      %v740 = vadd.f32 %v260, %v739
      %v741 = vpop.f32.mrb[0].mxu0
      %742 = vmatprep.mubr.bf16.mxu0 0
      %743 = vmatmul.mubr.bf16.gmra.mrb[0].mxu0 %v416
      %v744 = vpop.f32.mrb[0].mxu0
      %v745 = vadd.f32 %v260, %v744
      %v746 = vpop.f32.mrb[0].mxu0
      %v747 = vpop.f32.mrb[0].mxu0
      %v748 = vadd.f32 %v260, %v747
      %v749 = vpop.f32.mrb[0].mxu0
      %750 = vmatprep.mubr.bf16.mxu0 0
      %751 = vmatmul.mubr.bf16.gmra.mrb[0].mxu0 %v417
      %v752 = vpop.f32.mrb[0].mxu0
      %v753 = vadd.f32 %v260, %v752
      %v754 = vpop.f32.mrb[0].mxu0
      %v755 = vpop.f32.mrb[0].mxu0
      %v756 = vadd.f32 %v260, %v755
      %v757 = vpop.f32.mrb[0].mxu0
      %758 = vmatprep.mubr.bf16.mxu0 0
      %759 = vmatmul.mubr.bf16.gmra.mrb[0].mxu0 %v418
      %v760 = vpop.f32.mrb[0].mxu0
      %v761 = vadd.f32 %v260, %v760
      %v762 = vpop.f32.mrb[0].mxu0
      %v763 = vpop.f32.mrb[0].mxu0
      %v764 = vadd.f32 %v260, %v763
      %v765 = vpop.f32.mrb[0].mxu0
      %766 = vmatprep.mubr.bf16.mxu0 0
      %767 = vmatmul.mubr.bf16.gmra.mrb[0].mxu0 %v419
      %v768 = vpop.f32.mrb[0].mxu0
      %v769 = vadd.f32 %v260, %v768
      %v770 = vpop.f32.mrb[0].mxu0
      %v771 = vpop.f32.mrb[0].mxu0
      %v772 = vadd.f32 %v260, %v771
      %v773 = vpop.f32.mrb[0].mxu0
      %774 = vmatprep.mubr.bf16.mxu0 0
      %775 = vmatmul.mubr.bf16.gmra.mrb[0].mxu0 %v420
      %v776 = vpop.f32.mrb[0].mxu0
      %v777 = vadd.f32 %v260, %v776
      %v778 = vpop.f32.mrb[0].mxu0
      %v779 = vpop.f32.mrb[0].mxu0
      %v780 = vadd.f32 %v260, %v779
      %v781 = vpop.f32.mrb[0].mxu0
      %782 = vmatprep.mubr.bf16.mxu0 0
      %783 = vmatmul.mubr.bf16.gmra.mrb[0].mxu0 %v421
      %v784 = vpop.f32.mrb[0].mxu0
      %v785 = vadd.f32 %v260, %v784
      %v786 = vpop.f32.mrb[0].mxu0
      %v787 = vpop.f32.mrb[0].mxu0
      %v788 = vadd.f32 %v260, %v787
      %v789 = vpop.f32.mrb[0].mxu0
      %790 = vdwg.mxu0
      %v791 = vtanh.pop %v537
      %v792 = vtanh.pop %v540
      %v793 = vtanh.pop %v545
      %v794 = vtanh.pop %v548
      %v795 = vtanh.pop %v553
      %v796 = vtanh.pop %v556
      %v797 = vtanh.pop %v561
      %v798 = vtanh.pop %v564
      %v799 = vtanh.pop %v569
      %v800 = vtanh.pop %v572
      %v801 = vtanh.pop %v577
      %v802 = vtanh.pop %v580
      %v803 = vtanh.pop %v585
      %v804 = vtanh.pop %v588
      %v805 = vtanh.pop %v593
      %v806 = vtanh.pop %v596
      %v807 = vtanh.pop %v601
      %v808 = vtanh.pop %v604
      %v809 = vtanh.pop %v609
      %v810 = vtanh.pop %v612
      %v811 = vtanh.pop %v617
      %v812 = vtanh.pop %v620
      %v813 = vtanh.pop %v625
      %v814 = vtanh.pop %v628
      %v815 = vtanh.pop %v633
      %v816 = vtanh.pop %v636
      %v817 = vtanh.pop %v641
      %v818 = vtanh.pop %v644
      %v819 = vtanh.pop %v649
      %v820 = vtanh.pop %v652
      %v821 = vtanh.pop %v657
      %v822 = vtanh.pop %v660
      %v823 = vtanh.pop %v665
      %v824 = vtanh.pop %v668
      %v825 = vtanh.pop %v673
      %v826 = vtanh.pop %v676
      %v827 = vtanh.pop %v681
      %v828 = vtanh.pop %v684
      %v829 = vtanh.pop %v689
      %v830 = vtanh.pop %v692
      %v831 = vtanh.pop %v697
      %v832 = vtanh.pop %v700
      %v833 = vtanh.pop %v705
      %v834 = vtanh.pop %v708
      %v835 = vtanh.pop %v713
      %v836 = vtanh.pop %v716
      %v837 = vtanh.pop %v721
      %v838 = vtanh.pop %v724
      %v839 = vtanh.pop %v729
      %v840 = vtanh.pop %v732
      %v841 = vtanh.pop %v737
      %v842 = vtanh.pop %v740
      %v843 = vtanh.pop %v745
      %v844 = vtanh.pop %v748
      %v845 = vtanh.pop %v753
      %v846 = vtanh.pop %v756
      %v847 = vtanh.pop %v761
      %v848 = vtanh.pop %v764
      %v849 = vtanh.pop %v769
      %v850 = vtanh.pop %v772
      %v851 = vtanh.pop %v777
      %v852 = vtanh.pop %v780
      %v853 = vtanh.pop %v785
      %v854 = vtanh.pop %v788
      %855 = vst [vmem:[%s172] sm:$0xff] %v791
      %856 = vst [vmem:[%s172 + $0x8] sm:$0xff] %v792
      %857 = vst [vmem:[%s172 + $0x10] sm:$0xff] %v793
      %858 = vst [vmem:[%s172 + $0x18] sm:$0xff] %v794
      %859 = vst [vmem:[%s172 + $0x20] sm:$0xff] %v795
      %860 = vst [vmem:[%s172 + $0x28] sm:$0xff] %v796
      %861 = vst [vmem:[%s172 + $0x30] sm:$0xff] %v797
      %862 = vst [vmem:[%s172 + $0x38] sm:$0xff] %v798
      %863 = vst [vmem:[%s172 + $0x40] sm:$0xff] %v799
      %864 = vst [vmem:[%s172 + $0x48] sm:$0xff] %v800
      %865 = vst [vmem:[%s172 + $0x50] sm:$0xff] %v801
      %866 = vst [vmem:[%s172 + $0x58] sm:$0xff] %v802
      %867 = vst [vmem:[%s172 + $0x60] sm:$0xff] %v803
      %868 = vst [vmem:[%s172 + $0x68] sm:$0xff] %v804
      %869 = vst [vmem:[%s172 + $0x70] sm:$0xff] %v805
      %870 = vst [vmem:[%s172 + $0x78] sm:$0xff] %v806
      %871 = vst [vmem:[%s172 + $0x80] sm:$0xff] %v807
      %872 = vst [vmem:[%s172 + $0x88] sm:$0xff] %v808
      %873 = vst [vmem:[%s172 + $0x90] sm:$0xff] %v809
      %874 = vst [vmem:[%s172 + $0x98] sm:$0xff] %v810
      %875 = vst [vmem:[%s172 + $0xa0] sm:$0xff] %v811
      %876 = vst [vmem:[%s172 + $0xa8] sm:$0xff] %v812
      %877 = vst [vmem:[%s172 + $0xb0] sm:$0xff] %v813
      %878 = vst [vmem:[%s172 + $0xb8] sm:$0xff] %v814
      %879 = vst [vmem:[%s172 + $0xc0] sm:$0xff] %v815
      %880 = vst [vmem:[%s172 + $0xc8] sm:$0xff] %v816
      %881 = vst [vmem:[%s172 + $0xd0] sm:$0xff] %v817
      %882 = vst [vmem:[%s172 + $0xd8] sm:$0xff] %v818
      %883 = vst [vmem:[%s172 + $0xe0] sm:$0xff] %v819
      %884 = vst [vmem:[%s172 + $0xe8] sm:$0xff] %v820
      %885 = vst [vmem:[%s172 + $0xf0] sm:$0xff] %v821
      %886 = vst [vmem:[%s172 + $0xf8] sm:$0xff] %v822
      %887 = vst [vmem:[%s172 + $0x100] sm:$0xff] %v823
      %888 = vst [vmem:[%s172 + $0x108] sm:$0xff] %v824
      %889 = vst [vmem:[%s172 + $0x110] sm:$0xff] %v825
      %890 = vst [vmem:[%s172 + $0x118] sm:$0xff] %v826
      %891 = vst [vmem:[%s172 + $0x120] sm:$0xff] %v827
      %892 = vst [vmem:[%s172 + $0x128] sm:$0xff] %v828
      %893 = vst [vmem:[%s172 + $0x130] sm:$0xff] %v829
      %894 = vst [vmem:[%s172 + $0x138] sm:$0xff] %v830
      %895 = vst [vmem:[%s172 + $0x140] sm:$0xff] %v831
      %896 = vst [vmem:[%s172 + $0x148] sm:$0xff] %v832
      %897 = vst [vmem:[%s172 + $0x150] sm:$0xff] %v833
      %898 = vst [vmem:[%s172 + $0x158] sm:$0xff] %v834
      %899 = vst [vmem:[%s172 + $0x160] sm:$0xff] %v835
      %900 = vst [vmem:[%s172 + $0x168] sm:$0xff] %v836
      %901 = vst [vmem:[%s172 + $0x170] sm:$0xff] %v837
      %902 = vst [vmem:[%s172 + $0x178] sm:$0xff] %v838
      %903 = vst [vmem:[%s172 + $0x180] sm:$0xff] %v839
      %904 = vst [vmem:[%s172 + $0x188] sm:$0xff] %v840
      %905 = vst [vmem:[%s172 + $0x190] sm:$0xff] %v841
      %906 = vst [vmem:[%s172 + $0x198] sm:$0xff] %v842
      %907 = vst [vmem:[%s172 + $0x1a0] sm:$0xff] %v843
      %908 = vst [vmem:[%s172 + $0x1a8] sm:$0xff] %v844
      %909 = vst [vmem:[%s172 + $0x1b0] sm:$0xff] %v845
      %910 = vst [vmem:[%s172 + $0x1b8] sm:$0xff] %v846
      %911 = vst [vmem:[%s172 + $0x1c0] sm:$0xff] %v847
      %912 = vst [vmem:[%s172 + $0x1c8] sm:$0xff] %v848
      %913 = vst [vmem:[%s172 + $0x1d0] sm:$0xff] %v849
      %914 = vst [vmem:[%s172 + $0x1d8] sm:$0xff] %v850
      %915 = vst [vmem:[%s172 + $0x1e0] sm:$0xff] %v851
      %916 = vst [vmem:[%s172 + $0x1e8] sm:$0xff] %v852
      %917 = vst [vmem:[%s172 + $0x1f0] sm:$0xff] %v853
      %918 = vst [vmem:[%s172 + $0x1f8] sm:$0xff] %v854
      %s919 = smul.u32 64, %s14
      %p920 = scmp.lt.s32.totalorder %s919, 1023
      %s921 = scalar_select %p920, %s919, 1023
      %s922 = smul.addr %s921, 8
      %s923 = scalar_lea.vmem %s3, %s922
      // Predicated region
      $region33: #{forward.9} parent=31 // pred_check
        %p924 = pneg %p100
      $region34: #{forward.9} parent=31 // pred_check_branch
        %926 = sbr.rel (%p924) target = $region36
      $region35: #{forward.9} parent=31 // pred_region
        %s927 = smul.u32 64, %s14
      $region36: #{forward.9} parent=31 // pred_fallthru
        _
    $region32: #{forward.9} parent=5 // pred_fallthru
      _
    %p928 = scmp.le.s32.totalorder 2, %s9
    // Predicated region
    $region37: #{forward.9} parent=5 // pred_check
      %p929 = pneg %p928
    $region38: #{forward.9} parent=5 // pred_check_branch
      %931 = sbr.rel (%p929) target = $region40
    $region39: #{forward.9} parent=5 // pred_region
      %s932 = ssub.s32 %s9, 2
      // Predicated region
      $region41: #{forward.9} parent=39 // pred_check
        %p933 = pneg %p106
      $region42: #{forward.9} parent=39 // pred_check_branch
        %935 = sbr.rel (%p933) target = $region44
      $region43: #{forward.9} parent=39 // pred_region
        %s936 = smul.u32 64, %s15
        %p937 = scmp.lt.s32.totalorder %s936, 1023
        %s938 = scalar_select %p937, %s936, 1023
        %s939 = smul.addr %s938, 8
        %s940 = scalar_lea.vmem %s3, %s939
      $region44: #{forward.9} parent=39 // pred_fallthru
        _
    $region40: #{forward.9} parent=5 // pred_fallthru
      _
  $region6: #{forward.9} parent=0 // loop_footer
    %s13 = sadd.s32 1, %s9
  $region7: #{forward.9} parent=0 // loop_footer_branch
    %8 = sbr.rel target = $region3
  $region8: #{forward.9} parent=0 // loop_exit
    _

</llo_original>
